<compile_context>
chip_gen: v5e
topology: v5e:2x2
jax: 0.10.0
libtpu: 0.0.40
codegen_flags: <defaults>
</compile_context>

<pallas_src>
import math

import jax
import jax.numpy as jnp
from jax.experimental import pallas as pl
from jax.experimental.pallas import tpu as pltpu


_MAX_UNROLL = 32   # statically unroll the time loop up to this many steps


# ----------------------------------------------------------------------------
# Shared GRU cell (gate order r, z, n).  b_ih and b_hh of the r/z gates are
# already folded into gi_*; only the n-gate hidden bias is applied here.
# ----------------------------------------------------------------------------
def _gru_cell(gi_r, gi_z, gi_n, h, w_r, w_z, w_n, bhn):
    hc = h.astype(w_r.dtype)
    gh_r = jnp.dot(hc, w_r, preferred_element_type=jnp.float32)
    gh_z = jnp.dot(hc, w_z, preferred_element_type=jnp.float32)
    gh_n = jnp.dot(hc, w_n, preferred_element_type=jnp.float32)
    r = jax.nn.sigmoid(gi_r + gh_r)
    z = jax.nn.sigmoid(gi_z + gh_z)
    n = jnp.tanh(gi_n + r * (gh_n + bhn))
    return (1.0 - z) * n + z * h


# ----------------------------------------------------------------------------
# Fused kernel (default, single-TensorCore chips): both directions in one body.
#   gi_ref   (6, S, B, H)   rows = dir*3 + gate (dir 0=fwd, 1=bwd; gates r,z,n)
#   whh_ref  (6, H, H)      recurrent weights per (dir, gate), pre-transposed
#   bhn_ref  (2, 1, H)      n-gate hidden bias per direction
#   out_ref  (S, B, 2H)     concat(fwd, bwd) per timestep (written directly)
#   hlast_ref(2, B, H)      final hidden per direction
# ----------------------------------------------------------------------------
def _bigru_fused_kernel(gi_ref, whh_ref, bhn_ref, out_ref, hlast_ref):
    _, S, B, H = gi_ref.shape
    f32 = jnp.float32

    # hoist loop-invariants out of the recurrence (weights, broadcast n bias)
    w = [whh_ref[i] for i in range(6)]
    bhn = [jnp.broadcast_to(bhn_ref[d].astype(f32), (B, H)) for d in range(2)]

    def load_gi(d, t):
        return (gi_ref[3 * d + 0, t].astype(f32),
                gi_ref[3 * d + 1, t].astype(f32),
                gi_ref[3 * d + 2, t].astype(f32))

    def step(t, hf, hb):
        # fwd processes original time t, bwd processes original time S-1-t;
        # the two directions' tiny latency-bound matmuls overlap on the MXU.
        tb = S - 1 - t
        gfr, gfz, gfn = load_gi(0, t)
        gbr, gbz, gbn = load_gi(1, tb)
        hf = _gru_cell(gfr, gfz, gfn, hf, w[0], w[1], w[2], bhn[0])
        hb = _gru_cell(gbr, gbz, gbn, hb, w[3], w[4], w[5], bhn[1])
        out_ref[t, :, 0:H] = hf.astype(out_ref.dtype)
        out_ref[tb, :, H:2 * H] = hb.astype(out_ref.dtype)
        return hf, hb

    hf = jnp.zeros((B, H), f32)   # initHidden(): zeros -> no HBM input needed
    hb = jnp.zeros((B, H), f32)
    if S <= _MAX_UNROLL:
        for t in range(S):        # static unroll: all time indices are static
            hf, hb = step(t, hf, hb)
    else:
        hf, hb = jax.lax.fori_loop(0, S, lambda i, c: step(i, *c), (hf, hb),
                                   unroll=4)
    hlast_ref[0] = hf.astype(hlast_ref.dtype)
    hlast_ref[1] = hb.astype(hlast_ref.dtype)


# ----------------------------------------------------------------------------
# Split kernel (v7x): one direction per grid step, "parallel" -> one per core.
# The backward direction's gi slab is pre-time-reversed by the wrapper, so the
# kernel always walks t = 0..S-1 with static indices; the wrapper un-reverses
# that direction's output.
# ----------------------------------------------------------------------------
def _bigru_dir_kernel(gi_ref, whh_ref, bhn_ref, out_ref, hlast_ref):
    _, S, B, H = gi_ref.shape               # gi_ref: (3, S, B, H)
    f32 = jnp.float32
    w = [whh_ref[g] for g in range(3)]
    bhn = jnp.broadcast_to(bhn_ref[...].astype(f32), (B, H))

    def step(t, h):
        h = _gru_cell(gi_ref[0, t].astype(f32), gi_ref[1, t].astype(f32),
                      gi_ref[2, t].astype(f32), h, w[0], w[1], w[2], bhn)
        out_ref[t] = h.astype(out_ref.dtype)
        return h

    h = jnp.zeros((B, H), f32)
    if S <= _MAX_UNROLL:
        for t in range(S):
            h = step(t, h)
    else:
        h = jax.lax.fori_loop(0, S, step, h, unroll=4)
    hlast_ref[...] = h.astype(hlast_ref.dtype)


# ----------------------------------------------------------------------------
# One bidirectional GRU layer.
#   gi    (2, 3, S, B, H)  precomputed gate-major input projection (f32/bf16)
#   whh   (6, H, H)        recurrent weights per (dir, gate) (f32/bf16)
#   bhh_n (2, 1, H) f32    hidden bias of the n gate per direction
# returns out (S, B, 2H) f32, h_last (2, B, H) f32
# ----------------------------------------------------------------------------
def bigru_layer_pallas(gi, whh, bhh_n, *, split_directions=False,
                       vmem_limit_bytes=None):
    ndir, ngate, S, B, H = gi.shape
    assert ndir == 2 and ngate == 3 and whh.shape == (6, H, H)

    cp = {}
    if vmem_limit_bytes is not None:   # e.g. large configs on v7x (64 MiB VMEM)
        cp["vmem_limit_bytes"] = vmem_limit_bytes
    # Note: for very long sequences the gi slab should get a time-chunk grid
    # axis ("arbitrary") carrying h in VMEM scratch; not needed at these sizes.

    if split_directions:
        # v7x: one direction per TensorCore.  Pre-reverse the backward gi so
        # the kernel walks forward with static indices.
        gi = jnp.concatenate([gi[:1], jnp.flip(gi[1:], axis=2)], axis=0)
        gi6 = gi.reshape(6, S, B, H)
        out2, hlast = pl.pallas_call(
            _bigru_dir_kernel,
            out_shape=(jax.ShapeDtypeStruct((2, S, B, H), jnp.float32),
                       jax.ShapeDtypeStruct((2, B, H), jnp.float32)),
            grid=(2,),
            in_specs=[
                pl.BlockSpec((3, S, B, H), lambda d: (d, 0, 0, 0)),
                pl.BlockSpec((3, H, H), lambda d: (d, 0, 0)),
                pl.BlockSpec((None, 1, H), lambda d: (d, 0, 0)),
            ],
            out_specs=(
                pl.BlockSpec((None, S, B, H), lambda d: (d, 0, 0, 0)),
                pl.BlockSpec((None, B, H), lambda d: (d, 0, 0)),
            ),
            compiler_params=pltpu.CompilerParams(
                dimension_semantics=("parallel",), **cp),
        )(gi6, whh, bhh_n)
        out = jnp.concatenate([out2[0], jnp.flip(out2[1], axis=0)], axis=-1)
        return out, hlast

    # Fused path (v5e/v6e): both directions in one kernel invocation; writes
    # straight into the (S, B, 2H) layer output (no wrapper concat).
    gi6 = gi.reshape(6, S, B, H)
    out, hlast = pl.pallas_call(
        _bigru_fused_kernel,
        out_shape=(jax.ShapeDtypeStruct((S, B, 2 * H), jnp.float32),
                   jax.ShapeDtypeStruct((2, B, H), jnp.float32)),
        grid=(1,),
        in_specs=[
            pl.BlockSpec((6, S, B, H), lambda i: (0, 0, 0, 0)),
            pl.BlockSpec((6, H, H), lambda i: (0, 0, 0)),
            pl.BlockSpec((2, 1, H), lambda i: (0, 0, 0)),
        ],
        out_specs=(
            pl.BlockSpec((S, B, 2 * H), lambda i: (0, 0, 0)),
            pl.BlockSpec((2, B, H), lambda i: (0, 0, 0)),
        ),
        compiler_params=pltpu.CompilerParams(
            dimension_semantics=("arbitrary",), **cp),
    )(gi6, whh, bhh_n)
    return out, hlast


def _default_split_directions():
    # v7x has 2 TensorCores/chip -> put one direction on each core.  Single-TC
    # chips (v5e/v6e) are better served by fusing both directions in one body.
    try:
        kind = jax.devices()[0].device_kind.lower()
    except Exception:
        return False
    return "v7" in kind


# ----------------------------------------------------------------------------
# One-time parameter preprocessing (gate-major transposes, bias folding,
# size-gated embedding fusion).
# ----------------------------------------------------------------------------
def preprocess_params(emb_weight, gru_params, *, hidden, n_layers,
                      compute_dtype=jnp.float32, fuse_embedding=None):
    H = hidden
    emb = jnp.asarray(emb_weight, jnp.float32)
    vocab, embed = emb.shape
    layers = []
    for layer in range(n_layers):
        wihT_d, whh_d, bias_d, bhn_d = [], [], [], []
        for d in range(2):  # 0 = forward, 1 = backward
            w_ih, w_hh, b_ih, b_hh = gru_params[layer][d]
            w_ih = jnp.asarray(w_ih, jnp.float32)    # (3H, In)
            w_hh = jnp.asarray(w_hh, jnp.float32)    # (3H, H)
            b_ih = jnp.asarray(b_ih, jnp.float32)
            b_hh = jnp.asarray(b_hh, jnp.float32)
            # gate-major transposed weights, gate order r, z, n
            wihT_d.append(jnp.stack([w_ih[g * H:(g + 1) * H].T for g in range(3)]))
            whh_d.append(jnp.stack([w_hh[g * H:(g + 1) * H].T for g in range(3)]))
            # fold b_hh of the r/z gates into the input-side bias; keep b_hh_n
            bias_d.append(jnp.stack([
                (b_ih[0:H] + b_hh[0:H]).reshape(1, H),
                (b_ih[H:2 * H] + b_hh[H:2 * H]).reshape(1, H),
                b_ih[2 * H:3 * H].reshape(1, H),
            ]))
            bhn_d.append(b_hh[2 * H:].reshape(1, H))
        wihT = jnp.stack(wihT_d)                                 # (2, 3, In, H)
        whh = jnp.stack(whh_d).reshape(6, H, H).astype(compute_dtype)
        bias = jnp.stack(bias_d)                                 # (2, 3, 1, H)
        bhh_n = jnp.stack(bhn_d)                                 # (2, 1, H)
        if layer == 0:
            fuse = fuse_embedding
            if fuse is None:
                # fused per-token table is (2*3H/embed)x bigger than the raw
                # embedding -> only fuse for small vocabs / wide embeddings
                fuse = (vocab <= 4096) or (6 * H <= 2 * embed)
            if fuse:
                # table[d, g, v] = emb[v] @ W_ih[d, g]^T + bias[d, g]
                table = jnp.einsum("ve,dgeh->dgvh", emb, wihT) + bias
                layers.append(dict(kind="embed_fused", table=table,
                                   whh=whh, bhh_n=bhh_n))
            else:
                layers.append(dict(kind="embed_dense", emb=emb, wihT=wihT,
                                   bias=bias, whh=whh, bhh_n=bhh_n))
        else:
            layers.append(dict(kind="dense", wihT=wihT, bias=bias,
                               whh=whh, bhh_n=bhh_n))
    return layers


# ----------------------------------------------------------------------------
# EncoderRNN forward: gather / one big GEMM per layer (XLA glue) + Pallas
# recurrence.  Matches nn.GRU(batch_first=False, bidirectional=True).
# ----------------------------------------------------------------------------
def encoder_rnn_forward(tokens, layers, *, batch, hidden, split_directions=None,
                        gi_dtype=jnp.float32, vmem_limit_bytes=None):
    H = hidden
    if split_directions is None:
        split_directions = _default_split_directions()
    # embedded = self.embedding(input).view(-1, batch, embed)
    tokens = tokens.reshape(-1, batch)                  # (S, B)
    S, B = tokens.shape

    output = None
    h_finals = []
    for lp in layers:
        if lp["kind"] == "embed_fused":
            # layer 0 with fused table: whole input GEMM becomes a gather
            gi = jnp.take(lp["table"], tokens.reshape(-1), axis=2)   # (2,3,S*B,H)
        elif lp["kind"] == "embed_dense":
            x2 = jnp.take(lp["emb"], tokens.reshape(-1), axis=0)     # (S*B, E)
            gi = jnp.einsum("nk,dgkh->dgnh", x2, lp["wihT"]) + lp["bias"]
        else:
            x2 = output.reshape(S * B, 2 * H)
            gi = jnp.einsum("nk,dgkh->dgnh", x2, lp["wihT"]) + lp["bias"]
        gi = gi.reshape(2, 3, S, B, H).astype(gi_dtype)
        output, hlast = bigru_layer_pallas(
            gi, lp["whh"], lp["bhh_n"], split_directions=split_directions,
            vmem_limit_bytes=vmem_limit_bytes)                        # (S,B,2H)
        h_finals.append(hlast)                                        # (2,B,H)
    hidden_out = jnp.concatenate(h_finals, axis=0)         # (n_layers*2, B, H)
    return output, hidden_out


# ----------------------------------------------------------------------------
# Pure-JAX reference (for correctness check), on raw PyTorch-layout params.
# ----------------------------------------------------------------------------
def _gru_dir_ref(x, w_ih, w_hh, b_ih, b_hh, h0, reverse):
    seq = x.shape[0]
    H = h0.shape[-1]
    h = h0
    outs = [None] * seq
    order = range(seq - 1, -1, -1) if reverse else range(seq)
    for t in order:
        gi = x[t] @ w_ih.T + b_ih
        gh = h @ w_hh.T + b_hh
        r = jax.nn.sigmoid(gi[:, :H] + gh[:, :H])
        z = jax.nn.sigmoid(gi[:, H:2 * H] + gh[:, H:2 * H])
        n = jnp.tanh(gi[:, 2 * H:] + r * gh[:, 2 * H:])
        h = (1.0 - z) * n + z * h
        outs[t] = h
    return jnp.stack(outs, 0), h


def _encoder_ref(tokens, emb_weight, gru_params, *, batch, hidden, n_layers):
    embed_size = emb_weight.shape[1]
    output = jnp.take(emb_weight, tokens.reshape(-1), axis=0).reshape(-1, batch, embed_size)
    h_finals = []
    for layer in range(n_layers):
        dir_outs = []
        for d in range(2):
            w_ih, w_hh, b_ih, b_hh = gru_params[layer][d]
            h0 = jnp.zeros((batch, hidden), jnp.float32)
            o, hf = _gru_dir_ref(output, w_ih, w_hh, b_ih, b_hh, h0, reverse=(d == 1))
            dir_outs.append(o)
            h_finals.append(hf)
        output = jnp.concatenate(dir_outs, axis=-1)
    return output, jnp.stack(h_finals, axis=0)


# ----------------------------------------------------------------------------
# Deterministic parameter init (synthetic stand-in for the pre-trained
# embedding and nn.GRU parameters; shapes match the PyTorch module).
# ----------------------------------------------------------------------------
def init_params(key, vocab, embed, hidden, n_layers):
    n_keys = 1 + n_layers * 2 * 4
    keys = jax.random.split(key, n_keys)
    emb = 0.1 * jax.random.normal(keys[0], (vocab, embed), jnp.float32)
    s = 1.0 / math.sqrt(hidden)
    params = []
    k = 1
    for layer in range(n_layers):
        in_size = embed if layer == 0 else 2 * hidden
        layer_params = []
        for _d in range(2):  # bidirectional
            w_ih = jax.random.uniform(keys[k], (3 * hidden, in_size), jnp.float32, -s, s); k += 1
            w_hh = jax.random.uniform(keys[k], (3 * hidden, hidden), jnp.float32, -s, s); k += 1
            b_ih = jax.random.uniform(keys[k], (3 * hidden,), jnp.float32, -s, s); k += 1
            b_hh = jax.random.uniform(keys[k], (3 * hidden,), jnp.float32, -s, s); k += 1
            layer_params.append((w_ih, w_hh, b_ih, b_hh))
        params.append(layer_params)
    return emb, params


if __name__ == "__main__":
    # Small config consistent with the module (config.args.*):
    n_layers = 2
    hidden = 32
    batch = 2
    embed = 16
    vocab = 40
    seq = 8

    key = jax.random.PRNGKey(0)
    k_tok, k_par = jax.random.split(key)
    emb_weight, gru_params = init_params(k_par, vocab, embed, hidden, n_layers)
    tokens = jax.random.randint(k_tok, (seq, batch), 0, vocab, dtype=jnp.int32)

    ref_out, ref_hid = _encoder_ref(tokens, emb_weight, gru_params,
                                    batch=batch, hidden=hidden, n_layers=n_layers)

    layers_f32 = preprocess_params(emb_weight, gru_params, hidden=hidden,
                                   n_layers=n_layers, compute_dtype=jnp.float32)

    # --- fused-direction path (default on single-TC v5e/v6e), f32 -----------
    out, hid = encoder_rnn_forward(tokens, layers_f32, batch=batch, hidden=hidden,
                                   split_directions=False)
    out = jax.block_until_ready(out)
    hid = jax.block_until_ready(hid)
    assert out.shape == (seq, batch, 2 * hidden)
    assert hid.shape == (n_layers * 2, batch, hidden)
    assert jnp.allclose(out, ref_out, atol=1e-4, rtol=1e-4)
    assert jnp.allclose(hid, ref_hid, atol=1e-4, rtol=1e-4)

    # --- split-direction path (v7x: one direction per TensorCore), f32 ------
    out_s, hid_s = encoder_rnn_forward(tokens, layers_f32, batch=batch, hidden=hidden,
                                       split_directions=True)
    out_s = jax.block_until_ready(out_s)
    hid_s = jax.block_until_ready(hid_s)
    assert jnp.allclose(out_s, ref_out, atol=1e-4, rtol=1e-4)
    assert jnp.allclose(hid_s, ref_hid, atol=1e-4, rtol=1e-4)

    # --- bf16 recurrent weights + bf16 gi slab (v6e/v7x), loose tolerance ---
    layers_bf16 = preprocess_params(emb_weight, gru_params, hidden=hidden,
                                    n_layers=n_layers, compute_dtype=jnp.bfloat16)
    out_bf, hid_bf = encoder_rnn_forward(tokens, layers_bf16, batch=batch,
                                         hidden=hidden, split_directions=False,
                                         gi_dtype=jnp.bfloat16)
    out_bf = jax.block_until_ready(out_bf)
    hid_bf = jax.block_until_ready(hid_bf)
    assert out_bf.shape == (seq, batch, 2 * hidden)
    assert jnp.allclose(out_bf, ref_out, atol=1e-1, rtol=1e-1)
    assert jnp.allclose(hid_bf, ref_hid, atol=1e-1, rtol=1e-1)

    print("KERNEL_OK")
</pallas_src>

<mosaic_0001>
module attributes {stable_mosaic.version = 11 : i64} {
  func.func @_bigru_fused_kernel(%arg0: i32, %arg1: memref<6x8x2x32xf32, #tpu.memory_space<vmem>>, %arg2: memref<6x32x32xf32, #tpu.memory_space<vmem>>, %arg3: memref<2x1x32xf32, #tpu.memory_space<vmem>>, %arg4: memref<8x2x64xf32, #tpu.memory_space<vmem>>, %arg5: memref<2x2x32xf32, #tpu.memory_space<vmem>>) attributes {dimension_semantics = [#tpu.dimension_semantics<arbitrary>], iteration_bounds = array<i64: 1>, scalar_prefetch = 0 : i64, scratch_operands = 0 : i64, tpu.core_type = #tpu.core_type<tc>, window_params = [{pipeline_mode = #tpu.pipeline_mode<synchronous>, transform_indices = @transform_0, window_bounds = array<i64: 6, 8, 2, 32>}, {pipeline_mode = #tpu.pipeline_mode<synchronous>, transform_indices = @transform_1, window_bounds = array<i64: 6, 32, 32>}, {pipeline_mode = #tpu.pipeline_mode<synchronous>, transform_indices = @transform_2, window_bounds = array<i64: 2, 1, 32>}, {pipeline_mode = #tpu.pipeline_mode<synchronous>, transform_indices = @transform_3, window_bounds = array<i64: 8, 2, 64>}, {pipeline_mode = #tpu.pipeline_mode<synchronous>, transform_indices = @transform_4, window_bounds = array<i64: 2, 2, 32>}]} {
    %c0 = arith.constant 0 : index
    %c0_0 = arith.constant 0 : index
    %c0_1 = arith.constant 0 : index
    %0 = vector.load %arg2[%c0, %c0_0, %c0_1] : memref<6x32x32xf32, #tpu.memory_space<vmem>>, vector<1x32x32xf32>
    %1 = vector.shape_cast %0 : vector<1x32x32xf32> to vector<32x32xf32>
    %c1 = arith.constant 1 : index
    %c0_2 = arith.constant 0 : index
    %c0_3 = arith.constant 0 : index
    %2 = vector.load %arg2[%c1, %c0_2, %c0_3] : memref<6x32x32xf32, #tpu.memory_space<vmem>>, vector<1x32x32xf32>
    %3 = vector.shape_cast %2 : vector<1x32x32xf32> to vector<32x32xf32>
    %c2 = arith.constant 2 : index
    %c0_4 = arith.constant 0 : index
    %c0_5 = arith.constant 0 : index
    %4 = vector.load %arg2[%c2, %c0_4, %c0_5] : memref<6x32x32xf32, #tpu.memory_space<vmem>>, vector<1x32x32xf32>
    %5 = vector.shape_cast %4 : vector<1x32x32xf32> to vector<32x32xf32>
    %c3 = arith.constant 3 : index
    %c0_6 = arith.constant 0 : index
    %c0_7 = arith.constant 0 : index
    %6 = vector.load %arg2[%c3, %c0_6, %c0_7] : memref<6x32x32xf32, #tpu.memory_space<vmem>>, vector<1x32x32xf32>
    %7 = vector.shape_cast %6 : vector<1x32x32xf32> to vector<32x32xf32>
    %c4 = arith.constant 4 : index
    %c0_8 = arith.constant 0 : index
    %c0_9 = arith.constant 0 : index
    %8 = vector.load %arg2[%c4, %c0_8, %c0_9] : memref<6x32x32xf32, #tpu.memory_space<vmem>>, vector<1x32x32xf32>
    %9 = vector.shape_cast %8 : vector<1x32x32xf32> to vector<32x32xf32>
    %c5 = arith.constant 5 : index
    %c0_10 = arith.constant 0 : index
    %c0_11 = arith.constant 0 : index
    %10 = vector.load %arg2[%c5, %c0_10, %c0_11] : memref<6x32x32xf32, #tpu.memory_space<vmem>>, vector<1x32x32xf32>
    %11 = vector.shape_cast %10 : vector<1x32x32xf32> to vector<32x32xf32>
    %c0_12 = arith.constant 0 : index
    %c0_13 = arith.constant 0 : index
    %c0_14 = arith.constant 0 : index
    %12 = vector.load %arg3[%c0_12, %c0_13, %c0_14] : memref<2x1x32xf32, #tpu.memory_space<vmem>>, vector<1x1x32xf32>
    %13 = vector.shape_cast %12 : vector<1x1x32xf32> to vector<1x32xf32>
    %14 = vector.shape_cast %13 : vector<1x32xf32> to vector<1x32xf32>
    %15 = vector.broadcast %14 : vector<1x32xf32> to vector<2x32xf32>
    %c1_15 = arith.constant 1 : index
    %c0_16 = arith.constant 0 : index
    %c0_17 = arith.constant 0 : index
    %16 = vector.load %arg3[%c1_15, %c0_16, %c0_17] : memref<2x1x32xf32, #tpu.memory_space<vmem>>, vector<1x1x32xf32>
    %17 = vector.shape_cast %16 : vector<1x1x32xf32> to vector<1x32xf32>
    %18 = vector.shape_cast %17 : vector<1x32xf32> to vector<1x32xf32>
    %19 = vector.broadcast %18 : vector<1x32xf32> to vector<2x32xf32>
    %cst = arith.constant 0.000000e+00 : f32
    %20 = vector.broadcast %cst : f32 to vector<2x32xf32>
    %cst_18 = arith.constant 0.000000e+00 : f32
    %21 = vector.broadcast %cst_18 : f32 to vector<2x32xf32>
    %c0_19 = arith.constant 0 : index
    %c0_20 = arith.constant 0 : index
    %c0_21 = arith.constant 0 : index
    %c0_22 = arith.constant 0 : index
    %22 = vector.load %arg1[%c0_19, %c0_20, %c0_21, %c0_22] : memref<6x8x2x32xf32, #tpu.memory_space<vmem>>, vector<1x1x2x32xf32>
    %23 = vector.shape_cast %22 : vector<1x1x2x32xf32> to vector<2x32xf32>
    %c1_23 = arith.constant 1 : index
    %c0_24 = arith.constant 0 : index
    %c0_25 = arith.constant 0 : index
    %c0_26 = arith.constant 0 : index
    %24 = vector.load %arg1[%c1_23, %c0_24, %c0_25, %c0_26] : memref<6x8x2x32xf32, #tpu.memory_space<vmem>>, vector<1x1x2x32xf32>
    %25 = vector.shape_cast %24 : vector<1x1x2x32xf32> to vector<2x32xf32>
    %c2_27 = arith.constant 2 : index
    %c0_28 = arith.constant 0 : index
    %c0_29 = arith.constant 0 : index
    %c0_30 = arith.constant 0 : index
    %26 = vector.load %arg1[%c2_27, %c0_28, %c0_29, %c0_30] : memref<6x8x2x32xf32, #tpu.memory_space<vmem>>, vector<1x1x2x32xf32>
    %27 = vector.shape_cast %26 : vector<1x1x2x32xf32> to vector<2x32xf32>
    %c3_31 = arith.constant 3 : index
    %c7 = arith.constant 7 : index
    %c0_32 = arith.constant 0 : index
    %c0_33 = arith.constant 0 : index
    %28 = vector.load %arg1[%c3_31, %c7, %c0_32, %c0_33] : memref<6x8x2x32xf32, #tpu.memory_space<vmem>>, vector<1x1x2x32xf32>
    %29 = vector.shape_cast %28 : vector<1x1x2x32xf32> to vector<2x32xf32>
    %c4_34 = arith.constant 4 : index
    %c7_35 = arith.constant 7 : index
    %c0_36 = arith.constant 0 : index
    %c0_37 = arith.constant 0 : index
    %30 = vector.load %arg1[%c4_34, %c7_35, %c0_36, %c0_37] : memref<6x8x2x32xf32, #tpu.memory_space<vmem>>, vector<1x1x2x32xf32>
    %31 = vector.shape_cast %30 : vector<1x1x2x32xf32> to vector<2x32xf32>
    %c5_38 = arith.constant 5 : index
    %c7_39 = arith.constant 7 : index
    %c0_40 = arith.constant 0 : index
    %c0_41 = arith.constant 0 : index
    %32 = vector.load %arg1[%c5_38, %c7_39, %c0_40, %c0_41] : memref<6x8x2x32xf32, #tpu.memory_space<vmem>>, vector<1x1x2x32xf32>
    %33 = vector.shape_cast %32 : vector<1x1x2x32xf32> to vector<2x32xf32>
    %cst_42 = arith.constant dense<0.000000e+00> : vector<2x32xf32>
    %34 = tpu.matmul %20, %1, %cst_42 {dimension_numbers = #tpu.dot_dimension_numbers<[1], [0], [0], [1], [0, 0, 1, 1], [], []>} : vector<2x32xf32>, vector<32x32xf32>, vector<2x32xf32> -> vector<2x32xf32>
    %cst_43 = arith.constant dense<0.000000e+00> : vector<2x32xf32>
    %35 = tpu.matmul %20, %3, %cst_43 {dimension_numbers = #tpu.dot_dimension_numbers<[1], [0], [0], [1], [0, 0, 1, 1], [], []>} : vector<2x32xf32>, vector<32x32xf32>, vector<2x32xf32> -> vector<2x32xf32>
    %cst_44 = arith.constant dense<0.000000e+00> : vector<2x32xf32>
    %36 = tpu.matmul %20, %5, %cst_44 {dimension_numbers = #tpu.dot_dimension_numbers<[1], [0], [0], [1], [0, 0, 1, 1], [], []>} : vector<2x32xf32>, vector<32x32xf32>, vector<2x32xf32> -> vector<2x32xf32>
    %37 = arith.addf %23, %34 : vector<2x32xf32>
    %38 = arith.negf %37 : vector<2x32xf32>
    %39 = math.exp %38 : vector<2x32xf32>
    %cst_45 = arith.constant 1.000000e+00 : f32
    %40 = vector.broadcast %cst_45 : f32 to vector<2x32xf32>
    %41 = arith.addf %40, %39 : vector<2x32xf32>
    %42 = arith.divf %40, %41 : vector<2x32xf32>
    %43 = arith.addf %25, %35 : vector<2x32xf32>
    %44 = arith.negf %43 : vector<2x32xf32>
    %45 = math.exp %44 : vector<2x32xf32>
    %cst_46 = arith.constant 1.000000e+00 : f32
    %46 = vector.broadcast %cst_46 : f32 to vector<2x32xf32>
    %47 = arith.addf %46, %45 : vector<2x32xf32>
    %48 = arith.divf %46, %47 : vector<2x32xf32>
    %49 = arith.addf %36, %15 : vector<2x32xf32>
    %50 = arith.mulf %42, %49 : vector<2x32xf32>
    %51 = arith.addf %27, %50 : vector<2x32xf32>
    %52 = math.tanh %51 : vector<2x32xf32>
    %cst_47 = arith.constant 1.000000e+00 : f32
    %53 = vector.broadcast %cst_47 : f32 to vector<2x32xf32>
    %54 = arith.subf %53, %48 : vector<2x32xf32>
    %55 = arith.mulf %54, %52 : vector<2x32xf32>
    %56 = arith.mulf %48, %20 : vector<2x32xf32>
    %57 = arith.addf %55, %56 : vector<2x32xf32>
    %cst_48 = arith.constant dense<0.000000e+00> : vector<2x32xf32>
    %58 = tpu.matmul %21, %7, %cst_48 {dimension_numbers = #tpu.dot_dimension_numbers<[1], [0], [0], [1], [0, 0, 1, 1], [], []>} : vector<2x32xf32>, vector<32x32xf32>, vector<2x32xf32> -> vector<2x32xf32>
    %cst_49 = arith.constant dense<0.000000e+00> : vector<2x32xf32>
    %59 = tpu.matmul %21, %9, %cst_49 {dimension_numbers = #tpu.dot_dimension_numbers<[1], [0], [0], [1], [0, 0, 1, 1], [], []>} : vector<2x32xf32>, vector<32x32xf32>, vector<2x32xf32> -> vector<2x32xf32>
    %cst_50 = arith.constant dense<0.000000e+00> : vector<2x32xf32>
    %60 = tpu.matmul %21, %11, %cst_50 {dimension_numbers = #tpu.dot_dimension_numbers<[1], [0], [0], [1], [0, 0, 1, 1], [], []>} : vector<2x32xf32>, vector<32x32xf32>, vector<2x32xf32> -> vector<2x32xf32>
    %61 = arith.addf %29, %58 : vector<2x32xf32>
    %62 = arith.negf %61 : vector<2x32xf32>
    %63 = math.exp %62 : vector<2x32xf32>
    %cst_51 = arith.constant 1.000000e+00 : f32
    %64 = vector.broadcast %cst_51 : f32 to vector<2x32xf32>
    %65 = arith.addf %64, %63 : vector<2x32xf32>
    %66 = arith.divf %64, %65 : vector<2x32xf32>
    %67 = arith.addf %31, %59 : vector<2x32xf32>
    %68 = arith.negf %67 : vector<2x32xf32>
    %69 = math.exp %68 : vector<2x32xf32>
    %cst_52 = arith.constant 1.000000e+00 : f32
    %70 = vector.broadcast %cst_52 : f32 to vector<2x32xf32>
    %71 = arith.addf %70, %69 : vector<2x32xf32>
    %72 = arith.divf %70, %71 : vector<2x32xf32>
    %73 = arith.addf %60, %19 : vector<2x32xf32>
    %74 = arith.mulf %66, %73 : vector<2x32xf32>
    %75 = arith.addf %33, %74 : vector<2x32xf32>
    %76 = math.tanh %75 : vector<2x32xf32>
    %cst_53 = arith.constant 1.000000e+00 : f32
    %77 = vector.broadcast %cst_53 : f32 to vector<2x32xf32>
    %78 = arith.subf %77, %72 : vector<2x32xf32>
    %79 = arith.mulf %78, %76 : vector<2x32xf32>
    %80 = arith.mulf %72, %21 : vector<2x32xf32>
    %81 = arith.addf %79, %80 : vector<2x32xf32>
    %c0_54 = arith.constant 0 : index
    %c0_55 = arith.constant 0 : index
    %c0_56 = arith.constant 0 : index
    %82 = vector.load %arg4[%c0_54, %c0_55, %c0_56] : memref<8x2x64xf32, #tpu.memory_space<vmem>>, vector<1x2x32xf32>
    %83 = vector.shape_cast %82 : vector<1x2x32xf32> to vector<2x32xf32>
    %84 = vector.shape_cast %57 : vector<2x32xf32> to vector<1x2x32xf32>
    tpu.vector_store %arg4[%c0_54, %c0_55, %c0_56], %84 {strides = array<i32>} : memref<8x2x64xf32, #tpu.memory_space<vmem>>, vector<1x2x32xf32>,
    %c7_57 = arith.constant 7 : index
    %c0_58 = arith.constant 0 : index
    %c32 = arith.constant 32 : index
    %85 = vector.load %arg4[%c7_57, %c0_58, %c32] : memref<8x2x64xf32, #tpu.memory_space<vmem>>, vector<1x2x32xf32>
    %86 = vector.shape_cast %85 : vector<1x2x32xf32> to vector<2x32xf32>
    %87 = vector.shape_cast %81 : vector<2x32xf32> to vector<1x2x32xf32>
    tpu.vector_store %arg4[%c7_57, %c0_58, %c32], %87 {strides = array<i32>} : memref<8x2x64xf32, #tpu.memory_space<vmem>>, vector<1x2x32xf32>,
    %c0_59 = arith.constant 0 : index
    %c1_60 = arith.constant 1 : index
    %c0_61 = arith.constant 0 : index
    %c0_62 = arith.constant 0 : index
    %88 = vector.load %arg1[%c0_59, %c1_60, %c0_61, %c0_62] : memref<6x8x2x32xf32, #tpu.memory_space<vmem>>, vector<1x1x2x32xf32>
    %89 = vector.shape_cast %88 : vector<1x1x2x32xf32> to vector<2x32xf32>
    %c1_63 = arith.constant 1 : index
    %c1_64 = arith.constant 1 : index
    %c0_65 = arith.constant 0 : index
    %c0_66 = arith.constant 0 : index
    %90 = vector.load %arg1[%c1_63, %c1_64, %c0_65, %c0_66] : memref<6x8x2x32xf32, #tpu.memory_space<vmem>>, vector<1x1x2x32xf32>
    %91 = vector.shape_cast %90 : vector<1x1x2x32xf32> to vector<2x32xf32>
    %c2_67 = arith.constant 2 : index
    %c1_68 = arith.constant 1 : index
    %c0_69 = arith.constant 0 : index
    %c0_70 = arith.constant 0 : index
    %92 = vector.load %arg1[%c2_67, %c1_68, %c0_69, %c0_70] : memref<6x8x2x32xf32, #tpu.memory_space<vmem>>, vector<1x1x2x32xf32>
    %93 = vector.shape_cast %92 : vector<1x1x2x32xf32> to vector<2x32xf32>
    %c3_71 = arith.constant 3 : index
    %c6 = arith.constant 6 : index
    %c0_72 = arith.constant 0 : index
    %c0_73 = arith.constant 0 : index
    %94 = vector.load %arg1[%c3_71, %c6, %c0_72, %c0_73] : memref<6x8x2x32xf32, #tpu.memory_space<vmem>>, vector<1x1x2x32xf32>
    %95 = vector.shape_cast %94 : vector<1x1x2x32xf32> to vector<2x32xf32>
    %c4_74 = arith.constant 4 : index
    %c6_75 = arith.constant 6 : index
    %c0_76 = arith.constant 0 : index
    %c0_77 = arith.constant 0 : index
    %96 = vector.load %arg1[%c4_74, %c6_75, %c0_76, %c0_77] : memref<6x8x2x32xf32, #tpu.memory_space<vmem>>, vector<1x1x2x32xf32>
    %97 = vector.shape_cast %96 : vector<1x1x2x32xf32> to vector<2x32xf32>
    %c5_78 = arith.constant 5 : index
    %c6_79 = arith.constant 6 : index
    %c0_80 = arith.constant 0 : index
    %c0_81 = arith.constant 0 : index
    %98 = vector.load %arg1[%c5_78, %c6_79, %c0_80, %c0_81] : memref<6x8x2x32xf32, #tpu.memory_space<vmem>>, vector<1x1x2x32xf32>
    %99 = vector.shape_cast %98 : vector<1x1x2x32xf32> to vector<2x32xf32>
    %cst_82 = arith.constant dense<0.000000e+00> : vector<2x32xf32>
    %100 = tpu.matmul %57, %1, %cst_82 {dimension_numbers = #tpu.dot_dimension_numbers<[1], [0], [0], [1], [0, 0, 1, 1], [], []>} : vector<2x32xf32>, vector<32x32xf32>, vector<2x32xf32> -> vector<2x32xf32>
    %cst_83 = arith.constant dense<0.000000e+00> : vector<2x32xf32>
    %101 = tpu.matmul %57, %3, %cst_83 {dimension_numbers = #tpu.dot_dimension_numbers<[1], [0], [0], [1], [0, 0, 1, 1], [], []>} : vector<2x32xf32>, vector<32x32xf32>, vector<2x32xf32> -> vector<2x32xf32>
    %cst_84 = arith.constant dense<0.000000e+00> : vector<2x32xf32>
    %102 = tpu.matmul %57, %5, %cst_84 {dimension_numbers = #tpu.dot_dimension_numbers<[1], [0], [0], [1], [0, 0, 1, 1], [], []>} : vector<2x32xf32>, vector<32x32xf32>, vector<2x32xf32> -> vector<2x32xf32>
    %103 = arith.addf %89, %100 : vector<2x32xf32>
    %104 = arith.negf %103 : vector<2x32xf32>
    %105 = math.exp %104 : vector<2x32xf32>
    %cst_85 = arith.constant 1.000000e+00 : f32
    %106 = vector.broadcast %cst_85 : f32 to vector<2x32xf32>
    %107 = arith.addf %106, %105 : vector<2x32xf32>
    %108 = arith.divf %106, %107 : vector<2x32xf32>
    %109 = arith.addf %91, %101 : vector<2x32xf32>
    %110 = arith.negf %109 : vector<2x32xf32>
    %111 = math.exp %110 : vector<2x32xf32>
    %cst_86 = arith.constant 1.000000e+00 : f32
    %112 = vector.broadcast %cst_86 : f32 to vector<2x32xf32>
    %113 = arith.addf %112, %111 : vector<2x32xf32>
    %114 = arith.divf %112, %113 : vector<2x32xf32>
    %115 = arith.addf %102, %15 : vector<2x32xf32>
    %116 = arith.mulf %108, %115 : vector<2x32xf32>
    %117 = arith.addf %93, %116 : vector<2x32xf32>
    %118 = math.tanh %117 : vector<2x32xf32>
    %cst_87 = arith.constant 1.000000e+00 : f32
    %119 = vector.broadcast %cst_87 : f32 to vector<2x32xf32>
    %120 = arith.subf %119, %114 : vector<2x32xf32>
    %121 = arith.mulf %120, %118 : vector<2x32xf32>
    %122 = arith.mulf %114, %57 : vector<2x32xf32>
    %123 = arith.addf %121, %122 : vector<2x32xf32>
    %cst_88 = arith.constant dense<0.000000e+00> : vector<2x32xf32>
    %124 = tpu.matmul %81, %7, %cst_88 {dimension_numbers = #tpu.dot_dimension_numbers<[1], [0], [0], [1], [0, 0, 1, 1], [], []>} : vector<2x32xf32>, vector<32x32xf32>, vector<2x32xf32> -> vector<2x32xf32>
    %cst_89 = arith.constant dense<0.000000e+00> : vector<2x32xf32>
    %125 = tpu.matmul %81, %9, %cst_89 {dimension_numbers = #tpu.dot_dimension_numbers<[1], [0], [0], [1], [0, 0, 1, 1], [], []>} : vector<2x32xf32>, vector<32x32xf32>, vector<2x32xf32> -> vector<2x32xf32>
    %cst_90 = arith.constant dense<0.000000e+00> : vector<2x32xf32>
    %126 = tpu.matmul %81, %11, %cst_90 {dimension_numbers = #tpu.dot_dimension_numbers<[1], [0], [0], [1], [0, 0, 1, 1], [], []>} : vector<2x32xf32>, vector<32x32xf32>, vector<2x32xf32> -> vector<2x32xf32>
    %127 = arith.addf %95, %124 : vector<2x32xf32>
    %128 = arith.negf %127 : vector<2x32xf32>
    %129 = math.exp %128 : vector<2x32xf32>
    %cst_91 = arith.constant 1.000000e+00 : f32
    %130 = vector.broadcast %cst_91 : f32 to vector<2x32xf32>
    %131 = arith.addf %130, %129 : vector<2x32xf32>
    %132 = arith.divf %130, %131 : vector<2x32xf32>
    %133 = arith.addf %97, %125 : vector<2x32xf32>
    %134 = arith.negf %133 : vector<2x32xf32>
    %135 = math.exp %134 : vector<2x32xf32>
    %cst_92 = arith.constant 1.000000e+00 : f32
    %136 = vector.broadcast %cst_92 : f32 to vector<2x32xf32>
    %137 = arith.addf %136, %135 : vector<2x32xf32>
    %138 = arith.divf %136, %137 : vector<2x32xf32>
    %139 = arith.addf %126, %19 : vector<2x32xf32>
    %140 = arith.mulf %132, %139 : vector<2x32xf32>
    %141 = arith.addf %99, %140 : vector<2x32xf32>
    %142 = math.tanh %141 : vector<2x32xf32>
    %cst_93 = arith.constant 1.000000e+00 : f32
    %143 = vector.broadcast %cst_93 : f32 to vector<2x32xf32>
    %144 = arith.subf %143, %138 : vector<2x32xf32>
    %145 = arith.mulf %144, %142 : vector<2x32xf32>
    %146 = arith.mulf %138, %81 : vector<2x32xf32>
    %147 = arith.addf %145, %146 : vector<2x32xf32>
    %c1_94 = arith.constant 1 : index
    %c0_95 = arith.constant 0 : index
    %c0_96 = arith.constant 0 : index
    %148 = vector.load %arg4[%c1_94, %c0_95, %c0_96] : memref<8x2x64xf32, #tpu.memory_space<vmem>>, vector<1x2x32xf32>
    %149 = vector.shape_cast %148 : vector<1x2x32xf32> to vector<2x32xf32>
    %150 = vector.shape_cast %123 : vector<2x32xf32> to vector<1x2x32xf32>
    tpu.vector_store %arg4[%c1_94, %c0_95, %c0_96], %150 {strides = array<i32>} : memref<8x2x64xf32, #tpu.memory_space<vmem>>, vector<1x2x32xf32>,
    %c6_97 = arith.constant 6 : index
    %c0_98 = arith.constant 0 : index
    %c32_99 = arith.constant 32 : index
    %151 = vector.load %arg4[%c6_97, %c0_98, %c32_99] : memref<8x2x64xf32, #tpu.memory_space<vmem>>, vector<1x2x32xf32>
    %152 = vector.shape_cast %151 : vector<1x2x32xf32> to vector<2x32xf32>
    %153 = vector.shape_cast %147 : vector<2x32xf32> to vector<1x2x32xf32>
    tpu.vector_store %arg4[%c6_97, %c0_98, %c32_99], %153 {strides = array<i32>} : memref<8x2x64xf32, #tpu.memory_space<vmem>>, vector<1x2x32xf32>,
    %c0_100 = arith.constant 0 : index
    %c2_101 = arith.constant 2 : index
    %c0_102 = arith.constant 0 : index
    %c0_103 = arith.constant 0 : index
    %154 = vector.load %arg1[%c0_100, %c2_101, %c0_102, %c0_103] : memref<6x8x2x32xf32, #tpu.memory_space<vmem>>, vector<1x1x2x32xf32>
    %155 = vector.shape_cast %154 : vector<1x1x2x32xf32> to vector<2x32xf32>
    %c1_104 = arith.constant 1 : index
    %c2_105 = arith.constant 2 : index
    %c0_106 = arith.constant 0 : index
    %c0_107 = arith.constant 0 : index
    %156 = vector.load %arg1[%c1_104, %c2_105, %c0_106, %c0_107] : memref<6x8x2x32xf32, #tpu.memory_space<vmem>>, vector<1x1x2x32xf32>
    %157 = vector.shape_cast %156 : vector<1x1x2x32xf32> to vector<2x32xf32>
    %c2_108 = arith.constant 2 : index
    %c2_109 = arith.constant 2 : index
    %c0_110 = arith.constant 0 : index
    %c0_111 = arith.constant 0 : index
    %158 = vector.load %arg1[%c2_108, %c2_109, %c0_110, %c0_111] : memref<6x8x2x32xf32, #tpu.memory_space<vmem>>, vector<1x1x2x32xf32>
    %159 = vector.shape_cast %158 : vector<1x1x2x32xf32> to vector<2x32xf32>
    %c3_112 = arith.constant 3 : index
    %c5_113 = arith.constant 5 : index
    %c0_114 = arith.constant 0 : index
    %c0_115 = arith.constant 0 : index
    %160 = vector.load %arg1[%c3_112, %c5_113, %c0_114, %c0_115] : memref<6x8x2x32xf32, #tpu.memory_space<vmem>>, vector<1x1x2x32xf32>
    %161 = vector.shape_cast %160 : vector<1x1x2x32xf32> to vector<2x32xf32>
    %c4_116 = arith.constant 4 : index
    %c5_117 = arith.constant 5 : index
    %c0_118 = arith.constant 0 : index
    %c0_119 = arith.constant 0 : index
    %162 = vector.load %arg1[%c4_116, %c5_117, %c0_118, %c0_119] : memref<6x8x2x32xf32, #tpu.memory_space<vmem>>, vector<1x1x2x32xf32>
    %163 = vector.shape_cast %162 : vector<1x1x2x32xf32> to vector<2x32xf32>
    %c5_120 = arith.constant 5 : index
    %c5_121 = arith.constant 5 : index
    %c0_122 = arith.constant 0 : index
    %c0_123 = arith.constant 0 : index
    %164 = vector.load %arg1[%c5_120, %c5_121, %c0_122, %c0_123] : memref<6x8x2x32xf32, #tpu.memory_space<vmem>>, vector<1x1x2x32xf32>
    %165 = vector.shape_cast %164 : vector<1x1x2x32xf32> to vector<2x32xf32>
    %cst_124 = arith.constant dense<0.000000e+00> : vector<2x32xf32>
    %166 = tpu.matmul %123, %1, %cst_124 {dimension_numbers = #tpu.dot_dimension_numbers<[1], [0], [0], [1], [0, 0, 1, 1], [], []>} : vector<2x32xf32>, vector<32x32xf32>, vector<2x32xf32> -> vector<2x32xf32>
    %cst_125 = arith.constant dense<0.000000e+00> : vector<2x32xf32>
    %167 = tpu.matmul %123, %3, %cst_125 {dimension_numbers = #tpu.dot_dimension_numbers<[1], [0], [0], [1], [0, 0, 1, 1], [], []>} : vector<2x32xf32>, vector<32x32xf32>, vector<2x32xf32> -> vector<2x32xf32>
    %cst_126 = arith.constant dense<0.000000e+00> : vector<2x32xf32>
    %168 = tpu.matmul %123, %5, %cst_126 {dimension_numbers = #tpu.dot_dimension_numbers<[1], [0], [0], [1], [0, 0, 1, 1], [], []>} : vector<2x32xf32>, vector<32x32xf32>, vector<2x32xf32> -> vector<2x32xf32>
    %169 = arith.addf %155, %166 : vector<2x32xf32>
    %170 = arith.negf %169 : vector<2x32xf32>
    %171 = math.exp %170 : vector<2x32xf32>
    %cst_127 = arith.constant 1.000000e+00 : f32
    %172 = vector.broadcast %cst_127 : f32 to vector<2x32xf32>
    %173 = arith.addf %172, %171 : vector<2x32xf32>
    %174 = arith.divf %172, %173 : vector<2x32xf32>
    %175 = arith.addf %157, %167 : vector<2x32xf32>
    %176 = arith.negf %175 : vector<2x32xf32>
    %177 = math.exp %176 : vector<2x32xf32>
    %cst_128 = arith.constant 1.000000e+00 : f32
    %178 = vector.broadcast %cst_128 : f32 to vector<2x32xf32>
    %179 = arith.addf %178, %177 : vector<2x32xf32>
    %180 = arith.divf %178, %179 : vector<2x32xf32>
    %181 = arith.addf %168, %15 : vector<2x32xf32>
    %182 = arith.mulf %174, %181 : vector<2x32xf32>
    %183 = arith.addf %159, %182 : vector<2x32xf32>
    %184 = math.tanh %183 : vector<2x32xf32>
    %cst_129 = arith.constant 1.000000e+00 : f32
    %185 = vector.broadcast %cst_129 : f32 to vector<2x32xf32>
    %186 = arith.subf %185, %180 : vector<2x32xf32>
    %187 = arith.mulf %186, %184 : vector<2x32xf32>
    %188 = arith.mulf %180, %123 : vector<2x32xf32>
    %189 = arith.addf %187, %188 : vector<2x32xf32>
    %cst_130 = arith.constant dense<0.000000e+00> : vector<2x32xf32>
    %190 = tpu.matmul %147, %7, %cst_130 {dimension_numbers = #tpu.dot_dimension_numbers<[1], [0], [0], [1], [0, 0, 1, 1], [], []>} : vector<2x32xf32>, vector<32x32xf32>, vector<2x32xf32> -> vector<2x32xf32>
    %cst_131 = arith.constant dense<0.000000e+00> : vector<2x32xf32>
    %191 = tpu.matmul %147, %9, %cst_131 {dimension_numbers = #tpu.dot_dimension_numbers<[1], [0], [0], [1], [0, 0, 1, 1], [], []>} : vector<2x32xf32>, vector<32x32xf32>, vector<2x32xf32> -> vector<2x32xf32>
    %cst_132 = arith.constant dense<0.000000e+00> : vector<2x32xf32>
    %192 = tpu.matmul %147, %11, %cst_132 {dimension_numbers = #tpu.dot_dimension_numbers<[1], [0], [0], [1], [0, 0, 1, 1], [], []>} : vector<2x32xf32>, vector<32x32xf32>, vector<2x32xf32> -> vector<2x32xf32>
    %193 = arith.addf %161, %190 : vector<2x32xf32>
    %194 = arith.negf %193 : vector<2x32xf32>
    %195 = math.exp %194 : vector<2x32xf32>
    %cst_133 = arith.constant 1.000000e+00 : f32
    %196 = vector.broadcast %cst_133 : f32 to vector<2x32xf32>
    %197 = arith.addf %196, %195 : vector<2x32xf32>
    %198 = arith.divf %196, %197 : vector<2x32xf32>
    %199 = arith.addf %163, %191 : vector<2x32xf32>
    %200 = arith.negf %199 : vector<2x32xf32>
    %201 = math.exp %200 : vector<2x32xf32>
    %cst_134 = arith.constant 1.000000e+00 : f32
    %202 = vector.broadcast %cst_134 : f32 to vector<2x32xf32>
    %203 = arith.addf %202, %201 : vector<2x32xf32>
    %204 = arith.divf %202, %203 : vector<2x32xf32>
    %205 = arith.addf %192, %19 : vector<2x32xf32>
    %206 = arith.mulf %198, %205 : vector<2x32xf32>
    %207 = arith.addf %165, %206 : vector<2x32xf32>
    %208 = math.tanh %207 : vector<2x32xf32>
    %cst_135 = arith.constant 1.000000e+00 : f32
    %209 = vector.broadcast %cst_135 : f32 to vector<2x32xf32>
    %210 = arith.subf %209, %204 : vector<2x32xf32>
    %211 = arith.mulf %210, %208 : vector<2x32xf32>
    %212 = arith.mulf %204, %147 : vector<2x32xf32>
    %213 = arith.addf %211, %212 : vector<2x32xf32>
    %c2_136 = arith.constant 2 : index
    %c0_137 = arith.constant 0 : index
    %c0_138 = arith.constant 0 : index
    %214 = vector.load %arg4[%c2_136, %c0_137, %c0_138] : memref<8x2x64xf32, #tpu.memory_space<vmem>>, vector<1x2x32xf32>
    %215 = vector.shape_cast %214 : vector<1x2x32xf32> to vector<2x32xf32>
    %216 = vector.shape_cast %189 : vector<2x32xf32> to vector<1x2x32xf32>
    tpu.vector_store %arg4[%c2_136, %c0_137, %c0_138], %216 {strides = array<i32>} : memref<8x2x64xf32, #tpu.memory_space<vmem>>, vector<1x2x32xf32>,
    %c5_139 = arith.constant 5 : index
    %c0_140 = arith.constant 0 : index
    %c32_141 = arith.constant 32 : index
    %217 = vector.load %arg4[%c5_139, %c0_140, %c32_141] : memref<8x2x64xf32, #tpu.memory_space<vmem>>, vector<1x2x32xf32>
    %218 = vector.shape_cast %217 : vector<1x2x32xf32> to vector<2x32xf32>
    %219 = vector.shape_cast %213 : vector<2x32xf32> to vector<1x2x32xf32>
    tpu.vector_store %arg4[%c5_139, %c0_140, %c32_141], %219 {strides = array<i32>} : memref<8x2x64xf32, #tpu.memory_space<vmem>>, vector<1x2x32xf32>,
    %c0_142 = arith.constant 0 : index
    %c3_143 = arith.constant 3 : index
    %c0_144 = arith.constant 0 : index
    %c0_145 = arith.constant 0 : index
    %220 = vector.load %arg1[%c0_142, %c3_143, %c0_144, %c0_145] : memref<6x8x2x32xf32, #tpu.memory_space<vmem>>, vector<1x1x2x32xf32>
    %221 = vector.shape_cast %220 : vector<1x1x2x32xf32> to vector<2x32xf32>
    %c1_146 = arith.constant 1 : index
    %c3_147 = arith.constant 3 : index
    %c0_148 = arith.constant 0 : index
    %c0_149 = arith.constant 0 : index
    %222 = vector.load %arg1[%c1_146, %c3_147, %c0_148, %c0_149] : memref<6x8x2x32xf32, #tpu.memory_space<vmem>>, vector<1x1x2x32xf32>
    %223 = vector.shape_cast %222 : vector<1x1x2x32xf32> to vector<2x32xf32>
    %c2_150 = arith.constant 2 : index
    %c3_151 = arith.constant 3 : index
    %c0_152 = arith.constant 0 : index
    %c0_153 = arith.constant 0 : index
    %224 = vector.load %arg1[%c2_150, %c3_151, %c0_152, %c0_153] : memref<6x8x2x32xf32, #tpu.memory_space<vmem>>, vector<1x1x2x32xf32>
    %225 = vector.shape_cast %224 : vector<1x1x2x32xf32> to vector<2x32xf32>
    %c3_154 = arith.constant 3 : index
    %c4_155 = arith.constant 4 : index
    %c0_156 = arith.constant 0 : index
    %c0_157 = arith.constant 0 : index
    %226 = vector.load %arg1[%c3_154, %c4_155, %c0_156, %c0_157] : memref<6x8x2x32xf32, #tpu.memory_space<vmem>>, vector<1x1x2x32xf32>
    %227 = vector.shape_cast %226 : vector<1x1x2x32xf32> to vector<2x32xf32>
    %c4_158 = arith.constant 4 : index
    %c4_159 = arith.constant 4 : index
    %c0_160 = arith.constant 0 : index
    %c0_161 = arith.constant 0 : index
    %228 = vector.load %arg1[%c4_158, %c4_159, %c0_160, %c0_161] : memref<6x8x2x32xf32, #tpu.memory_space<vmem>>, vector<1x1x2x32xf32>
    %229 = vector.shape_cast %228 : vector<1x1x2x32xf32> to vector<2x32xf32>
    %c5_162 = arith.constant 5 : index
    %c4_163 = arith.constant 4 : index
    %c0_164 = arith.constant 0 : index
    %c0_165 = arith.constant 0 : index
    %230 = vector.load %arg1[%c5_162, %c4_163, %c0_164, %c0_165] : memref<6x8x2x32xf32, #tpu.memory_space<vmem>>, vector<1x1x2x32xf32>
    %231 = vector.shape_cast %230 : vector<1x1x2x32xf32> to vector<2x32xf32>
    %cst_166 = arith.constant dense<0.000000e+00> : vector<2x32xf32>
    %232 = tpu.matmul %189, %1, %cst_166 {dimension_numbers = #tpu.dot_dimension_numbers<[1], [0], [0], [1], [0, 0, 1, 1], [], []>} : vector<2x32xf32>, vector<32x32xf32>, vector<2x32xf32> -> vector<2x32xf32>
    %cst_167 = arith.constant dense<0.000000e+00> : vector<2x32xf32>
    %233 = tpu.matmul %189, %3, %cst_167 {dimension_numbers = #tpu.dot_dimension_numbers<[1], [0], [0], [1], [0, 0, 1, 1], [], []>} : vector<2x32xf32>, vector<32x32xf32>, vector<2x32xf32> -> vector<2x32xf32>
    %cst_168 = arith.constant dense<0.000000e+00> : vector<2x32xf32>
    %234 = tpu.matmul %189, %5, %cst_168 {dimension_numbers = #tpu.dot_dimension_numbers<[1], [0], [0], [1], [0, 0, 1, 1], [], []>} : vector<2x32xf32>, vector<32x32xf32>, vector<2x32xf32> -> vector<2x32xf32>
    %235 = arith.addf %221, %232 : vector<2x32xf32>
    %236 = arith.negf %235 : vector<2x32xf32>
    %237 = math.exp %236 : vector<2x32xf32>
    %cst_169 = arith.constant 1.000000e+00 : f32
    %238 = vector.broadcast %cst_169 : f32 to vector<2x32xf32>
    %239 = arith.addf %238, %237 : vector<2x32xf32>
    %240 = arith.divf %238, %239 : vector<2x32xf32>
    %241 = arith.addf %223, %233 : vector<2x32xf32>
    %242 = arith.negf %241 : vector<2x32xf32>
    %243 = math.exp %242 : vector<2x32xf32>
    %cst_170 = arith.constant 1.000000e+00 : f32
    %244 = vector.broadcast %cst_170 : f32 to vector<2x32xf32>
    %245 = arith.addf %244, %243 : vector<2x32xf32>
    %246 = arith.divf %244, %245 : vector<2x32xf32>
    %247 = arith.addf %234, %15 : vector<2x32xf32>
    %248 = arith.mulf %240, %247 : vector<2x32xf32>
    %249 = arith.addf %225, %248 : vector<2x32xf32>
    %250 = math.tanh %249 : vector<2x32xf32>
    %cst_171 = arith.constant 1.000000e+00 : f32
    %251 = vector.broadcast %cst_171 : f32 to vector<2x32xf32>
    %252 = arith.subf %251, %246 : vector<2x32xf32>
    %253 = arith.mulf %252, %250 : vector<2x32xf32>
    %254 = arith.mulf %246, %189 : vector<2x32xf32>
    %255 = arith.addf %253, %254 : vector<2x32xf32>
    %cst_172 = arith.constant dense<0.000000e+00> : vector<2x32xf32>
    %256 = tpu.matmul %213, %7, %cst_172 {dimension_numbers = #tpu.dot_dimension_numbers<[1], [0], [0], [1], [0, 0, 1, 1], [], []>} : vector<2x32xf32>, vector<32x32xf32>, vector<2x32xf32> -> vector<2x32xf32>
    %cst_173 = arith.constant dense<0.000000e+00> : vector<2x32xf32>
    %257 = tpu.matmul %213, %9, %cst_173 {dimension_numbers = #tpu.dot_dimension_numbers<[1], [0], [0], [1], [0, 0, 1, 1], [], []>} : vector<2x32xf32>, vector<32x32xf32>, vector<2x32xf32> -> vector<2x32xf32>
    %cst_174 = arith.constant dense<0.000000e+00> : vector<2x32xf32>
    %258 = tpu.matmul %213, %11, %cst_174 {dimension_numbers = #tpu.dot_dimension_numbers<[1], [0], [0], [1], [0, 0, 1, 1], [], []>} : vector<2x32xf32>, vector<32x32xf32>, vector<2x32xf32> -> vector<2x32xf32>
    %259 = arith.addf %227, %256 : vector<2x32xf32>
    %260 = arith.negf %259 : vector<2x32xf32>
    %261 = math.exp %260 : vector<2x32xf32>
    %cst_175 = arith.constant 1.000000e+00 : f32
    %262 = vector.broadcast %cst_175 : f32 to vector<2x32xf32>
    %263 = arith.addf %262, %261 : vector<2x32xf32>
    %264 = arith.divf %262, %263 : vector<2x32xf32>
    %265 = arith.addf %229, %257 : vector<2x32xf32>
    %266 = arith.negf %265 : vector<2x32xf32>
    %267 = math.exp %266 : vector<2x32xf32>
    %cst_176 = arith.constant 1.000000e+00 : f32
    %268 = vector.broadcast %cst_176 : f32 to vector<2x32xf32>
    %269 = arith.addf %268, %267 : vector<2x32xf32>
    %270 = arith.divf %268, %269 : vector<2x32xf32>
    %271 = arith.addf %258, %19 : vector<2x32xf32>
    %272 = arith.mulf %264, %271 : vector<2x32xf32>
    %273 = arith.addf %231, %272 : vector<2x32xf32>
    %274 = math.tanh %273 : vector<2x32xf32>
    %cst_177 = arith.constant 1.000000e+00 : f32
    %275 = vector.broadcast %cst_177 : f32 to vector<2x32xf32>
    %276 = arith.subf %275, %270 : vector<2x32xf32>
    %277 = arith.mulf %276, %274 : vector<2x32xf32>
    %278 = arith.mulf %270, %213 : vector<2x32xf32>
    %279 = arith.addf %277, %278 : vector<2x32xf32>
    %c3_178 = arith.constant 3 : index
    %c0_179 = arith.constant 0 : index
    %c0_180 = arith.constant 0 : index
    %280 = vector.load %arg4[%c3_178, %c0_179, %c0_180] : memref<8x2x64xf32, #tpu.memory_space<vmem>>, vector<1x2x32xf32>
    %281 = vector.shape_cast %280 : vector<1x2x32xf32> to vector<2x32xf32>
    %282 = vector.shape_cast %255 : vector<2x32xf32> to vector<1x2x32xf32>
    tpu.vector_store %arg4[%c3_178, %c0_179, %c0_180], %282 {strides = array<i32>} : memref<8x2x64xf32, #tpu.memory_space<vmem>>, vector<1x2x32xf32>,
    %c4_181 = arith.constant 4 : index
    %c0_182 = arith.constant 0 : index
    %c32_183 = arith.constant 32 : index
    %283 = vector.load %arg4[%c4_181, %c0_182, %c32_183] : memref<8x2x64xf32, #tpu.memory_space<vmem>>, vector<1x2x32xf32>
    %284 = vector.shape_cast %283 : vector<1x2x32xf32> to vector<2x32xf32>
    %285 = vector.shape_cast %279 : vector<2x32xf32> to vector<1x2x32xf32>
    tpu.vector_store %arg4[%c4_181, %c0_182, %c32_183], %285 {strides = array<i32>} : memref<8x2x64xf32, #tpu.memory_space<vmem>>, vector<1x2x32xf32>,
    %c0_184 = arith.constant 0 : index
    %c4_185 = arith.constant 4 : index
    %c0_186 = arith.constant 0 : index
    %c0_187 = arith.constant 0 : index
    %286 = vector.load %arg1[%c0_184, %c4_185, %c0_186, %c0_187] : memref<6x8x2x32xf32, #tpu.memory_space<vmem>>, vector<1x1x2x32xf32>
    %287 = vector.shape_cast %286 : vector<1x1x2x32xf32> to vector<2x32xf32>
    %c1_188 = arith.constant 1 : index
    %c4_189 = arith.constant 4 : index
    %c0_190 = arith.constant 0 : index
    %c0_191 = arith.constant 0 : index
    %288 = vector.load %arg1[%c1_188, %c4_189, %c0_190, %c0_191] : memref<6x8x2x32xf32, #tpu.memory_space<vmem>>, vector<1x1x2x32xf32>
    %289 = vector.shape_cast %288 : vector<1x1x2x32xf32> to vector<2x32xf32>
    %c2_192 = arith.constant 2 : index
    %c4_193 = arith.constant 4 : index
    %c0_194 = arith.constant 0 : index
    %c0_195 = arith.constant 0 : index
    %290 = vector.load %arg1[%c2_192, %c4_193, %c0_194, %c0_195] : memref<6x8x2x32xf32, #tpu.memory_space<vmem>>, vector<1x1x2x32xf32>
    %291 = vector.shape_cast %290 : vector<1x1x2x32xf32> to vector<2x32xf32>
    %c3_196 = arith.constant 3 : index
    %c3_197 = arith.constant 3 : index
    %c0_198 = arith.constant 0 : index
    %c0_199 = arith.constant 0 : index
    %292 = vector.load %arg1[%c3_196, %c3_197, %c0_198, %c0_199] : memref<6x8x2x32xf32, #tpu.memory_space<vmem>>, vector<1x1x2x32xf32>
    %293 = vector.shape_cast %292 : vector<1x1x2x32xf32> to vector<2x32xf32>
    %c4_200 = arith.constant 4 : index
    %c3_201 = arith.constant 3 : index
    %c0_202 = arith.constant 0 : index
    %c0_203 = arith.constant 0 : index
    %294 = vector.load %arg1[%c4_200, %c3_201, %c0_202, %c0_203] : memref<6x8x2x32xf32, #tpu.memory_space<vmem>>, vector<1x1x2x32xf32>
    %295 = vector.shape_cast %294 : vector<1x1x2x32xf32> to vector<2x32xf32>
    %c5_204 = arith.constant 5 : index
    %c3_205 = arith.constant 3 : index
    %c0_206 = arith.constant 0 : index
    %c0_207 = arith.constant 0 : index
    %296 = vector.load %arg1[%c5_204, %c3_205, %c0_206, %c0_207] : memref<6x8x2x32xf32, #tpu.memory_space<vmem>>, vector<1x1x2x32xf32>
    %297 = vector.shape_cast %296 : vector<1x1x2x32xf32> to vector<2x32xf32>
    %cst_208 = arith.constant dense<0.000000e+00> : vector<2x32xf32>
    %298 = tpu.matmul %255, %1, %cst_208 {dimension_numbers = #tpu.dot_dimension_numbers<[1], [0], [0], [1], [0, 0, 1, 1], [], []>} : vector<2x32xf32>, vector<32x32xf32>, vector<2x32xf32> -> vector<2x32xf32>
    %cst_209 = arith.constant dense<0.000000e+00> : vector<2x32xf32>
    %299 = tpu.matmul %255, %3, %cst_209 {dimension_numbers = #tpu.dot_dimension_numbers<[1], [0], [0], [1], [0, 0, 1, 1], [], []>} : vector<2x32xf32>, vector<32x32xf32>, vector<2x32xf32> -> vector<2x32xf32>
    %cst_210 = arith.constant dense<0.000000e+00> : vector<2x32xf32>
    %300 = tpu.matmul %255, %5, %cst_210 {dimension_numbers = #tpu.dot_dimension_numbers<[1], [0], [0], [1], [0, 0, 1, 1], [], []>} : vector<2x32xf32>, vector<32x32xf32>, vector<2x32xf32> -> vector<2x32xf32>
    %301 = arith.addf %287, %298 : vector<2x32xf32>
    %302 = arith.negf %301 : vector<2x32xf32>
    %303 = math.exp %302 : vector<2x32xf32>
    %cst_211 = arith.constant 1.000000e+00 : f32
    %304 = vector.broadcast %cst_211 : f32 to vector<2x32xf32>
    %305 = arith.addf %304, %303 : vector<2x32xf32>
    %306 = arith.divf %304, %305 : vector<2x32xf32>
    %307 = arith.addf %289, %299 : vector<2x32xf32>
    %308 = arith.negf %307 : vector<2x32xf32>
    %309 = math.exp %308 : vector<2x32xf32>
    %cst_212 = arith.constant 1.000000e+00 : f32
    %310 = vector.broadcast %cst_212 : f32 to vector<2x32xf32>
    %311 = arith.addf %310, %309 : vector<2x32xf32>
    %312 = arith.divf %310, %311 : vector<2x32xf32>
    %313 = arith.addf %300, %15 : vector<2x32xf32>
    %314 = arith.mulf %306, %313 : vector<2x32xf32>
    %315 = arith.addf %291, %314 : vector<2x32xf32>
    %316 = math.tanh %315 : vector<2x32xf32>
    %cst_213 = arith.constant 1.000000e+00 : f32
    %317 = vector.broadcast %cst_213 : f32 to vector<2x32xf32>
    %318 = arith.subf %317, %312 : vector<2x32xf32>
    %319 = arith.mulf %318, %316 : vector<2x32xf32>
    %320 = arith.mulf %312, %255 : vector<2x32xf32>
    %321 = arith.addf %319, %320 : vector<2x32xf32>
    %cst_214 = arith.constant dense<0.000000e+00> : vector<2x32xf32>
    %322 = tpu.matmul %279, %7, %cst_214 {dimension_numbers = #tpu.dot_dimension_numbers<[1], [0], [0], [1], [0, 0, 1, 1], [], []>} : vector<2x32xf32>, vector<32x32xf32>, vector<2x32xf32> -> vector<2x32xf32>
    %cst_215 = arith.constant dense<0.000000e+00> : vector<2x32xf32>
    %323 = tpu.matmul %279, %9, %cst_215 {dimension_numbers = #tpu.dot_dimension_numbers<[1], [0], [0], [1], [0, 0, 1, 1], [], []>} : vector<2x32xf32>, vector<32x32xf32>, vector<2x32xf32> -> vector<2x32xf32>
    %cst_216 = arith.constant dense<0.000000e+00> : vector<2x32xf32>
    %324 = tpu.matmul %279, %11, %cst_216 {dimension_numbers = #tpu.dot_dimension_numbers<[1], [0], [0], [1], [0, 0, 1, 1], [], []>} : vector<2x32xf32>, vector<32x32xf32>, vector<2x32xf32> -> vector<2x32xf32>
    %325 = arith.addf %293, %322 : vector<2x32xf32>
    %326 = arith.negf %325 : vector<2x32xf32>
    %327 = math.exp %326 : vector<2x32xf32>
    %cst_217 = arith.constant 1.000000e+00 : f32
    %328 = vector.broadcast %cst_217 : f32 to vector<2x32xf32>
    %329 = arith.addf %328, %327 : vector<2x32xf32>
    %330 = arith.divf %328, %329 : vector<2x32xf32>
    %331 = arith.addf %295, %323 : vector<2x32xf32>
    %332 = arith.negf %331 : vector<2x32xf32>
    %333 = math.exp %332 : vector<2x32xf32>
    %cst_218 = arith.constant 1.000000e+00 : f32
    %334 = vector.broadcast %cst_218 : f32 to vector<2x32xf32>
    %335 = arith.addf %334, %333 : vector<2x32xf32>
    %336 = arith.divf %334, %335 : vector<2x32xf32>
    %337 = arith.addf %324, %19 : vector<2x32xf32>
    %338 = arith.mulf %330, %337 : vector<2x32xf32>
    %339 = arith.addf %297, %338 : vector<2x32xf32>
    %340 = math.tanh %339 : vector<2x32xf32>
    %cst_219 = arith.constant 1.000000e+00 : f32
    %341 = vector.broadcast %cst_219 : f32 to vector<2x32xf32>
    %342 = arith.subf %341, %336 : vector<2x32xf32>
    %343 = arith.mulf %342, %340 : vector<2x32xf32>
    %344 = arith.mulf %336, %279 : vector<2x32xf32>
    %345 = arith.addf %343, %344 : vector<2x32xf32>
    %c4_220 = arith.constant 4 : index
    %c0_221 = arith.constant 0 : index
    %c0_222 = arith.constant 0 : index
    %346 = vector.load %arg4[%c4_220, %c0_221, %c0_222] : memref<8x2x64xf32, #tpu.memory_space<vmem>>, vector<1x2x32xf32>
    %347 = vector.shape_cast %346 : vector<1x2x32xf32> to vector<2x32xf32>
    %348 = vector.shape_cast %321 : vector<2x32xf32> to vector<1x2x32xf32>
    tpu.vector_store %arg4[%c4_220, %c0_221, %c0_222], %348 {strides = array<i32>} : memref<8x2x64xf32, #tpu.memory_space<vmem>>, vector<1x2x32xf32>,
    %c3_223 = arith.constant 3 : index
    %c0_224 = arith.constant 0 : index
    %c32_225 = arith.constant 32 : index
    %349 = vector.load %arg4[%c3_223, %c0_224, %c32_225] : memref<8x2x64xf32, #tpu.memory_space<vmem>>, vector<1x2x32xf32>
    %350 = vector.shape_cast %349 : vector<1x2x32xf32> to vector<2x32xf32>
    %351 = vector.shape_cast %345 : vector<2x32xf32> to vector<1x2x32xf32>
    tpu.vector_store %arg4[%c3_223, %c0_224, %c32_225], %351 {strides = array<i32>} : memref<8x2x64xf32, #tpu.memory_space<vmem>>, vector<1x2x32xf32>,
    %c0_226 = arith.constant 0 : index
    %c5_227 = arith.constant 5 : index
    %c0_228 = arith.constant 0 : index
    %c0_229 = arith.constant 0 : index
    %352 = vector.load %arg1[%c0_226, %c5_227, %c0_228, %c0_229] : memref<6x8x2x32xf32, #tpu.memory_space<vmem>>, vector<1x1x2x32xf32>
    %353 = vector.shape_cast %352 : vector<1x1x2x32xf32> to vector<2x32xf32>
    %c1_230 = arith.constant 1 : index
    %c5_231 = arith.constant 5 : index
    %c0_232 = arith.constant 0 : index
    %c0_233 = arith.constant 0 : index
    %354 = vector.load %arg1[%c1_230, %c5_231, %c0_232, %c0_233] : memref<6x8x2x32xf32, #tpu.memory_space<vmem>>, vector<1x1x2x32xf32>
    %355 = vector.shape_cast %354 : vector<1x1x2x32xf32> to vector<2x32xf32>
    %c2_234 = arith.constant 2 : index
    %c5_235 = arith.constant 5 : index
    %c0_236 = arith.constant 0 : index
    %c0_237 = arith.constant 0 : index
    %356 = vector.load %arg1[%c2_234, %c5_235, %c0_236, %c0_237] : memref<6x8x2x32xf32, #tpu.memory_space<vmem>>, vector<1x1x2x32xf32>
    %357 = vector.shape_cast %356 : vector<1x1x2x32xf32> to vector<2x32xf32>
    %c3_238 = arith.constant 3 : index
    %c2_239 = arith.constant 2 : index
    %c0_240 = arith.constant 0 : index
    %c0_241 = arith.constant 0 : index
    %358 = vector.load %arg1[%c3_238, %c2_239, %c0_240, %c0_241] : memref<6x8x2x32xf32, #tpu.memory_space<vmem>>, vector<1x1x2x32xf32>
    %359 = vector.shape_cast %358 : vector<1x1x2x32xf32> to vector<2x32xf32>
    %c4_242 = arith.constant 4 : index
    %c2_243 = arith.constant 2 : index
    %c0_244 = arith.constant 0 : index
    %c0_245 = arith.constant 0 : index
    %360 = vector.load %arg1[%c4_242, %c2_243, %c0_244, %c0_245] : memref<6x8x2x32xf32, #tpu.memory_space<vmem>>, vector<1x1x2x32xf32>
    %361 = vector.shape_cast %360 : vector<1x1x2x32xf32> to vector<2x32xf32>
    %c5_246 = arith.constant 5 : index
    %c2_247 = arith.constant 2 : index
    %c0_248 = arith.constant 0 : index
    %c0_249 = arith.constant 0 : index
    %362 = vector.load %arg1[%c5_246, %c2_247, %c0_248, %c0_249] : memref<6x8x2x32xf32, #tpu.memory_space<vmem>>, vector<1x1x2x32xf32>
    %363 = vector.shape_cast %362 : vector<1x1x2x32xf32> to vector<2x32xf32>
    %cst_250 = arith.constant dense<0.000000e+00> : vector<2x32xf32>
    %364 = tpu.matmul %321, %1, %cst_250 {dimension_numbers = #tpu.dot_dimension_numbers<[1], [0], [0], [1], [0, 0, 1, 1], [], []>} : vector<2x32xf32>, vector<32x32xf32>, vector<2x32xf32> -> vector<2x32xf32>
    %cst_251 = arith.constant dense<0.000000e+00> : vector<2x32xf32>
    %365 = tpu.matmul %321, %3, %cst_251 {dimension_numbers = #tpu.dot_dimension_numbers<[1], [0], [0], [1], [0, 0, 1, 1], [], []>} : vector<2x32xf32>, vector<32x32xf32>, vector<2x32xf32> -> vector<2x32xf32>
    %cst_252 = arith.constant dense<0.000000e+00> : vector<2x32xf32>
    %366 = tpu.matmul %321, %5, %cst_252 {dimension_numbers = #tpu.dot_dimension_numbers<[1], [0], [0], [1], [0, 0, 1, 1], [], []>} : vector<2x32xf32>, vector<32x32xf32>, vector<2x32xf32> -> vector<2x32xf32>
    %367 = arith.addf %353, %364 : vector<2x32xf32>
    %368 = arith.negf %367 : vector<2x32xf32>
    %369 = math.exp %368 : vector<2x32xf32>
    %cst_253 = arith.constant 1.000000e+00 : f32
    %370 = vector.broadcast %cst_253 : f32 to vector<2x32xf32>
    %371 = arith.addf %370, %369 : vector<2x32xf32>
    %372 = arith.divf %370, %371 : vector<2x32xf32>
    %373 = arith.addf %355, %365 : vector<2x32xf32>
    %374 = arith.negf %373 : vector<2x32xf32>
    %375 = math.exp %374 : vector<2x32xf32>
    %cst_254 = arith.constant 1.000000e+00 : f32
    %376 = vector.broadcast %cst_254 : f32 to vector<2x32xf32>
    %377 = arith.addf %376, %375 : vector<2x32xf32>
    %378 = arith.divf %376, %377 : vector<2x32xf32>
    %379 = arith.addf %366, %15 : vector<2x32xf32>
    %380 = arith.mulf %372, %379 : vector<2x32xf32>
    %381 = arith.addf %357, %380 : vector<2x32xf32>
    %382 = math.tanh %381 : vector<2x32xf32>
    %cst_255 = arith.constant 1.000000e+00 : f32
    %383 = vector.broadcast %cst_255 : f32 to vector<2x32xf32>
    %384 = arith.subf %383, %378 : vector<2x32xf32>
    %385 = arith.mulf %384, %382 : vector<2x32xf32>
    %386 = arith.mulf %378, %321 : vector<2x32xf32>
    %387 = arith.addf %385, %386 : vector<2x32xf32>
    %cst_256 = arith.constant dense<0.000000e+00> : vector<2x32xf32>
    %388 = tpu.matmul %345, %7, %cst_256 {dimension_numbers = #tpu.dot_dimension_numbers<[1], [0], [0], [1], [0, 0, 1, 1], [], []>} : vector<2x32xf32>, vector<32x32xf32>, vector<2x32xf32> -> vector<2x32xf32>
    %cst_257 = arith.constant dense<0.000000e+00> : vector<2x32xf32>
    %389 = tpu.matmul %345, %9, %cst_257 {dimension_numbers = #tpu.dot_dimension_numbers<[1], [0], [0], [1], [0, 0, 1, 1], [], []>} : vector<2x32xf32>, vector<32x32xf32>, vector<2x32xf32> -> vector<2x32xf32>
    %cst_258 = arith.constant dense<0.000000e+00> : vector<2x32xf32>
    %390 = tpu.matmul %345, %11, %cst_258 {dimension_numbers = #tpu.dot_dimension_numbers<[1], [0], [0], [1], [0, 0, 1, 1], [], []>} : vector<2x32xf32>, vector<32x32xf32>, vector<2x32xf32> -> vector<2x32xf32>
    %391 = arith.addf %359, %388 : vector<2x32xf32>
    %392 = arith.negf %391 : vector<2x32xf32>
    %393 = math.exp %392 : vector<2x32xf32>
    %cst_259 = arith.constant 1.000000e+00 : f32
    %394 = vector.broadcast %cst_259 : f32 to vector<2x32xf32>
    %395 = arith.addf %394, %393 : vector<2x32xf32>
    %396 = arith.divf %394, %395 : vector<2x32xf32>
    %397 = arith.addf %361, %389 : vector<2x32xf32>
    %398 = arith.negf %397 : vector<2x32xf32>
    %399 = math.exp %398 : vector<2x32xf32>
    %cst_260 = arith.constant 1.000000e+00 : f32
    %400 = vector.broadcast %cst_260 : f32 to vector<2x32xf32>
    %401 = arith.addf %400, %399 : vector<2x32xf32>
    %402 = arith.divf %400, %401 : vector<2x32xf32>
    %403 = arith.addf %390, %19 : vector<2x32xf32>
    %404 = arith.mulf %396, %403 : vector<2x32xf32>
    %405 = arith.addf %363, %404 : vector<2x32xf32>
    %406 = math.tanh %405 : vector<2x32xf32>
    %cst_261 = arith.constant 1.000000e+00 : f32
    %407 = vector.broadcast %cst_261 : f32 to vector<2x32xf32>
    %408 = arith.subf %407, %402 : vector<2x32xf32>
    %409 = arith.mulf %408, %406 : vector<2x32xf32>
    %410 = arith.mulf %402, %345 : vector<2x32xf32>
    %411 = arith.addf %409, %410 : vector<2x32xf32>
    %c5_262 = arith.constant 5 : index
    %c0_263 = arith.constant 0 : index
    %c0_264 = arith.constant 0 : index
    %412 = vector.load %arg4[%c5_262, %c0_263, %c0_264] : memref<8x2x64xf32, #tpu.memory_space<vmem>>, vector<1x2x32xf32>
    %413 = vector.shape_cast %412 : vector<1x2x32xf32> to vector<2x32xf32>
    %414 = vector.shape_cast %387 : vector<2x32xf32> to vector<1x2x32xf32>
    tpu.vector_store %arg4[%c5_262, %c0_263, %c0_264], %414 {strides = array<i32>} : memref<8x2x64xf32, #tpu.memory_space<vmem>>, vector<1x2x32xf32>,
    %c2_265 = arith.constant 2 : index
    %c0_266 = arith.constant 0 : index
    %c32_267 = arith.constant 32 : index
    %415 = vector.load %arg4[%c2_265, %c0_266, %c32_267] : memref<8x2x64xf32, #tpu.memory_space<vmem>>, vector<1x2x32xf32>
    %416 = vector.shape_cast %415 : vector<1x2x32xf32> to vector<2x32xf32>
    %417 = vector.shape_cast %411 : vector<2x32xf32> to vector<1x2x32xf32>
    tpu.vector_store %arg4[%c2_265, %c0_266, %c32_267], %417 {strides = array<i32>} : memref<8x2x64xf32, #tpu.memory_space<vmem>>, vector<1x2x32xf32>,
    %c0_268 = arith.constant 0 : index
    %c6_269 = arith.constant 6 : index
    %c0_270 = arith.constant 0 : index
    %c0_271 = arith.constant 0 : index
    %418 = vector.load %arg1[%c0_268, %c6_269, %c0_270, %c0_271] : memref<6x8x2x32xf32, #tpu.memory_space<vmem>>, vector<1x1x2x32xf32>
    %419 = vector.shape_cast %418 : vector<1x1x2x32xf32> to vector<2x32xf32>
    %c1_272 = arith.constant 1 : index
    %c6_273 = arith.constant 6 : index
    %c0_274 = arith.constant 0 : index
    %c0_275 = arith.constant 0 : index
    %420 = vector.load %arg1[%c1_272, %c6_273, %c0_274, %c0_275] : memref<6x8x2x32xf32, #tpu.memory_space<vmem>>, vector<1x1x2x32xf32>
    %421 = vector.shape_cast %420 : vector<1x1x2x32xf32> to vector<2x32xf32>
    %c2_276 = arith.constant 2 : index
    %c6_277 = arith.constant 6 : index
    %c0_278 = arith.constant 0 : index
    %c0_279 = arith.constant 0 : index
    %422 = vector.load %arg1[%c2_276, %c6_277, %c0_278, %c0_279] : memref<6x8x2x32xf32, #tpu.memory_space<vmem>>, vector<1x1x2x32xf32>
    %423 = vector.shape_cast %422 : vector<1x1x2x32xf32> to vector<2x32xf32>
    %c3_280 = arith.constant 3 : index
    %c1_281 = arith.constant 1 : index
    %c0_282 = arith.constant 0 : index
    %c0_283 = arith.constant 0 : index
    %424 = vector.load %arg1[%c3_280, %c1_281, %c0_282, %c0_283] : memref<6x8x2x32xf32, #tpu.memory_space<vmem>>, vector<1x1x2x32xf32>
    %425 = vector.shape_cast %424 : vector<1x1x2x32xf32> to vector<2x32xf32>
    %c4_284 = arith.constant 4 : index
    %c1_285 = arith.constant 1 : index
    %c0_286 = arith.constant 0 : index
    %c0_287 = arith.constant 0 : index
    %426 = vector.load %arg1[%c4_284, %c1_285, %c0_286, %c0_287] : memref<6x8x2x32xf32, #tpu.memory_space<vmem>>, vector<1x1x2x32xf32>
    %427 = vector.shape_cast %426 : vector<1x1x2x32xf32> to vector<2x32xf32>
    %c5_288 = arith.constant 5 : index
    %c1_289 = arith.constant 1 : index
    %c0_290 = arith.constant 0 : index
    %c0_291 = arith.constant 0 : index
    %428 = vector.load %arg1[%c5_288, %c1_289, %c0_290, %c0_291] : memref<6x8x2x32xf32, #tpu.memory_space<vmem>>, vector<1x1x2x32xf32>
    %429 = vector.shape_cast %428 : vector<1x1x2x32xf32> to vector<2x32xf32>
    %cst_292 = arith.constant dense<0.000000e+00> : vector<2x32xf32>
    %430 = tpu.matmul %387, %1, %cst_292 {dimension_numbers = #tpu.dot_dimension_numbers<[1], [0], [0], [1], [0, 0, 1, 1], [], []>} : vector<2x32xf32>, vector<32x32xf32>, vector<2x32xf32> -> vector<2x32xf32>
    %cst_293 = arith.constant dense<0.000000e+00> : vector<2x32xf32>
    %431 = tpu.matmul %387, %3, %cst_293 {dimension_numbers = #tpu.dot_dimension_numbers<[1], [0], [0], [1], [0, 0, 1, 1], [], []>} : vector<2x32xf32>, vector<32x32xf32>, vector<2x32xf32> -> vector<2x32xf32>
    %cst_294 = arith.constant dense<0.000000e+00> : vector<2x32xf32>
    %432 = tpu.matmul %387, %5, %cst_294 {dimension_numbers = #tpu.dot_dimension_numbers<[1], [0], [0], [1], [0, 0, 1, 1], [], []>} : vector<2x32xf32>, vector<32x32xf32>, vector<2x32xf32> -> vector<2x32xf32>
    %433 = arith.addf %419, %430 : vector<2x32xf32>
    %434 = arith.negf %433 : vector<2x32xf32>
    %435 = math.exp %434 : vector<2x32xf32>
    %cst_295 = arith.constant 1.000000e+00 : f32
    %436 = vector.broadcast %cst_295 : f32 to vector<2x32xf32>
    %437 = arith.addf %436, %435 : vector<2x32xf32>
    %438 = arith.divf %436, %437 : vector<2x32xf32>
    %439 = arith.addf %421, %431 : vector<2x32xf32>
    %440 = arith.negf %439 : vector<2x32xf32>
    %441 = math.exp %440 : vector<2x32xf32>
    %cst_296 = arith.constant 1.000000e+00 : f32
    %442 = vector.broadcast %cst_296 : f32 to vector<2x32xf32>
    %443 = arith.addf %442, %441 : vector<2x32xf32>
    %444 = arith.divf %442, %443 : vector<2x32xf32>
    %445 = arith.addf %432, %15 : vector<2x32xf32>
    %446 = arith.mulf %438, %445 : vector<2x32xf32>
    %447 = arith.addf %423, %446 : vector<2x32xf32>
    %448 = math.tanh %447 : vector<2x32xf32>
    %cst_297 = arith.constant 1.000000e+00 : f32
    %449 = vector.broadcast %cst_297 : f32 to vector<2x32xf32>
    %450 = arith.subf %449, %444 : vector<2x32xf32>
    %451 = arith.mulf %450, %448 : vector<2x32xf32>
    %452 = arith.mulf %444, %387 : vector<2x32xf32>
    %453 = arith.addf %451, %452 : vector<2x32xf32>
    %cst_298 = arith.constant dense<0.000000e+00> : vector<2x32xf32>
    %454 = tpu.matmul %411, %7, %cst_298 {dimension_numbers = #tpu.dot_dimension_numbers<[1], [0], [0], [1], [0, 0, 1, 1], [], []>} : vector<2x32xf32>, vector<32x32xf32>, vector<2x32xf32> -> vector<2x32xf32>
    %cst_299 = arith.constant dense<0.000000e+00> : vector<2x32xf32>
    %455 = tpu.matmul %411, %9, %cst_299 {dimension_numbers = #tpu.dot_dimension_numbers<[1], [0], [0], [1], [0, 0, 1, 1], [], []>} : vector<2x32xf32>, vector<32x32xf32>, vector<2x32xf32> -> vector<2x32xf32>
    %cst_300 = arith.constant dense<0.000000e+00> : vector<2x32xf32>
    %456 = tpu.matmul %411, %11, %cst_300 {dimension_numbers = #tpu.dot_dimension_numbers<[1], [0], [0], [1], [0, 0, 1, 1], [], []>} : vector<2x32xf32>, vector<32x32xf32>, vector<2x32xf32> -> vector<2x32xf32>
    %457 = arith.addf %425, %454 : vector<2x32xf32>
    %458 = arith.negf %457 : vector<2x32xf32>
    %459 = math.exp %458 : vector<2x32xf32>
    %cst_301 = arith.constant 1.000000e+00 : f32
    %460 = vector.broadcast %cst_301 : f32 to vector<2x32xf32>
    %461 = arith.addf %460, %459 : vector<2x32xf32>
    %462 = arith.divf %460, %461 : vector<2x32xf32>
    %463 = arith.addf %427, %455 : vector<2x32xf32>
    %464 = arith.negf %463 : vector<2x32xf32>
    %465 = math.exp %464 : vector<2x32xf32>
    %cst_302 = arith.constant 1.000000e+00 : f32
    %466 = vector.broadcast %cst_302 : f32 to vector<2x32xf32>
    %467 = arith.addf %466, %465 : vector<2x32xf32>
    %468 = arith.divf %466, %467 : vector<2x32xf32>
    %469 = arith.addf %456, %19 : vector<2x32xf32>
    %470 = arith.mulf %462, %469 : vector<2x32xf32>
    %471 = arith.addf %429, %470 : vector<2x32xf32>
    %472 = math.tanh %471 : vector<2x32xf32>
    %cst_303 = arith.constant 1.000000e+00 : f32
    %473 = vector.broadcast %cst_303 : f32 to vector<2x32xf32>
    %474 = arith.subf %473, %468 : vector<2x32xf32>
    %475 = arith.mulf %474, %472 : vector<2x32xf32>
    %476 = arith.mulf %468, %411 : vector<2x32xf32>
    %477 = arith.addf %475, %476 : vector<2x32xf32>
    %c6_304 = arith.constant 6 : index
    %c0_305 = arith.constant 0 : index
    %c0_306 = arith.constant 0 : index
    %478 = vector.load %arg4[%c6_304, %c0_305, %c0_306] : memref<8x2x64xf32, #tpu.memory_space<vmem>>, vector<1x2x32xf32>
    %479 = vector.shape_cast %478 : vector<1x2x32xf32> to vector<2x32xf32>
    %480 = vector.shape_cast %453 : vector<2x32xf32> to vector<1x2x32xf32>
    tpu.vector_store %arg4[%c6_304, %c0_305, %c0_306], %480 {strides = array<i32>} : memref<8x2x64xf32, #tpu.memory_space<vmem>>, vector<1x2x32xf32>,
    %c1_307 = arith.constant 1 : index
    %c0_308 = arith.constant 0 : index
    %c32_309 = arith.constant 32 : index
    %481 = vector.load %arg4[%c1_307, %c0_308, %c32_309] : memref<8x2x64xf32, #tpu.memory_space<vmem>>, vector<1x2x32xf32>
    %482 = vector.shape_cast %481 : vector<1x2x32xf32> to vector<2x32xf32>
    %483 = vector.shape_cast %477 : vector<2x32xf32> to vector<1x2x32xf32>
    tpu.vector_store %arg4[%c1_307, %c0_308, %c32_309], %483 {strides = array<i32>} : memref<8x2x64xf32, #tpu.memory_space<vmem>>, vector<1x2x32xf32>,
    %c0_310 = arith.constant 0 : index
    %c7_311 = arith.constant 7 : index
    %c0_312 = arith.constant 0 : index
    %c0_313 = arith.constant 0 : index
    %484 = vector.load %arg1[%c0_310, %c7_311, %c0_312, %c0_313] : memref<6x8x2x32xf32, #tpu.memory_space<vmem>>, vector<1x1x2x32xf32>
    %485 = vector.shape_cast %484 : vector<1x1x2x32xf32> to vector<2x32xf32>
    %c1_314 = arith.constant 1 : index
    %c7_315 = arith.constant 7 : index
    %c0_316 = arith.constant 0 : index
    %c0_317 = arith.constant 0 : index
    %486 = vector.load %arg1[%c1_314, %c7_315, %c0_316, %c0_317] : memref<6x8x2x32xf32, #tpu.memory_space<vmem>>, vector<1x1x2x32xf32>
    %487 = vector.shape_cast %486 : vector<1x1x2x32xf32> to vector<2x32xf32>
    %c2_318 = arith.constant 2 : index
    %c7_319 = arith.constant 7 : index
    %c0_320 = arith.constant 0 : index
    %c0_321 = arith.constant 0 : index
    %488 = vector.load %arg1[%c2_318, %c7_319, %c0_320, %c0_321] : memref<6x8x2x32xf32, #tpu.memory_space<vmem>>, vector<1x1x2x32xf32>
    %489 = vector.shape_cast %488 : vector<1x1x2x32xf32> to vector<2x32xf32>
    %c3_322 = arith.constant 3 : index
    %c0_323 = arith.constant 0 : index
    %c0_324 = arith.constant 0 : index
    %c0_325 = arith.constant 0 : index
    %490 = vector.load %arg1[%c3_322, %c0_323, %c0_324, %c0_325] : memref<6x8x2x32xf32, #tpu.memory_space<vmem>>, vector<1x1x2x32xf32>
    %491 = vector.shape_cast %490 : vector<1x1x2x32xf32> to vector<2x32xf32>
    %c4_326 = arith.constant 4 : index
    %c0_327 = arith.constant 0 : index
    %c0_328 = arith.constant 0 : index
    %c0_329 = arith.constant 0 : index
    %492 = vector.load %arg1[%c4_326, %c0_327, %c0_328, %c0_329] : memref<6x8x2x32xf32, #tpu.memory_space<vmem>>, vector<1x1x2x32xf32>
    %493 = vector.shape_cast %492 : vector<1x1x2x32xf32> to vector<2x32xf32>
    %c5_330 = arith.constant 5 : index
    %c0_331 = arith.constant 0 : index
    %c0_332 = arith.constant 0 : index
    %c0_333 = arith.constant 0 : index
    %494 = vector.load %arg1[%c5_330, %c0_331, %c0_332, %c0_333] : memref<6x8x2x32xf32, #tpu.memory_space<vmem>>, vector<1x1x2x32xf32>
    %495 = vector.shape_cast %494 : vector<1x1x2x32xf32> to vector<2x32xf32>
    %cst_334 = arith.constant dense<0.000000e+00> : vector<2x32xf32>
    %496 = tpu.matmul %453, %1, %cst_334 {dimension_numbers = #tpu.dot_dimension_numbers<[1], [0], [0], [1], [0, 0, 1, 1], [], []>} : vector<2x32xf32>, vector<32x32xf32>, vector<2x32xf32> -> vector<2x32xf32>
    %cst_335 = arith.constant dense<0.000000e+00> : vector<2x32xf32>
    %497 = tpu.matmul %453, %3, %cst_335 {dimension_numbers = #tpu.dot_dimension_numbers<[1], [0], [0], [1], [0, 0, 1, 1], [], []>} : vector<2x32xf32>, vector<32x32xf32>, vector<2x32xf32> -> vector<2x32xf32>
    %cst_336 = arith.constant dense<0.000000e+00> : vector<2x32xf32>
    %498 = tpu.matmul %453, %5, %cst_336 {dimension_numbers = #tpu.dot_dimension_numbers<[1], [0], [0], [1], [0, 0, 1, 1], [], []>} : vector<2x32xf32>, vector<32x32xf32>, vector<2x32xf32> -> vector<2x32xf32>
    %499 = arith.addf %485, %496 : vector<2x32xf32>
    %500 = arith.negf %499 : vector<2x32xf32>
    %501 = math.exp %500 : vector<2x32xf32>
    %cst_337 = arith.constant 1.000000e+00 : f32
    %502 = vector.broadcast %cst_337 : f32 to vector<2x32xf32>
    %503 = arith.addf %502, %501 : vector<2x32xf32>
    %504 = arith.divf %502, %503 : vector<2x32xf32>
    %505 = arith.addf %487, %497 : vector<2x32xf32>
    %506 = arith.negf %505 : vector<2x32xf32>
    %507 = math.exp %506 : vector<2x32xf32>
    %cst_338 = arith.constant 1.000000e+00 : f32
    %508 = vector.broadcast %cst_338 : f32 to vector<2x32xf32>
    %509 = arith.addf %508, %507 : vector<2x32xf32>
    %510 = arith.divf %508, %509 : vector<2x32xf32>
    %511 = arith.addf %498, %15 : vector<2x32xf32>
    %512 = arith.mulf %504, %511 : vector<2x32xf32>
    %513 = arith.addf %489, %512 : vector<2x32xf32>
    %514 = math.tanh %513 : vector<2x32xf32>
    %cst_339 = arith.constant 1.000000e+00 : f32
    %515 = vector.broadcast %cst_339 : f32 to vector<2x32xf32>
    %516 = arith.subf %515, %510 : vector<2x32xf32>
    %517 = arith.mulf %516, %514 : vector<2x32xf32>
    %518 = arith.mulf %510, %453 : vector<2x32xf32>
    %519 = arith.addf %517, %518 : vector<2x32xf32>
    %cst_340 = arith.constant dense<0.000000e+00> : vector<2x32xf32>
    %520 = tpu.matmul %477, %7, %cst_340 {dimension_numbers = #tpu.dot_dimension_numbers<[1], [0], [0], [1], [0, 0, 1, 1], [], []>} : vector<2x32xf32>, vector<32x32xf32>, vector<2x32xf32> -> vector<2x32xf32>
    %cst_341 = arith.constant dense<0.000000e+00> : vector<2x32xf32>
    %521 = tpu.matmul %477, %9, %cst_341 {dimension_numbers = #tpu.dot_dimension_numbers<[1], [0], [0], [1], [0, 0, 1, 1], [], []>} : vector<2x32xf32>, vector<32x32xf32>, vector<2x32xf32> -> vector<2x32xf32>
    %cst_342 = arith.constant dense<0.000000e+00> : vector<2x32xf32>
    %522 = tpu.matmul %477, %11, %cst_342 {dimension_numbers = #tpu.dot_dimension_numbers<[1], [0], [0], [1], [0, 0, 1, 1], [], []>} : vector<2x32xf32>, vector<32x32xf32>, vector<2x32xf32> -> vector<2x32xf32>
    %523 = arith.addf %491, %520 : vector<2x32xf32>
    %524 = arith.negf %523 : vector<2x32xf32>
    %525 = math.exp %524 : vector<2x32xf32>
    %cst_343 = arith.constant 1.000000e+00 : f32
    %526 = vector.broadcast %cst_343 : f32 to vector<2x32xf32>
    %527 = arith.addf %526, %525 : vector<2x32xf32>
    %528 = arith.divf %526, %527 : vector<2x32xf32>
    %529 = arith.addf %493, %521 : vector<2x32xf32>
    %530 = arith.negf %529 : vector<2x32xf32>
    %531 = math.exp %530 : vector<2x32xf32>
    %cst_344 = arith.constant 1.000000e+00 : f32
    %532 = vector.broadcast %cst_344 : f32 to vector<2x32xf32>
    %533 = arith.addf %532, %531 : vector<2x32xf32>
    %534 = arith.divf %532, %533 : vector<2x32xf32>
    %535 = arith.addf %522, %19 : vector<2x32xf32>
    %536 = arith.mulf %528, %535 : vector<2x32xf32>
    %537 = arith.addf %495, %536 : vector<2x32xf32>
    %538 = math.tanh %537 : vector<2x32xf32>
    %cst_345 = arith.constant 1.000000e+00 : f32
    %539 = vector.broadcast %cst_345 : f32 to vector<2x32xf32>
    %540 = arith.subf %539, %534 : vector<2x32xf32>
    %541 = arith.mulf %540, %538 : vector<2x32xf32>
    %542 = arith.mulf %534, %477 : vector<2x32xf32>
    %543 = arith.addf %541, %542 : vector<2x32xf32>
    %c7_346 = arith.constant 7 : index
    %c0_347 = arith.constant 0 : index
    %c0_348 = arith.constant 0 : index
    %544 = vector.load %arg4[%c7_346, %c0_347, %c0_348] : memref<8x2x64xf32, #tpu.memory_space<vmem>>, vector<1x2x32xf32>
    %545 = vector.shape_cast %544 : vector<1x2x32xf32> to vector<2x32xf32>
    %546 = vector.shape_cast %519 : vector<2x32xf32> to vector<1x2x32xf32>
    tpu.vector_store %arg4[%c7_346, %c0_347, %c0_348], %546 {strides = array<i32>} : memref<8x2x64xf32, #tpu.memory_space<vmem>>, vector<1x2x32xf32>,
    %c0_349 = arith.constant 0 : index
    %c0_350 = arith.constant 0 : index
    %c32_351 = arith.constant 32 : index
    %547 = vector.load %arg4[%c0_349, %c0_350, %c32_351] : memref<8x2x64xf32, #tpu.memory_space<vmem>>, vector<1x2x32xf32>
    %548 = vector.shape_cast %547 : vector<1x2x32xf32> to vector<2x32xf32>
    %549 = vector.shape_cast %543 : vector<2x32xf32> to vector<1x2x32xf32>
    tpu.vector_store %arg4[%c0_349, %c0_350, %c32_351], %549 {strides = array<i32>} : memref<8x2x64xf32, #tpu.memory_space<vmem>>, vector<1x2x32xf32>,
    %c0_352 = arith.constant 0 : index
    %c0_353 = arith.constant 0 : index
    %c0_354 = arith.constant 0 : index
    %550 = vector.load %arg5[%c0_352, %c0_353, %c0_354] : memref<2x2x32xf32, #tpu.memory_space<vmem>>, vector<1x2x32xf32>
    %551 = vector.shape_cast %550 : vector<1x2x32xf32> to vector<2x32xf32>
    %552 = vector.shape_cast %519 : vector<2x32xf32> to vector<1x2x32xf32>
    tpu.vector_store %arg5[%c0_352, %c0_353, %c0_354], %552 {strides = array<i32>} : memref<2x2x32xf32, #tpu.memory_space<vmem>>, vector<1x2x32xf32>,
    %c1_355 = arith.constant 1 : index
    %c0_356 = arith.constant 0 : index
    %c0_357 = arith.constant 0 : index
    %553 = vector.load %arg5[%c1_355, %c0_356, %c0_357] : memref<2x2x32xf32, #tpu.memory_space<vmem>>, vector<1x2x32xf32>
    %554 = vector.shape_cast %553 : vector<1x2x32xf32> to vector<2x32xf32>
    %555 = vector.shape_cast %543 : vector<2x32xf32> to vector<1x2x32xf32>
    tpu.vector_store %arg5[%c1_355, %c0_356, %c0_357], %555 {strides = array<i32>} : memref<2x2x32xf32, #tpu.memory_space<vmem>>, vector<1x2x32xf32>,
    return
  }
  func.func @transform_0(%arg0: i32) -> (i32, i32, i32, i32) {
    %c0_i32 = arith.constant 0 : i32
    %c0_i32_0 = arith.constant 0 : i32
    %c0_i32_1 = arith.constant 0 : i32
    %c0_i32_2 = arith.constant 0 : i32
    %c0_i32_3 = arith.constant 0 : i32
    return %c0_i32, %c0_i32_0, %c0_i32_1, %c0_i32_2 : i32, i32, i32, i32
  }
  func.func @transform_1(%arg0: i32) -> (i32, i32, i32) {
    %c0_i32 = arith.constant 0 : i32
    %c0_i32_0 = arith.constant 0 : i32
    %c0_i32_1 = arith.constant 0 : i32
    %c0_i32_2 = arith.constant 0 : i32
    return %c0_i32, %c0_i32_0, %c0_i32_1 : i32, i32, i32
  }
  func.func @transform_2(%arg0: i32) -> (i32, i32, i32) {
    %c0_i32 = arith.constant 0 : i32
    %c0_i32_0 = arith.constant 0 : i32
    %c0_i32_1 = arith.constant 0 : i32
    %c0_i32_2 = arith.constant 0 : i32
    return %c0_i32, %c0_i32_0, %c0_i32_1 : i32, i32, i32
  }
  func.func @transform_3(%arg0: i32) -> (i32, i32, i32) {
    %c0_i32 = arith.constant 0 : i32
    %c0_i32_0 = arith.constant 0 : i32
    %c0_i32_1 = arith.constant 0 : i32
    %c0_i32_2 = arith.constant 0 : i32
    return %c0_i32, %c0_i32_0, %c0_i32_1 : i32, i32, i32
  }
  func.func @transform_4(%arg0: i32) -> (i32, i32, i32) {
    %c0_i32 = arith.constant 0 : i32
    %c0_i32_0 = arith.constant 0 : i32
    %c0_i32_1 = arith.constant 0 : i32
    %c0_i32_2 = arith.constant 0 : i32
    return %c0_i32, %c0_i32_0, %c0_i32_1 : i32, i32, i32
  }
}

</mosaic_0001>

<llo_original>
// kernel: tpu_custom_call.1
$region0: #{tpu_custom_call.1}
  #allocation0 [shape = 'u32[]', space=smem, size = 0x4, offset = 0x4, fixed_abs, tag = 'smem constant byte address 0x4 - core index']
  #allocation1 [shape = 'u32[72,128]{1,0:T(1,128)}', space=vmem, size = 0x9000, scoped, tag = 'internal scratch']
  %s0 = inlined_call_operand.hbm [shape: f32[6,8,2,32], index: 0, kind: input, shape index: {}]
  %s1 = inlined_call_operand.hbm [shape: f32[6,32,32], index: 1, kind: input, shape index: {}]
  %s2 = inlined_call_operand.hbm [shape: f32[2,1,32], index: 2, kind: input, shape index: {}]
  %s3 = inlined_call_operand.hbm [shape: f32[8,2,64], index: 3, kind: output, shape index: {0}]
  %s4 = inlined_call_operand.hbm [shape: f32[2,2,32], index: 4, kind: output, shape index: {1}]
  %5 = xla_tuple %s3, %s4
  %s6 = sld [smem:[#allocation0]]
  $region42: #{tpu_custom_call.1} parent=0
    _
  %s8 = ssub.s32 1, %s6
  %s9 = scalar_select 0, %s8, %s6
  $region1: #{tpu_custom_call.1} parent=0
    #allocation2 [shape = 'u8[49152]{0}', space=vmem, size = 0xc000, scoped, tag = 'input window, operand 0, single buffered']
    #allocation3 [shape = 's32[1]{0}', space=sflag, size = 0x4, scoped, tag = 'scoped memory for tpu_custom_call.1']
    #allocation4 [shape = 's32[1]{0}', space=sflag, size = 0x4, scoped, tag = 'scoped memory for tpu_custom_call.1']
    #allocation5 [shape = 'u8[98304]{0}', space=vmem, size = 0x18000, scoped, tag = 'input window, operand 1, single buffered']
    #allocation6 [shape = 's32[1]{0}', space=sflag, size = 0x4, scoped, tag = 'scoped memory for tpu_custom_call.1']
    #allocation7 [shape = 'u8[1024]{0}', space=vmem, size = 0x400, scoped, tag = 'input window, operand 2, single buffered']
    #allocation8 [shape = 'u8[8192]{0}', space=vmem, size = 0x2000, scoped, tag = 'output window, operand 0, single buffered']
    #allocation9 [shape = 'u8[2048]{0}', space=vmem, size = 0x800, scoped, tag = 'output window, operand 1, single buffered']
    #allocation10 [shape = 's32[1]{0}', space=sflag, size = 0x4, scoped, tag = 'scoped memory for tpu_custom_call.1']
    %10 = vsyncpa [#allocation3], 0
    %11 = vsyncpa [#allocation6], 0
    %12 = vsyncpa [#allocation4], 0
    %13 = vsyncpa [#allocation10], 0
    // Predicated region
    $region2: #{tpu_custom_call.1} parent=1 // pred_check
      _
    $region3: #{tpu_custom_call.1} parent=1 // pred_check_branch
      %15 = sbr.rel (0) target = $region5
    $region4: #{tpu_custom_call.1} parent=1 // pred_region
      %17 = vsyncadd [#allocation3], 0
      %s18 = sshll.u32 %s0, 4
      %s19 = int_to_ptr.hbm [resolvable:$true] %s18
      %s20 = sshll.u32 [#allocation2], 4
      %s21 = int_to_ptr.vmem [resolvable:$true] %s20
      %26 = dma.hbm_to_vmem [thread:$0]  %s19, 1536, %s21, [#allocation3], 32, 32, 2
    $region5: #{tpu_custom_call.1} parent=1 // pred_fallthru
      _
    // Predicated region
    $region6: #{tpu_custom_call.1} parent=1 // pred_check
      _
    $region7: #{tpu_custom_call.1} parent=1 // pred_check_branch
      %28 = sbr.rel (0) target = $region9
    $region8: #{tpu_custom_call.1} parent=1 // pred_region
      %30 = vsyncadd [#allocation6], 0
      %s31 = sshll.u32 %s1, 4
      %s32 = int_to_ptr.hbm [resolvable:$true] %s31
      %s33 = sshll.u32 [#allocation5], 4
      %s34 = int_to_ptr.vmem [resolvable:$true] %s33
      %39 = dma.hbm_to_vmem [thread:$0]  %s32, 3072, %s34, [#allocation6], 128, 128, 8
    $region9: #{tpu_custom_call.1} parent=1 // pred_fallthru
      _
    // Predicated region
    $region10: #{tpu_custom_call.1} parent=1 // pred_check
      _
    $region11: #{tpu_custom_call.1} parent=1 // pred_check_branch
      %41 = sbr.rel (0) target = $region13
    $region12: #{tpu_custom_call.1} parent=1 // pred_region
      %43 = vsyncadd [#allocation6], 0
      %s44 = sshll.u32 %s2, 4
      %s45 = int_to_ptr.hbm [resolvable:$true] %s44
      %s46 = sshll.u32 [#allocation7], 4
      %s47 = int_to_ptr.vmem [resolvable:$true] %s46
      %52 = dma.hbm_to_vmem [thread:$0]  %s45, 32, %s47, [#allocation6], 16, 16, 1
    $region13: #{tpu_custom_call.1} parent=1 // pred_fallthru
      _
    // Predicated region
    $region14: #{tpu_custom_call.1} parent=1 // pred_check
      _
    $region15: #{tpu_custom_call.1} parent=1 // pred_check_branch
      %54 = sbr.rel (0) target = $region17
    $region16: #{tpu_custom_call.1} parent=1 // pred_region
      %56 = dma.done [#allocation3], 1536
    $region17: #{tpu_custom_call.1} parent=1 // pred_fallthru
      _
    // Predicated region
    $region18: #{tpu_custom_call.1} parent=1 // pred_check
      _
    $region19: #{tpu_custom_call.1} parent=1 // pred_check_branch
      %58 = sbr.rel (0) target = $region21
    $region20: #{tpu_custom_call.1} parent=1 // pred_region
      %60 = dma.done [#allocation6], 3072
    $region21: #{tpu_custom_call.1} parent=1 // pred_fallthru
      _
    // Predicated region
    $region22: #{tpu_custom_call.1} parent=1 // pred_check
      _
    $region23: #{tpu_custom_call.1} parent=1 // pred_check_branch
      %62 = sbr.rel (0) target = $region25
    $region24: #{tpu_custom_call.1} parent=1 // pred_region
      %64 = dma.done [#allocation6], 32
    $region25: #{tpu_custom_call.1} parent=1 // pred_fallthru
      _
    %v65 = vld [vmem:[#allocation5] sm:$0xff]
    %v66 = vld [vmem:[#allocation5 + $0x8] sm:$0xff]
    %v67 = vld [vmem:[#allocation5 + $0x10] sm:$0xff]
    %v68 = vld [vmem:[#allocation5 + $0x18] sm:$0xff]
    %s69 = scalar_lea.vmem [#allocation5], 32
    %v70 = vld [vmem:[%s69] sm:$0xff]
    %v71 = vld [vmem:[%s69 + $0x8] sm:$0xff]
    %v72 = vld [vmem:[%s69 + $0x10] sm:$0xff]
    %v73 = vld [vmem:[%s69 + $0x18] sm:$0xff]
    %s74 = scalar_lea.vmem [#allocation5], 64
    %v75 = vld [vmem:[%s74] sm:$0xff]
    %v76 = vld [vmem:[%s74 + $0x8] sm:$0xff]
    %v77 = vld [vmem:[%s74 + $0x10] sm:$0xff]
    %v78 = vld [vmem:[%s74 + $0x18] sm:$0xff]
    %s79 = scalar_lea.vmem [#allocation5], 96
    %v80 = vld [vmem:[%s79] sm:$0xff]
    %v81 = vld [vmem:[%s79 + $0x8] sm:$0xff]
    %v82 = vld [vmem:[%s79 + $0x10] sm:$0xff]
    %v83 = vld [vmem:[%s79 + $0x18] sm:$0xff]
    %s84 = scalar_lea.vmem [#allocation5], 128
    %v85 = vld [vmem:[%s84] sm:$0xff]
    %v86 = vld [vmem:[%s84 + $0x8] sm:$0xff]
    %v87 = vld [vmem:[%s84 + $0x10] sm:$0xff]
    %v88 = vld [vmem:[%s84 + $0x18] sm:$0xff]
    %s89 = scalar_lea.vmem [#allocation5], 160
    %v90 = vld [vmem:[%s89] sm:$0xff]
    %v91 = vld [vmem:[%s89 + $0x8] sm:$0xff]
    %v92 = vld [vmem:[%s89 + $0x10] sm:$0xff]
    %v93 = vld [vmem:[%s89 + $0x18] sm:$0xff]
    %v94 = vld [vmem:[#allocation7] sm:$0x1]
    %v96 = vperm.slane %v94, 0
    %s98 = scalar_lea.vmem [#allocation7], 1
    %v99 = vld [vmem:[%s98] sm:$0x1]
    %v101 = vperm.slane %v99, 0
    %v103 = vld [vmem:[#allocation2] sm:$0x3]
    %s104 = scalar_lea.vmem [#allocation2], 16
    %v105 = vld [vmem:[%s104] sm:$0x3]
    %s106 = scalar_lea.vmem [#allocation2], 32
    %v107 = vld [vmem:[%s106] sm:$0x3]
    %s108 = scalar_lea.vmem [#allocation2], 62
    %v109 = vld [vmem:[%s108] sm:$0x3]
    %s110 = scalar_lea.vmem [#allocation2], 78
    %v111 = vld [vmem:[%s110] sm:$0x3]
    %s112 = scalar_lea.vmem [#allocation2], 94
    %v113 = vld [vmem:[%s112] sm:$0x3]
    %vm114 = vcmask 261120
    %v116 = vsel %vm114, 0.0, 0
    %118 = vmatpush.msra.mxu0 0.0
    %119 = vmatpush.msra.mxu0 0.0
    %120 = vmatpush.msra.mxu0 0.0
    %121 = vmatpush.msra.mxu0 0.0
    %122 = vmatpush.msra.mxu0 0.0
    %123 = vmatpush.msra.mxu0 0.0
    %124 = vmatpush.msra.mxu0 0.0
    %125 = vmatpush.msra.mxu0 0.0
    %126 = vmatpush.msra.mxu0 0.0
    %127 = vmatpush.msra.mxu0 0.0
    %128 = vmatpush.msra.mxu0 0.0
    %129 = vmatpush.msra.mxu0 0.0
    %130 = vmatpush.msra.mxu0 %v68
    %131 = vmatpush.msra.mxu0 %v67
    %132 = vmatpush.msra.mxu0 %v66
    %133 = vmatpush.msra.mxu0 %v65
    %134 = vmatmul.f32.gmra.mxu0 %v116
    %v135 = vpop.f32.mrf.mxu0
    %v136 = vadd.f32 0.0, %v135
    %137 = vdwg.mxu0
    %138 = vmatpush.msra.mxu0 0.0
    %139 = vmatpush.msra.mxu0 0.0
    %140 = vmatpush.msra.mxu0 0.0
    %141 = vmatpush.msra.mxu0 0.0
    %142 = vmatpush.msra.mxu0 0.0
    %143 = vmatpush.msra.mxu0 0.0
    %144 = vmatpush.msra.mxu0 0.0
    %145 = vmatpush.msra.mxu0 0.0
    %146 = vmatpush.msra.mxu0 0.0
    %147 = vmatpush.msra.mxu0 0.0
    %148 = vmatpush.msra.mxu0 0.0
    %149 = vmatpush.msra.mxu0 0.0
    %150 = vmatpush.msra.mxu0 %v73
    %151 = vmatpush.msra.mxu0 %v72
    %152 = vmatpush.msra.mxu0 %v71
    %153 = vmatpush.msra.mxu0 %v70
    %154 = vmatmul.f32.gmra.mxu0 %v116
    %v155 = vpop.f32.mrf.mxu0
    %v156 = vadd.f32 0.0, %v155
    %157 = vdwg.mxu0
    %v158 = vadd.f32 %v103, %v136
    %v159 = vxor.u32 %v158, 2147483648
    %v160 = vmul.f32 %v159, 1.442695
    %v161 = vpow.pop %v160
    %v162 = vadd.f32 %v161, 1.0
    %v163 = vrcp.pop %v162
    %v164 = vmul.f32 %v162, %v163
    %v165 = vsub.f32 1.0, %v164
    %v166 = vmul.f32 %v163, %v165
    %v167 = vadd.f32 %v163, %v166
    %vm168 = vweird.f32 %v162
    %vm169 = vweird.f32 %v163
    %vm170 = vmor %vm168, %vm169
    %v171 = vsel %vm170, %v163, %v167
    %v172 = vand.u32 2147483647, %v162
    %vm173 = vcmp.eq.f32.partialorder %v172, 8.507059e+37
    %v174 = vand.u32 %v162, 2147483648
    %v175 = vor.u32 1.1754944e-38, %v174
    %v176 = vsel %vm173, %v175, %v171
    %v177 = vmul.f32 1.0, %v176
    %v178 = vadd.f32 %v105, %v156
    %v179 = vxor.u32 %v178, 2147483648
    %v180 = vmul.f32 %v179, 1.442695
    %v181 = vpow.pop %v180
    %v182 = vadd.f32 %v181, 1.0
    %v183 = vrcp.pop %v182
    %v184 = vmul.f32 %v182, %v183
    %v185 = vsub.f32 1.0, %v184
    %v186 = vmul.f32 %v183, %v185
    %v187 = vadd.f32 %v183, %v186
    %vm188 = vweird.f32 %v182
    %vm189 = vweird.f32 %v183
    %vm190 = vmor %vm188, %vm189
    %v191 = vsel %vm190, %v183, %v187
    %v192 = vand.u32 2147483647, %v182
    %vm193 = vcmp.eq.f32.partialorder %v192, 8.507059e+37
    %v194 = vand.u32 %v182, 2147483648
    %v195 = vor.u32 1.1754944e-38, %v194
    %v196 = vsel %vm193, %v195, %v191
    %v197 = vmul.f32 1.0, %v196
    %198 = vmatpush.msra.mxu0 0.0
    %199 = vmatpush.msra.mxu0 0.0
    %200 = vmatpush.msra.mxu0 0.0
    %201 = vmatpush.msra.mxu0 0.0
    %202 = vmatpush.msra.mxu0 0.0
    %203 = vmatpush.msra.mxu0 0.0
    %204 = vmatpush.msra.mxu0 0.0
    %205 = vmatpush.msra.mxu0 0.0
    %206 = vmatpush.msra.mxu0 0.0
    %207 = vmatpush.msra.mxu0 0.0
    %208 = vmatpush.msra.mxu0 0.0
    %209 = vmatpush.msra.mxu0 0.0
    %210 = vmatpush.msra.mxu0 %v78
    %211 = vmatpush.msra.mxu0 %v77
    %212 = vmatpush.msra.mxu0 %v76
    %213 = vmatpush.msra.mxu0 %v75
    %214 = vmatmul.f32.gmra.mxu0 %v116
    %v215 = vpop.f32.mrf.mxu0
    %v216 = vadd.f32 %v96, %v215
    %217 = vdwg.mxu0
    %v218 = vmul.f32 %v177, %v216
    %v219 = vadd.f32 %v107, %v218
    %v220 = vtanh.pop %v219
    %v221 = vsub.f32 1.0, %v197
    %v222 = vmul.f32 %v221, %v220
    %v223 = vmul.f32 %v197, 0.0
    %v224 = vadd.f32 %v222, %v223
    %225 = vmatpush.msra.mxu0 0.0
    %226 = vmatpush.msra.mxu0 0.0
    %227 = vmatpush.msra.mxu0 0.0
    %228 = vmatpush.msra.mxu0 0.0
    %229 = vmatpush.msra.mxu0 0.0
    %230 = vmatpush.msra.mxu0 0.0
    %231 = vmatpush.msra.mxu0 0.0
    %232 = vmatpush.msra.mxu0 0.0
    %233 = vmatpush.msra.mxu0 0.0
    %234 = vmatpush.msra.mxu0 0.0
    %235 = vmatpush.msra.mxu0 0.0
    %236 = vmatpush.msra.mxu0 0.0
    %237 = vmatpush.msra.mxu0 %v83
    %238 = vmatpush.msra.mxu0 %v82
    %239 = vmatpush.msra.mxu0 %v81
    %240 = vmatpush.msra.mxu0 %v80
    %241 = vmatmul.f32.gmra.mxu0 %v116
    %v242 = vpop.f32.mrf.mxu0
    %v243 = vadd.f32 0.0, %v242
    %244 = vdwg.mxu0
    %245 = vmatpush.msra.mxu0 0.0
    %246 = vmatpush.msra.mxu0 0.0
    %247 = vmatpush.msra.mxu0 0.0
    %248 = vmatpush.msra.mxu0 0.0
    %249 = vmatpush.msra.mxu0 0.0
    %250 = vmatpush.msra.mxu0 0.0
    %251 = vmatpush.msra.mxu0 0.0
    %252 = vmatpush.msra.mxu0 0.0
    %253 = vmatpush.msra.mxu0 0.0
    %254 = vmatpush.msra.mxu0 0.0
    %255 = vmatpush.msra.mxu0 0.0
    %256 = vmatpush.msra.mxu0 0.0
    %257 = vmatpush.msra.mxu0 %v88
    %258 = vmatpush.msra.mxu0 %v87
    %259 = vmatpush.msra.mxu0 %v86
    %260 = vmatpush.msra.mxu0 %v85
    %261 = vmatmul.f32.gmra.mxu0 %v116
    %v262 = vpop.f32.mrf.mxu0
    %v263 = vadd.f32 0.0, %v262
    %264 = vdwg.mxu0
    %v265 = vadd.f32 %v109, %v243
    %v266 = vxor.u32 %v265, 2147483648
    %v267 = vmul.f32 %v266, 1.442695
    %v268 = vpow.pop %v267
    %v269 = vadd.f32 %v268, 1.0
    %v270 = vrcp.pop %v269
    %v271 = vmul.f32 %v269, %v270
    %v272 = vsub.f32 1.0, %v271
    %v273 = vmul.f32 %v270, %v272
    %v274 = vadd.f32 %v270, %v273
    %vm275 = vweird.f32 %v269
    %vm276 = vweird.f32 %v270
    %vm277 = vmor %vm275, %vm276
    %v278 = vsel %vm277, %v270, %v274
    %v279 = vand.u32 2147483647, %v269
    %vm280 = vcmp.eq.f32.partialorder %v279, 8.507059e+37
    %v281 = vand.u32 %v269, 2147483648
    %v282 = vor.u32 1.1754944e-38, %v281
    %v283 = vsel %vm280, %v282, %v278
    %v284 = vmul.f32 1.0, %v283
    %v285 = vadd.f32 %v111, %v263
    %v286 = vxor.u32 %v285, 2147483648
    %v287 = vmul.f32 %v286, 1.442695
    %v288 = vpow.pop %v287
    %v289 = vadd.f32 %v288, 1.0
    %v290 = vrcp.pop %v289
    %v291 = vmul.f32 %v289, %v290
    %v292 = vsub.f32 1.0, %v291
    %v293 = vmul.f32 %v290, %v292
    %v294 = vadd.f32 %v290, %v293
    %vm295 = vweird.f32 %v289
    %vm296 = vweird.f32 %v290
    %vm297 = vmor %vm295, %vm296
    %v298 = vsel %vm297, %v290, %v294
    %v299 = vand.u32 2147483647, %v289
    %vm300 = vcmp.eq.f32.partialorder %v299, 8.507059e+37
    %v301 = vand.u32 %v289, 2147483648
    %v302 = vor.u32 1.1754944e-38, %v301
    %v303 = vsel %vm300, %v302, %v298
    %v304 = vmul.f32 1.0, %v303
    %305 = vmatpush.msra.mxu0 0.0
    %306 = vmatpush.msra.mxu0 0.0
    %307 = vmatpush.msra.mxu0 0.0
    %308 = vmatpush.msra.mxu0 0.0
    %309 = vmatpush.msra.mxu0 0.0
    %310 = vmatpush.msra.mxu0 0.0
    %311 = vmatpush.msra.mxu0 0.0
    %312 = vmatpush.msra.mxu0 0.0
    %313 = vmatpush.msra.mxu0 0.0
    %314 = vmatpush.msra.mxu0 0.0
    %315 = vmatpush.msra.mxu0 0.0
    %316 = vmatpush.msra.mxu0 0.0
    %317 = vmatpush.msra.mxu0 %v93
    %318 = vmatpush.msra.mxu0 %v92
    %319 = vmatpush.msra.mxu0 %v91
    %320 = vmatpush.msra.mxu0 %v90
    %321 = vmatmul.f32.gmra.mxu0 %v116
    %v322 = vpop.f32.mrf.mxu0
    %v323 = vadd.f32 %v101, %v322
    %324 = vdwg.mxu0
    %v325 = vmul.f32 %v284, %v323
    %v326 = vadd.f32 %v113, %v325
    %v327 = vtanh.pop %v326
    %v328 = vsub.f32 1.0, %v304
    %v329 = vmul.f32 %v328, %v327
    %v330 = vmul.f32 %v304, 0.0
    %v331 = vadd.f32 %v329, %v330
    %vm332 = vcmask 254976
    %333 = vst.msk [vmem:[#allocation8] sm:$0x3] %vm332, %v224
    %335 = vrot.lane.b32.xlu0 %v331, 32
    %v336 = vpop.permute.xlu0 %335
    %s338 = scalar_lea.vmem [#allocation8], 14
    %vm339 = vcmask 517376
    %340 = vst.msk [vmem:[%s338] sm:$0x3] %vm339, %v336
    %s341 = scalar_lea.vmem [#allocation2], 2
    %v342 = vld [vmem:[%s341] sm:$0x3]
    %s343 = scalar_lea.vmem [#allocation2], 18
    %v344 = vld [vmem:[%s343] sm:$0x3]
    %s345 = scalar_lea.vmem [#allocation2], 34
    %v346 = vld [vmem:[%s345] sm:$0x3]
    %s347 = scalar_lea.vmem [#allocation2], 60
    %v348 = vld [vmem:[%s347] sm:$0x3]
    %s349 = scalar_lea.vmem [#allocation2], 76
    %v350 = vld [vmem:[%s349] sm:$0x3]
    %s351 = scalar_lea.vmem [#allocation2], 92
    %v352 = vld [vmem:[%s351] sm:$0x3]
    %v354 = vsel %vm114, %v224, 0
    %356 = vmatpush.msra.mxu0 0.0
    %357 = vmatpush.msra.mxu0 0.0
    %358 = vmatpush.msra.mxu0 0.0
    %359 = vmatpush.msra.mxu0 0.0
    %360 = vmatpush.msra.mxu0 0.0
    %361 = vmatpush.msra.mxu0 0.0
    %362 = vmatpush.msra.mxu0 0.0
    %363 = vmatpush.msra.mxu0 0.0
    %364 = vmatpush.msra.mxu0 0.0
    %365 = vmatpush.msra.mxu0 0.0
    %366 = vmatpush.msra.mxu0 0.0
    %367 = vmatpush.msra.mxu0 0.0
    %368 = vmatpush.msra.mxu0 %v68
    %369 = vmatpush.msra.mxu0 %v67
    %370 = vmatpush.msra.mxu0 %v66
    %371 = vmatpush.msra.mxu0 %v65
    %372 = vmatmul.f32.gmra.mxu0 %v354
    %v373 = vpop.f32.mrf.mxu0
    %v374 = vadd.f32 0.0, %v373
    %375 = vdwg.mxu0
    %376 = vmatpush.msra.mxu0 0.0
    %377 = vmatpush.msra.mxu0 0.0
    %378 = vmatpush.msra.mxu0 0.0
    %379 = vmatpush.msra.mxu0 0.0
    %380 = vmatpush.msra.mxu0 0.0
    %381 = vmatpush.msra.mxu0 0.0
    %382 = vmatpush.msra.mxu0 0.0
    %383 = vmatpush.msra.mxu0 0.0
    %384 = vmatpush.msra.mxu0 0.0
    %385 = vmatpush.msra.mxu0 0.0
    %386 = vmatpush.msra.mxu0 0.0
    %387 = vmatpush.msra.mxu0 0.0
    %388 = vmatpush.msra.mxu0 %v73
    %389 = vmatpush.msra.mxu0 %v72
    %390 = vmatpush.msra.mxu0 %v71
    %391 = vmatpush.msra.mxu0 %v70
    %392 = vmatmul.f32.gmra.mxu0 %v354
    %v393 = vpop.f32.mrf.mxu0
    %v394 = vadd.f32 0.0, %v393
    %395 = vdwg.mxu0
    %v396 = vadd.f32 %v342, %v374
    %v397 = vxor.u32 %v396, 2147483648
    %v398 = vmul.f32 %v397, 1.442695
    %v399 = vpow.pop %v398
    %v400 = vadd.f32 %v399, 1.0
    %v401 = vrcp.pop %v400
    %v402 = vmul.f32 %v400, %v401
    %v403 = vsub.f32 1.0, %v402
    %v404 = vmul.f32 %v401, %v403
    %v405 = vadd.f32 %v401, %v404
    %vm406 = vweird.f32 %v400
    %vm407 = vweird.f32 %v401
    %vm408 = vmor %vm406, %vm407
    %v409 = vsel %vm408, %v401, %v405
    %v410 = vand.u32 2147483647, %v400
    %vm411 = vcmp.eq.f32.partialorder %v410, 8.507059e+37
    %v412 = vand.u32 %v400, 2147483648
    %v413 = vor.u32 1.1754944e-38, %v412
    %v414 = vsel %vm411, %v413, %v409
    %v415 = vmul.f32 1.0, %v414
    %v416 = vadd.f32 %v344, %v394
    %v417 = vxor.u32 %v416, 2147483648
    %v418 = vmul.f32 %v417, 1.442695
    %v419 = vpow.pop %v418
    %v420 = vadd.f32 %v419, 1.0
    %v421 = vrcp.pop %v420
    %v422 = vmul.f32 %v420, %v421
    %v423 = vsub.f32 1.0, %v422
    %v424 = vmul.f32 %v421, %v423
    %v425 = vadd.f32 %v421, %v424
    %vm426 = vweird.f32 %v420
    %vm427 = vweird.f32 %v421
    %vm428 = vmor %vm426, %vm427
    %v429 = vsel %vm428, %v421, %v425
    %v430 = vand.u32 2147483647, %v420
    %vm431 = vcmp.eq.f32.partialorder %v430, 8.507059e+37
    %v432 = vand.u32 %v420, 2147483648
    %v433 = vor.u32 1.1754944e-38, %v432
    %v434 = vsel %vm431, %v433, %v429
    %v435 = vmul.f32 1.0, %v434
    %436 = vmatpush.msra.mxu0 0.0
    %437 = vmatpush.msra.mxu0 0.0
    %438 = vmatpush.msra.mxu0 0.0
    %439 = vmatpush.msra.mxu0 0.0
    %440 = vmatpush.msra.mxu0 0.0
    %441 = vmatpush.msra.mxu0 0.0
    %442 = vmatpush.msra.mxu0 0.0
    %443 = vmatpush.msra.mxu0 0.0
    %444 = vmatpush.msra.mxu0 0.0
    %445 = vmatpush.msra.mxu0 0.0
    %446 = vmatpush.msra.mxu0 0.0
    %447 = vmatpush.msra.mxu0 0.0
    %448 = vmatpush.msra.mxu0 %v78
    %449 = vmatpush.msra.mxu0 %v77
    %450 = vmatpush.msra.mxu0 %v76
    %451 = vmatpush.msra.mxu0 %v75
    %452 = vmatmul.f32.gmra.mxu0 %v354
    %v453 = vpop.f32.mrf.mxu0
    %v454 = vadd.f32 %v96, %v453
    %455 = vdwg.mxu0
    %v456 = vmul.f32 %v415, %v454
    %v457 = vadd.f32 %v346, %v456
    %v458 = vtanh.pop %v457
    %v459 = vsub.f32 1.0, %v435
    %v460 = vmul.f32 %v459, %v458
    %v461 = vmul.f32 %v435, %v224
    %v462 = vadd.f32 %v460, %v461
    %v463 = vsel %vm114, %v331, 0
    %465 = vmatpush.msra.mxu0 0.0
    %466 = vmatpush.msra.mxu0 0.0
    %467 = vmatpush.msra.mxu0 0.0
    %468 = vmatpush.msra.mxu0 0.0
    %469 = vmatpush.msra.mxu0 0.0
    %470 = vmatpush.msra.mxu0 0.0
    %471 = vmatpush.msra.mxu0 0.0
    %472 = vmatpush.msra.mxu0 0.0
    %473 = vmatpush.msra.mxu0 0.0
    %474 = vmatpush.msra.mxu0 0.0
    %475 = vmatpush.msra.mxu0 0.0
    %476 = vmatpush.msra.mxu0 0.0
    %477 = vmatpush.msra.mxu0 %v83
    %478 = vmatpush.msra.mxu0 %v82
    %479 = vmatpush.msra.mxu0 %v81
    %480 = vmatpush.msra.mxu0 %v80
    %481 = vmatmul.f32.gmra.mxu0 %v463
    %v482 = vpop.f32.mrf.mxu0
    %v483 = vadd.f32 0.0, %v482
    %484 = vdwg.mxu0
    %485 = vmatpush.msra.mxu0 0.0
    %486 = vmatpush.msra.mxu0 0.0
    %487 = vmatpush.msra.mxu0 0.0
    %488 = vmatpush.msra.mxu0 0.0
    %489 = vmatpush.msra.mxu0 0.0
    %490 = vmatpush.msra.mxu0 0.0
    %491 = vmatpush.msra.mxu0 0.0
    %492 = vmatpush.msra.mxu0 0.0
    %493 = vmatpush.msra.mxu0 0.0
    %494 = vmatpush.msra.mxu0 0.0
    %495 = vmatpush.msra.mxu0 0.0
    %496 = vmatpush.msra.mxu0 0.0
    %497 = vmatpush.msra.mxu0 %v88
    %498 = vmatpush.msra.mxu0 %v87
    %499 = vmatpush.msra.mxu0 %v86
    %500 = vmatpush.msra.mxu0 %v85
    %501 = vmatmul.f32.gmra.mxu0 %v463
    %v502 = vpop.f32.mrf.mxu0
    %v503 = vadd.f32 0.0, %v502
    %504 = vdwg.mxu0
    %v505 = vadd.f32 %v348, %v483
    %v506 = vxor.u32 %v505, 2147483648
    %v507 = vmul.f32 %v506, 1.442695
    %v508 = vpow.pop %v507
    %v509 = vadd.f32 %v508, 1.0
    %v510 = vrcp.pop %v509
    %v511 = vmul.f32 %v509, %v510
    %v512 = vsub.f32 1.0, %v511
    %v513 = vmul.f32 %v510, %v512
    %v514 = vadd.f32 %v510, %v513
    %vm515 = vweird.f32 %v509
    %vm516 = vweird.f32 %v510
    %vm517 = vmor %vm515, %vm516
    %v518 = vsel %vm517, %v510, %v514
    %v519 = vand.u32 2147483647, %v509
    %vm520 = vcmp.eq.f32.partialorder %v519, 8.507059e+37
    %v521 = vand.u32 %v509, 2147483648
    %v522 = vor.u32 1.1754944e-38, %v521
    %v523 = vsel %vm520, %v522, %v518
    %v524 = vmul.f32 1.0, %v523
    %v525 = vadd.f32 %v350, %v503
    %v526 = vxor.u32 %v525, 2147483648
    %v527 = vmul.f32 %v526, 1.442695
    %v528 = vpow.pop %v527
    %v529 = vadd.f32 %v528, 1.0
    %v530 = vrcp.pop %v529
    %v531 = vmul.f32 %v529, %v530
    %v532 = vsub.f32 1.0, %v531
    %v533 = vmul.f32 %v530, %v532
    %v534 = vadd.f32 %v530, %v533
    %vm535 = vweird.f32 %v529
    %vm536 = vweird.f32 %v530
    %vm537 = vmor %vm535, %vm536
    %v538 = vsel %vm537, %v530, %v534
    %v539 = vand.u32 2147483647, %v529
    %vm540 = vcmp.eq.f32.partialorder %v539, 8.507059e+37
    %v541 = vand.u32 %v529, 2147483648
    %v542 = vor.u32 1.1754944e-38, %v541
    %v543 = vsel %vm540, %v542, %v538
    %v544 = vmul.f32 1.0, %v543
    %545 = vmatpush.msra.mxu0 0.0
    %546 = vmatpush.msra.mxu0 0.0
    %547 = vmatpush.msra.mxu0 0.0
    %548 = vmatpush.msra.mxu0 0.0
    %549 = vmatpush.msra.mxu0 0.0
    %550 = vmatpush.msra.mxu0 0.0
    %551 = vmatpush.msra.mxu0 0.0
    %552 = vmatpush.msra.mxu0 0.0
    %553 = vmatpush.msra.mxu0 0.0
    %554 = vmatpush.msra.mxu0 0.0
    %555 = vmatpush.msra.mxu0 0.0
    %556 = vmatpush.msra.mxu0 0.0
    %557 = vmatpush.msra.mxu0 %v93
    %558 = vmatpush.msra.mxu0 %v92
    %559 = vmatpush.msra.mxu0 %v91
    %560 = vmatpush.msra.mxu0 %v90
    %561 = vmatmul.f32.gmra.mxu0 %v463
    %v562 = vpop.f32.mrf.mxu0
    %v563 = vadd.f32 %v101, %v562
    %564 = vdwg.mxu0
    %v565 = vmul.f32 %v524, %v563
    %v566 = vadd.f32 %v352, %v565
    %v567 = vtanh.pop %v566
    %v568 = vsub.f32 1.0, %v544
    %v569 = vmul.f32 %v568, %v567
    %v570 = vmul.f32 %v544, %v331
    %v571 = vadd.f32 %v569, %v570
    %s572 = scalar_lea.vmem [#allocation8], 2
    %573 = vst.msk [vmem:[%s572] sm:$0x3] %vm332, %v462
    %575 = vrot.lane.b32.xlu0 %v571, 32
    %v576 = vpop.permute.xlu0 %575
    %s578 = scalar_lea.vmem [#allocation8], 12
    %579 = vst.msk [vmem:[%s578] sm:$0x3] %vm339, %v576
    %s580 = scalar_lea.vmem [#allocation2], 4
    %v581 = vld [vmem:[%s580] sm:$0x3]
    %s582 = scalar_lea.vmem [#allocation2], 20
    %v583 = vld [vmem:[%s582] sm:$0x3]
    %s584 = scalar_lea.vmem [#allocation2], 36
    %v585 = vld [vmem:[%s584] sm:$0x3]
    %s586 = scalar_lea.vmem [#allocation2], 58
    %v587 = vld [vmem:[%s586] sm:$0x3]
    %s588 = scalar_lea.vmem [#allocation2], 74
    %v589 = vld [vmem:[%s588] sm:$0x3]
    %s590 = scalar_lea.vmem [#allocation2], 90
    %v591 = vld [vmem:[%s590] sm:$0x3]
    %v593 = vsel %vm114, %v462, 0
    %595 = vmatpush.msra.mxu0 0.0
    %596 = vmatpush.msra.mxu0 0.0
    %597 = vmatpush.msra.mxu0 0.0
    %598 = vmatpush.msra.mxu0 0.0
    %599 = vmatpush.msra.mxu0 0.0
    %600 = vmatpush.msra.mxu0 0.0
    %601 = vmatpush.msra.mxu0 0.0
    %602 = vmatpush.msra.mxu0 0.0
    %603 = vmatpush.msra.mxu0 0.0
    %604 = vmatpush.msra.mxu0 0.0
    %605 = vmatpush.msra.mxu0 0.0
    %606 = vmatpush.msra.mxu0 0.0
    %607 = vmatpush.msra.mxu0 %v68
    %608 = vmatpush.msra.mxu0 %v67
    %609 = vmatpush.msra.mxu0 %v66
    %610 = vmatpush.msra.mxu0 %v65
    %611 = vmatmul.f32.gmra.mxu0 %v593
    %v612 = vpop.f32.mrf.mxu0
    %v613 = vadd.f32 0.0, %v612
    %614 = vdwg.mxu0
    %615 = vmatpush.msra.mxu0 0.0
    %616 = vmatpush.msra.mxu0 0.0
    %617 = vmatpush.msra.mxu0 0.0
    %618 = vmatpush.msra.mxu0 0.0
    %619 = vmatpush.msra.mxu0 0.0
    %620 = vmatpush.msra.mxu0 0.0
    %621 = vmatpush.msra.mxu0 0.0
    %622 = vmatpush.msra.mxu0 0.0
    %623 = vmatpush.msra.mxu0 0.0
    %624 = vmatpush.msra.mxu0 0.0
    %625 = vmatpush.msra.mxu0 0.0
    %626 = vmatpush.msra.mxu0 0.0
    %627 = vmatpush.msra.mxu0 %v73
    %628 = vmatpush.msra.mxu0 %v72
    %629 = vmatpush.msra.mxu0 %v71
    %630 = vmatpush.msra.mxu0 %v70
    %631 = vmatmul.f32.gmra.mxu0 %v593
    %v632 = vpop.f32.mrf.mxu0
    %v633 = vadd.f32 0.0, %v632
    %634 = vdwg.mxu0
    %v635 = vadd.f32 %v581, %v613
    %v636 = vxor.u32 %v635, 2147483648
    %v637 = vmul.f32 %v636, 1.442695
    %v638 = vpow.pop %v637
    %v639 = vadd.f32 %v638, 1.0
    %v640 = vrcp.pop %v639
    %v641 = vmul.f32 %v639, %v640
    %v642 = vsub.f32 1.0, %v641
    %v643 = vmul.f32 %v640, %v642
    %v644 = vadd.f32 %v640, %v643
    %vm645 = vweird.f32 %v639
    %vm646 = vweird.f32 %v640
    %vm647 = vmor %vm645, %vm646
    %v648 = vsel %vm647, %v640, %v644
    %v649 = vand.u32 2147483647, %v639
    %vm650 = vcmp.eq.f32.partialorder %v649, 8.507059e+37
    %v651 = vand.u32 %v639, 2147483648
    %v652 = vor.u32 1.1754944e-38, %v651
    %v653 = vsel %vm650, %v652, %v648
    %v654 = vmul.f32 1.0, %v653
    %v655 = vadd.f32 %v583, %v633
    %v656 = vxor.u32 %v655, 2147483648
    %v657 = vmul.f32 %v656, 1.442695
    %v658 = vpow.pop %v657
    %v659 = vadd.f32 %v658, 1.0
    %v660 = vrcp.pop %v659
    %v661 = vmul.f32 %v659, %v660
    %v662 = vsub.f32 1.0, %v661
    %v663 = vmul.f32 %v660, %v662
    %v664 = vadd.f32 %v660, %v663
    %vm665 = vweird.f32 %v659
    %vm666 = vweird.f32 %v660
    %vm667 = vmor %vm665, %vm666
    %v668 = vsel %vm667, %v660, %v664
    %v669 = vand.u32 2147483647, %v659
    %vm670 = vcmp.eq.f32.partialorder %v669, 8.507059e+37
    %v671 = vand.u32 %v659, 2147483648
    %v672 = vor.u32 1.1754944e-38, %v671
    %v673 = vsel %vm670, %v672, %v668
    %v674 = vmul.f32 1.0, %v673
    %675 = vmatpush.msra.mxu0 0.0
    %676 = vmatpush.msra.mxu0 0.0
    %677 = vmatpush.msra.mxu0 0.0
    %678 = vmatpush.msra.mxu0 0.0
    %679 = vmatpush.msra.mxu0 0.0
    %680 = vmatpush.msra.mxu0 0.0
    %681 = vmatpush.msra.mxu0 0.0
    %682 = vmatpush.msra.mxu0 0.0
    %683 = vmatpush.msra.mxu0 0.0
    %684 = vmatpush.msra.mxu0 0.0
    %685 = vmatpush.msra.mxu0 0.0
    %686 = vmatpush.msra.mxu0 0.0
    %687 = vmatpush.msra.mxu0 %v78
    %688 = vmatpush.msra.mxu0 %v77
    %689 = vmatpush.msra.mxu0 %v76
    %690 = vmatpush.msra.mxu0 %v75
    %691 = vmatmul.f32.gmra.mxu0 %v593
    %v692 = vpop.f32.mrf.mxu0
    %v693 = vadd.f32 %v96, %v692
    %694 = vdwg.mxu0
    %v695 = vmul.f32 %v654, %v693
    %v696 = vadd.f32 %v585, %v695
    %v697 = vtanh.pop %v696
    %v698 = vsub.f32 1.0, %v674
    %v699 = vmul.f32 %v698, %v697
    %v700 = vmul.f32 %v674, %v462
    %v701 = vadd.f32 %v699, %v700
    %v702 = vsel %vm114, %v571, 0
    %704 = vmatpush.msra.mxu0 0.0
    %705 = vmatpush.msra.mxu0 0.0
    %706 = vmatpush.msra.mxu0 0.0
    %707 = vmatpush.msra.mxu0 0.0
    %708 = vmatpush.msra.mxu0 0.0
    %709 = vmatpush.msra.mxu0 0.0
    %710 = vmatpush.msra.mxu0 0.0
    %711 = vmatpush.msra.mxu0 0.0
    %712 = vmatpush.msra.mxu0 0.0
    %713 = vmatpush.msra.mxu0 0.0
    %714 = vmatpush.msra.mxu0 0.0
    %715 = vmatpush.msra.mxu0 0.0
    %716 = vmatpush.msra.mxu0 %v83
    %717 = vmatpush.msra.mxu0 %v82
    %718 = vmatpush.msra.mxu0 %v81
    %719 = vmatpush.msra.mxu0 %v80
    %720 = vmatmul.f32.gmra.mxu0 %v702
    %v721 = vpop.f32.mrf.mxu0
    %v722 = vadd.f32 0.0, %v721
    %723 = vdwg.mxu0
    %724 = vmatpush.msra.mxu0 0.0
    %725 = vmatpush.msra.mxu0 0.0
    %726 = vmatpush.msra.mxu0 0.0
    %727 = vmatpush.msra.mxu0 0.0
    %728 = vmatpush.msra.mxu0 0.0
    %729 = vmatpush.msra.mxu0 0.0
    %730 = vmatpush.msra.mxu0 0.0
    %731 = vmatpush.msra.mxu0 0.0
    %732 = vmatpush.msra.mxu0 0.0
    %733 = vmatpush.msra.mxu0 0.0
    %734 = vmatpush.msra.mxu0 0.0
    %735 = vmatpush.msra.mxu0 0.0
    %736 = vmatpush.msra.mxu0 %v88
    %737 = vmatpush.msra.mxu0 %v87
    %738 = vmatpush.msra.mxu0 %v86
    %739 = vmatpush.msra.mxu0 %v85
    %740 = vmatmul.f32.gmra.mxu0 %v702
    %v741 = vpop.f32.mrf.mxu0
    %v742 = vadd.f32 0.0, %v741
    %743 = vdwg.mxu0
    %v744 = vadd.f32 %v587, %v722
    %v745 = vxor.u32 %v744, 2147483648
    %v746 = vmul.f32 %v745, 1.442695
    %v747 = vpow.pop %v746
    %v748 = vadd.f32 %v747, 1.0
    %v749 = vrcp.pop %v748
    %v750 = vmul.f32 %v748, %v749
    %v751 = vsub.f32 1.0, %v750
    %v752 = vmul.f32 %v749, %v751
    %v753 = vadd.f32 %v749, %v752
    %vm754 = vweird.f32 %v748
    %vm755 = vweird.f32 %v749
    %vm756 = vmor %vm754, %vm755
    %v757 = vsel %vm756, %v749, %v753
    %v758 = vand.u32 2147483647, %v748
    %vm759 = vcmp.eq.f32.partialorder %v758, 8.507059e+37
    %v760 = vand.u32 %v748, 2147483648
    %v761 = vor.u32 1.1754944e-38, %v760
    %v762 = vsel %vm759, %v761, %v757
    %v763 = vmul.f32 1.0, %v762
    %v764 = vadd.f32 %v589, %v742
    %v765 = vxor.u32 %v764, 2147483648
    %v766 = vmul.f32 %v765, 1.442695
    %v767 = vpow.pop %v766
    %v768 = vadd.f32 %v767, 1.0
    %v769 = vrcp.pop %v768
    %v770 = vmul.f32 %v768, %v769
    %v771 = vsub.f32 1.0, %v770
    %v772 = vmul.f32 %v769, %v771
    %v773 = vadd.f32 %v769, %v772
    %vm774 = vweird.f32 %v768
    %vm775 = vweird.f32 %v769
    %vm776 = vmor %vm774, %vm775
    %v777 = vsel %vm776, %v769, %v773
    %v778 = vand.u32 2147483647, %v768
    %vm779 = vcmp.eq.f32.partialorder %v778, 8.507059e+37
    %v780 = vand.u32 %v768, 2147483648
    %v781 = vor.u32 1.1754944e-38, %v780
    %v782 = vsel %vm779, %v781, %v777
    %v783 = vmul.f32 1.0, %v782
    %784 = vmatpush.msra.mxu0 0.0
    %785 = vmatpush.msra.mxu0 0.0
    %786 = vmatpush.msra.mxu0 0.0
    %787 = vmatpush.msra.mxu0 0.0
    %788 = vmatpush.msra.mxu0 0.0
    %789 = vmatpush.msra.mxu0 0.0
    %790 = vmatpush.msra.mxu0 0.0
    %791 = vmatpush.msra.mxu0 0.0
    %792 = vmatpush.msra.mxu0 0.0
    %793 = vmatpush.msra.mxu0 0.0
    %794 = vmatpush.msra.mxu0 0.0
    %795 = vmatpush.msra.mxu0 0.0
    %796 = vmatpush.msra.mxu0 %v93
    %797 = vmatpush.msra.mxu0 %v92
    %798 = vmatpush.msra.mxu0 %v91
    %799 = vmatpush.msra.mxu0 %v90
    %800 = vmatmul.f32.gmra.mxu0 %v702
    %v801 = vpop.f32.mrf.mxu0
    %v802 = vadd.f32 %v101, %v801
    %803 = vdwg.mxu0
    %v804 = vmul.f32 %v763, %v802
    %v805 = vadd.f32 %v591, %v804
    %v806 = vtanh.pop %v805
    %v807 = vsub.f32 1.0, %v783
    %v808 = vmul.f32 %v807, %v806
    %v809 = vmul.f32 %v783, %v571
    %v810 = vadd.f32 %v808, %v809
    %s811 = scalar_lea.vmem [#allocation8], 4
    %812 = vst.msk [vmem:[%s811] sm:$0x3] %vm332, %v701
    %814 = vrot.lane.b32.xlu0 %v810, 32
    %v815 = vpop.permute.xlu0 %814
    %s817 = scalar_lea.vmem [#allocation8], 10
    %818 = vst.msk [vmem:[%s817] sm:$0x3] %vm339, %v815
    %s819 = scalar_lea.vmem [#allocation2], 6
    %v820 = vld [vmem:[%s819] sm:$0x3]
    %s821 = scalar_lea.vmem [#allocation2], 22
    %v822 = vld [vmem:[%s821] sm:$0x3]
    %s823 = scalar_lea.vmem [#allocation2], 38
    %v824 = vld [vmem:[%s823] sm:$0x3]
    %s825 = scalar_lea.vmem [#allocation2], 56
    %v826 = vld [vmem:[%s825] sm:$0x3]
    %s827 = scalar_lea.vmem [#allocation2], 72
    %v828 = vld [vmem:[%s827] sm:$0x3]
    %s829 = scalar_lea.vmem [#allocation2], 88
    %v830 = vld [vmem:[%s829] sm:$0x3]
    %v832 = vsel %vm114, %v701, 0
    %834 = vmatpush.msra.mxu0 0.0
    %835 = vmatpush.msra.mxu0 0.0
    %836 = vmatpush.msra.mxu0 0.0
    %837 = vmatpush.msra.mxu0 0.0
    %838 = vmatpush.msra.mxu0 0.0
    %839 = vmatpush.msra.mxu0 0.0
    %840 = vmatpush.msra.mxu0 0.0
    %841 = vmatpush.msra.mxu0 0.0
    %842 = vmatpush.msra.mxu0 0.0
    %843 = vmatpush.msra.mxu0 0.0
    %844 = vmatpush.msra.mxu0 0.0
    %845 = vmatpush.msra.mxu0 0.0
    %846 = vmatpush.msra.mxu0 %v68
    %847 = vmatpush.msra.mxu0 %v67
    %848 = vmatpush.msra.mxu0 %v66
    %849 = vmatpush.msra.mxu0 %v65
    %850 = vmatmul.f32.gmra.mxu0 %v832
    %v851 = vpop.f32.mrf.mxu0
    %v852 = vadd.f32 0.0, %v851
    %853 = vdwg.mxu0
    %854 = vmatpush.msra.mxu0 0.0
    %855 = vmatpush.msra.mxu0 0.0
    %856 = vmatpush.msra.mxu0 0.0
    %857 = vmatpush.msra.mxu0 0.0
    %858 = vmatpush.msra.mxu0 0.0
    %859 = vmatpush.msra.mxu0 0.0
    %860 = vmatpush.msra.mxu0 0.0
    %861 = vmatpush.msra.mxu0 0.0
    %862 = vmatpush.msra.mxu0 0.0
    %863 = vmatpush.msra.mxu0 0.0
    %864 = vmatpush.msra.mxu0 0.0
    %865 = vmatpush.msra.mxu0 0.0
    %866 = vmatpush.msra.mxu0 %v73
    %867 = vmatpush.msra.mxu0 %v72
    %868 = vmatpush.msra.mxu0 %v71
    %869 = vmatpush.msra.mxu0 %v70
    %870 = vmatmul.f32.gmra.mxu0 %v832
    %v871 = vpop.f32.mrf.mxu0
    %v872 = vadd.f32 0.0, %v871
    %873 = vdwg.mxu0
    %v874 = vadd.f32 %v820, %v852
    %v875 = vxor.u32 %v874, 2147483648
    %v876 = vmul.f32 %v875, 1.442695
    %v877 = vpow.pop %v876
    %v878 = vadd.f32 %v877, 1.0
    %v879 = vrcp.pop %v878
    %v880 = vmul.f32 %v878, %v879
    %v881 = vsub.f32 1.0, %v880
    %v882 = vmul.f32 %v879, %v881
    %v883 = vadd.f32 %v879, %v882
    %vm884 = vweird.f32 %v878
    %vm885 = vweird.f32 %v879
    %vm886 = vmor %vm884, %vm885
    %v887 = vsel %vm886, %v879, %v883
    %v888 = vand.u32 2147483647, %v878
    %vm889 = vcmp.eq.f32.partialorder %v888, 8.507059e+37
    %v890 = vand.u32 %v878, 2147483648
    %v891 = vor.u32 1.1754944e-38, %v890
    %v892 = vsel %vm889, %v891, %v887
    %v893 = vmul.f32 1.0, %v892
    %v894 = vadd.f32 %v822, %v872
    %v895 = vxor.u32 %v894, 2147483648
    %v896 = vmul.f32 %v895, 1.442695
    %v897 = vpow.pop %v896
    %v898 = vadd.f32 %v897, 1.0
    %v899 = vrcp.pop %v898
    %v900 = vmul.f32 %v898, %v899
    %v901 = vsub.f32 1.0, %v900
    %v902 = vmul.f32 %v899, %v901
    %v903 = vadd.f32 %v899, %v902
    %vm904 = vweird.f32 %v898
    %vm905 = vweird.f32 %v899
    %vm906 = vmor %vm904, %vm905
    %v907 = vsel %vm906, %v899, %v903
    %v908 = vand.u32 2147483647, %v898
    %vm909 = vcmp.eq.f32.partialorder %v908, 8.507059e+37
    %v910 = vand.u32 %v898, 2147483648
    %v911 = vor.u32 1.1754944e-38, %v910
    %v912 = vsel %vm909, %v911, %v907
    %v913 = vmul.f32 1.0, %v912
    %914 = vmatpush.msra.mxu0 0.0
    %915 = vmatpush.msra.mxu0 0.0
    %916 = vmatpush.msra.mxu0 0.0
    %917 = vmatpush.msra.mxu0 0.0
    %918 = vmatpush.msra.mxu0 0.0
    %919 = vmatpush.msra.mxu0 0.0
    %920 = vmatpush.msra.mxu0 0.0
    %921 = vmatpush.msra.mxu0 0.0
    %922 = vmatpush.msra.mxu0 0.0
    %923 = vmatpush.msra.mxu0 0.0
    %924 = vmatpush.msra.mxu0 0.0
    %925 = vmatpush.msra.mxu0 0.0
    %926 = vmatpush.msra.mxu0 %v78
    %927 = vmatpush.msra.mxu0 %v77
    %928 = vmatpush.msra.mxu0 %v76
    %929 = vmatpush.msra.mxu0 %v75
    %930 = vmatmul.f32.gmra.mxu0 %v832
    %v931 = vpop.f32.mrf.mxu0
    %v932 = vadd.f32 %v96, %v931
    %933 = vdwg.mxu0
    %v934 = vmul.f32 %v893, %v932
    %v935 = vadd.f32 %v824, %v934
    %v936 = vtanh.pop %v935
    %v937 = vsub.f32 1.0, %v913
    %v938 = vmul.f32 %v937, %v936
    %v939 = vmul.f32 %v913, %v701
    %v940 = vadd.f32 %v938, %v939
    %v941 = vsel %vm114, %v810, 0
    %943 = vmatpush.msra.mxu0 0.0
    %944 = vmatpush.msra.mxu0 0.0
    %945 = vmatpush.msra.mxu0 0.0
    %946 = vmatpush.msra.mxu0 0.0
    %947 = vmatpush.msra.mxu0 0.0
    %948 = vmatpush.msra.mxu0 0.0
    %949 = vmatpush.msra.mxu0 0.0
    %950 = vmatpush.msra.mxu0 0.0
    %951 = vmatpush.msra.mxu0 0.0
    %952 = vmatpush.msra.mxu0 0.0
    %953 = vmatpush.msra.mxu0 0.0
    %954 = vmatpush.msra.mxu0 0.0
    %955 = vmatpush.msra.mxu0 %v83
    %956 = vmatpush.msra.mxu0 %v82
    %957 = vmatpush.msra.mxu0 %v81
    %958 = vmatpush.msra.mxu0 %v80
    %959 = vmatmul.f32.gmra.mxu0 %v941
    %v960 = vpop.f32.mrf.mxu0
    %v961 = vadd.f32 0.0, %v960
    %962 = vdwg.mxu0
    %963 = vmatpush.msra.mxu0 0.0
    %964 = vmatpush.msra.mxu0 0.0
    %965 = vmatpush.msra.mxu0 0.0
    %966 = vmatpush.msra.mxu0 0.0
    %967 = vmatpush.msra.mxu0 0.0
    %968 = vmatpush.msra.mxu0 0.0
    %969 = vmatpush.msra.mxu0 0.0
    %970 = vmatpush.msra.mxu0 0.0
    %971 = vmatpush.msra.mxu0 0.0
    %972 = vmatpush.msra.mxu0 0.0
    %973 = vmatpush.msra.mxu0 0.0
    %974 = vmatpush.msra.mxu0 0.0
    %975 = vmatpush.msra.mxu0 %v88
    %976 = vmatpush.msra.mxu0 %v87
    %977 = vmatpush.msra.mxu0 %v86
    %978 = vmatpush.msra.mxu0 %v85
    %979 = vmatmul.f32.gmra.mxu0 %v941
    %v980 = vpop.f32.mrf.mxu0
    %v981 = vadd.f32 0.0, %v980
    %982 = vdwg.mxu0
    %v983 = vadd.f32 %v826, %v961
    %v984 = vxor.u32 %v983, 2147483648
    %v985 = vmul.f32 %v984, 1.442695
    %v986 = vpow.pop %v985
    %v987 = vadd.f32 %v986, 1.0
    %v988 = vrcp.pop %v987
    %v989 = vmul.f32 %v987, %v988
    %v990 = vsub.f32 1.0, %v989
    %v991 = vmul.f32 %v988, %v990
    %v992 = vadd.f32 %v988, %v991
    %vm993 = vweird.f32 %v987
    %vm994 = vweird.f32 %v988
    %vm995 = vmor %vm993, %vm994
    %v996 = vsel %vm995, %v988, %v992
    %v997 = vand.u32 2147483647, %v987
    %vm998 = vcmp.eq.f32.partialorder %v997, 8.507059e+37
    %v999 = vand.u32 %v987, 2147483648
    %v1000 = vor.u32 1.1754944e-38, %v999
    %v1001 = vsel %vm998, %v1000, %v996
    %v1002 = vmul.f32 1.0, %v1001
    %v1003 = vadd.f32 %v828, %v981
    %v1004 = vxor.u32 %v1003, 2147483648
    %v1005 = vmul.f32 %v1004, 1.442695
    %v1006 = vpow.pop %v1005
    %v1007 = vadd.f32 %v1006, 1.0
    %v1008 = vrcp.pop %v1007
    %v1009 = vmul.f32 %v1007, %v1008
    %v1010 = vsub.f32 1.0, %v1009
    %v1011 = vmul.f32 %v1008, %v1010
    %v1012 = vadd.f32 %v1008, %v1011
    %vm1013 = vweird.f32 %v1007
    %vm1014 = vweird.f32 %v1008
    %vm1015 = vmor %vm1013, %vm1014
    %v1016 = vsel %vm1015, %v1008, %v1012
    %v1017 = vand.u32 2147483647, %v1007
    %vm1018 = vcmp.eq.f32.partialorder %v1017, 8.507059e+37
    %v1019 = vand.u32 %v1007, 2147483648
    %v1020 = vor.u32 1.1754944e-38, %v1019
    %v1021 = vsel %vm1018, %v1020, %v1016
    %v1022 = vmul.f32 1.0, %v1021
    %1023 = vmatpush.msra.mxu0 0.0
    %1024 = vmatpush.msra.mxu0 0.0
    %1025 = vmatpush.msra.mxu0 0.0
    %1026 = vmatpush.msra.mxu0 0.0
    %1027 = vmatpush.msra.mxu0 0.0
    %1028 = vmatpush.msra.mxu0 0.0
    %1029 = vmatpush.msra.mxu0 0.0
    %1030 = vmatpush.msra.mxu0 0.0
    %1031 = vmatpush.msra.mxu0 0.0
    %1032 = vmatpush.msra.mxu0 0.0
    %1033 = vmatpush.msra.mxu0 0.0
    %1034 = vmatpush.msra.mxu0 0.0
    %1035 = vmatpush.msra.mxu0 %v93
    %1036 = vmatpush.msra.mxu0 %v92
    %1037 = vmatpush.msra.mxu0 %v91
    %1038 = vmatpush.msra.mxu0 %v90
    %1039 = vmatmul.f32.gmra.mxu0 %v941
    %v1040 = vpop.f32.mrf.mxu0
    %v1041 = vadd.f32 %v101, %v1040
    %1042 = vdwg.mxu0
    %v1043 = vmul.f32 %v1002, %v1041
    %v1044 = vadd.f32 %v830, %v1043
    %v1045 = vtanh.pop %v1044
    %v1046 = vsub.f32 1.0, %v1022
    %v1047 = vmul.f32 %v1046, %v1045
    %v1048 = vmul.f32 %v1022, %v810
    %v1049 = vadd.f32 %v1047, %v1048
    %s1050 = scalar_lea.vmem [#allocation8], 6
    %1051 = vst.msk [vmem:[%s1050] sm:$0x3] %vm332, %v940
    %1053 = vrot.lane.b32.xlu0 %v1049, 32
    %v1054 = vpop.permute.xlu0 %1053
    %s1056 = scalar_lea.vmem [#allocation8], 8
    %1057 = vst.msk [vmem:[%s1056] sm:$0x3] %vm339, %v1054
    %s1058 = scalar_lea.vmem [#allocation2], 8
    %v1059 = vld [vmem:[%s1058] sm:$0x3]
    %s1060 = scalar_lea.vmem [#allocation2], 24
    %v1061 = vld [vmem:[%s1060] sm:$0x3]
    %s1062 = scalar_lea.vmem [#allocation2], 40
    %v1063 = vld [vmem:[%s1062] sm:$0x3]
    %s1064 = scalar_lea.vmem [#allocation2], 54
    %v1065 = vld [vmem:[%s1064] sm:$0x3]
    %s1066 = scalar_lea.vmem [#allocation2], 70
    %v1067 = vld [vmem:[%s1066] sm:$0x3]
    %s1068 = scalar_lea.vmem [#allocation2], 86
    %v1069 = vld [vmem:[%s1068] sm:$0x3]
    %v1071 = vsel %vm114, %v940, 0
    %1073 = vmatpush.msra.mxu0 0.0
    %1074 = vmatpush.msra.mxu0 0.0
    %1075 = vmatpush.msra.mxu0 0.0
    %1076 = vmatpush.msra.mxu0 0.0
    %1077 = vmatpush.msra.mxu0 0.0
    %1078 = vmatpush.msra.mxu0 0.0
    %1079 = vmatpush.msra.mxu0 0.0
    %1080 = vmatpush.msra.mxu0 0.0
    %1081 = vmatpush.msra.mxu0 0.0
    %1082 = vmatpush.msra.mxu0 0.0
    %1083 = vmatpush.msra.mxu0 0.0
    %1084 = vmatpush.msra.mxu0 0.0
    %1085 = vmatpush.msra.mxu0 %v68
    %1086 = vmatpush.msra.mxu0 %v67
    %1087 = vmatpush.msra.mxu0 %v66
    %1088 = vmatpush.msra.mxu0 %v65
    %1089 = vmatmul.f32.gmra.mxu0 %v1071
    %v1090 = vpop.f32.mrf.mxu0
    %v1091 = vadd.f32 0.0, %v1090
    %1092 = vdwg.mxu0
    %1093 = vmatpush.msra.mxu0 0.0
    %1094 = vmatpush.msra.mxu0 0.0
    %1095 = vmatpush.msra.mxu0 0.0
    %1096 = vmatpush.msra.mxu0 0.0
    %1097 = vmatpush.msra.mxu0 0.0
    %1098 = vmatpush.msra.mxu0 0.0
    %1099 = vmatpush.msra.mxu0 0.0
    %1100 = vmatpush.msra.mxu0 0.0
    %1101 = vmatpush.msra.mxu0 0.0
    %1102 = vmatpush.msra.mxu0 0.0
    %1103 = vmatpush.msra.mxu0 0.0
    %1104 = vmatpush.msra.mxu0 0.0
    %1105 = vmatpush.msra.mxu0 %v73
    %1106 = vmatpush.msra.mxu0 %v72
    %1107 = vmatpush.msra.mxu0 %v71
    %1108 = vmatpush.msra.mxu0 %v70
    %1109 = vmatmul.f32.gmra.mxu0 %v1071
    %v1110 = vpop.f32.mrf.mxu0
    %v1111 = vadd.f32 0.0, %v1110
    %1112 = vdwg.mxu0
    %v1113 = vadd.f32 %v1059, %v1091
    %v1114 = vxor.u32 %v1113, 2147483648
    %v1115 = vmul.f32 %v1114, 1.442695
    %v1116 = vpow.pop %v1115
    %v1117 = vadd.f32 %v1116, 1.0
    %v1118 = vrcp.pop %v1117
    %v1119 = vmul.f32 %v1117, %v1118
    %v1120 = vsub.f32 1.0, %v1119
    %v1121 = vmul.f32 %v1118, %v1120
    %v1122 = vadd.f32 %v1118, %v1121
    %vm1123 = vweird.f32 %v1117
    %vm1124 = vweird.f32 %v1118
    %vm1125 = vmor %vm1123, %vm1124
    %v1126 = vsel %vm1125, %v1118, %v1122
    %v1127 = vand.u32 2147483647, %v1117
    %vm1128 = vcmp.eq.f32.partialorder %v1127, 8.507059e+37
    %v1129 = vand.u32 %v1117, 2147483648
    %v1130 = vor.u32 1.1754944e-38, %v1129
    %v1131 = vsel %vm1128, %v1130, %v1126
    %v1132 = vmul.f32 1.0, %v1131
    %v1133 = vadd.f32 %v1061, %v1111
    %v1134 = vxor.u32 %v1133, 2147483648
    %v1135 = vmul.f32 %v1134, 1.442695
    %v1136 = vpow.pop %v1135
    %v1137 = vadd.f32 %v1136, 1.0
    %v1138 = vrcp.pop %v1137
    %v1139 = vmul.f32 %v1137, %v1138
    %v1140 = vsub.f32 1.0, %v1139
    %v1141 = vmul.f32 %v1138, %v1140
    %v1142 = vadd.f32 %v1138, %v1141
    %vm1143 = vweird.f32 %v1137
    %vm1144 = vweird.f32 %v1138
    %vm1145 = vmor %vm1143, %vm1144
    %v1146 = vsel %vm1145, %v1138, %v1142
    %v1147 = vand.u32 2147483647, %v1137
    %vm1148 = vcmp.eq.f32.partialorder %v1147, 8.507059e+37
    %v1149 = vand.u32 %v1137, 2147483648
    %v1150 = vor.u32 1.1754944e-38, %v1149
    %v1151 = vsel %vm1148, %v1150, %v1146
    %v1152 = vmul.f32 1.0, %v1151
    %1153 = vmatpush.msra.mxu0 0.0
    %1154 = vmatpush.msra.mxu0 0.0
    %1155 = vmatpush.msra.mxu0 0.0
    %1156 = vmatpush.msra.mxu0 0.0
    %1157 = vmatpush.msra.mxu0 0.0
    %1158 = vmatpush.msra.mxu0 0.0
    %1159 = vmatpush.msra.mxu0 0.0
    %1160 = vmatpush.msra.mxu0 0.0
    %1161 = vmatpush.msra.mxu0 0.0
    %1162 = vmatpush.msra.mxu0 0.0
    %1163 = vmatpush.msra.mxu0 0.0
    %1164 = vmatpush.msra.mxu0 0.0
    %1165 = vmatpush.msra.mxu0 %v78
    %1166 = vmatpush.msra.mxu0 %v77
    %1167 = vmatpush.msra.mxu0 %v76
    %1168 = vmatpush.msra.mxu0 %v75
    %1169 = vmatmul.f32.gmra.mxu0 %v1071
    %v1170 = vpop.f32.mrf.mxu0
    %v1171 = vadd.f32 %v96, %v1170
    %1172 = vdwg.mxu0
    %v1173 = vmul.f32 %v1132, %v1171
    %v1174 = vadd.f32 %v1063, %v1173
    %v1175 = vtanh.pop %v1174
    %v1176 = vsub.f32 1.0, %v1152
    %v1177 = vmul.f32 %v1176, %v1175
    %v1178 = vmul.f32 %v1152, %v940
    %v1179 = vadd.f32 %v1177, %v1178
    %v1180 = vsel %vm114, %v1049, 0
    %1182 = vmatpush.msra.mxu0 0.0
    %1183 = vmatpush.msra.mxu0 0.0
    %1184 = vmatpush.msra.mxu0 0.0
    %1185 = vmatpush.msra.mxu0 0.0
    %1186 = vmatpush.msra.mxu0 0.0
    %1187 = vmatpush.msra.mxu0 0.0
    %1188 = vmatpush.msra.mxu0 0.0
    %1189 = vmatpush.msra.mxu0 0.0
    %1190 = vmatpush.msra.mxu0 0.0
    %1191 = vmatpush.msra.mxu0 0.0
    %1192 = vmatpush.msra.mxu0 0.0
    %1193 = vmatpush.msra.mxu0 0.0
    %1194 = vmatpush.msra.mxu0 %v83
    %1195 = vmatpush.msra.mxu0 %v82
    %1196 = vmatpush.msra.mxu0 %v81
    %1197 = vmatpush.msra.mxu0 %v80
    %1198 = vmatmul.f32.gmra.mxu0 %v1180
    %v1199 = vpop.f32.mrf.mxu0
    %v1200 = vadd.f32 0.0, %v1199
    %1201 = vdwg.mxu0
    %1202 = vmatpush.msra.mxu0 0.0
    %1203 = vmatpush.msra.mxu0 0.0
    %1204 = vmatpush.msra.mxu0 0.0
    %1205 = vmatpush.msra.mxu0 0.0
    %1206 = vmatpush.msra.mxu0 0.0
    %1207 = vmatpush.msra.mxu0 0.0
    %1208 = vmatpush.msra.mxu0 0.0
    %1209 = vmatpush.msra.mxu0 0.0
    %1210 = vmatpush.msra.mxu0 0.0
    %1211 = vmatpush.msra.mxu0 0.0
    %1212 = vmatpush.msra.mxu0 0.0
    %1213 = vmatpush.msra.mxu0 0.0
    %1214 = vmatpush.msra.mxu0 %v88
    %1215 = vmatpush.msra.mxu0 %v87
    %1216 = vmatpush.msra.mxu0 %v86
    %1217 = vmatpush.msra.mxu0 %v85
    %1218 = vmatmul.f32.gmra.mxu0 %v1180
    %v1219 = vpop.f32.mrf.mxu0
    %v1220 = vadd.f32 0.0, %v1219
    %1221 = vdwg.mxu0
    %v1222 = vadd.f32 %v1065, %v1200
    %v1223 = vxor.u32 %v1222, 2147483648
    %v1224 = vmul.f32 %v1223, 1.442695
    %v1225 = vpow.pop %v1224
    %v1226 = vadd.f32 %v1225, 1.0
    %v1227 = vrcp.pop %v1226
    %v1228 = vmul.f32 %v1226, %v1227
    %v1229 = vsub.f32 1.0, %v1228
    %v1230 = vmul.f32 %v1227, %v1229
    %v1231 = vadd.f32 %v1227, %v1230
    %vm1232 = vweird.f32 %v1226
    %vm1233 = vweird.f32 %v1227
    %vm1234 = vmor %vm1232, %vm1233
    %v1235 = vsel %vm1234, %v1227, %v1231
    %v1236 = vand.u32 2147483647, %v1226
    %vm1237 = vcmp.eq.f32.partialorder %v1236, 8.507059e+37
    %v1238 = vand.u32 %v1226, 2147483648
    %v1239 = vor.u32 1.1754944e-38, %v1238
    %v1240 = vsel %vm1237, %v1239, %v1235
    %v1241 = vmul.f32 1.0, %v1240
    %v1242 = vadd.f32 %v1067, %v1220
    %v1243 = vxor.u32 %v1242, 2147483648
    %v1244 = vmul.f32 %v1243, 1.442695
    %v1245 = vpow.pop %v1244
    %v1246 = vadd.f32 %v1245, 1.0
    %v1247 = vrcp.pop %v1246
    %v1248 = vmul.f32 %v1246, %v1247
    %v1249 = vsub.f32 1.0, %v1248
    %v1250 = vmul.f32 %v1247, %v1249
    %v1251 = vadd.f32 %v1247, %v1250
    %vm1252 = vweird.f32 %v1246
    %vm1253 = vweird.f32 %v1247
    %vm1254 = vmor %vm1252, %vm1253
    %v1255 = vsel %vm1254, %v1247, %v1251
    %v1256 = vand.u32 2147483647, %v1246
    %vm1257 = vcmp.eq.f32.partialorder %v1256, 8.507059e+37
    %v1258 = vand.u32 %v1246, 2147483648
    %v1259 = vor.u32 1.1754944e-38, %v1258
    %v1260 = vsel %vm1257, %v1259, %v1255
    %v1261 = vmul.f32 1.0, %v1260
    %1262 = vmatpush.msra.mxu0 0.0
    %1263 = vmatpush.msra.mxu0 0.0
    %1264 = vmatpush.msra.mxu0 0.0
    %1265 = vmatpush.msra.mxu0 0.0
    %1266 = vmatpush.msra.mxu0 0.0
    %1267 = vmatpush.msra.mxu0 0.0
    %1268 = vmatpush.msra.mxu0 0.0
    %1269 = vmatpush.msra.mxu0 0.0
    %1270 = vmatpush.msra.mxu0 0.0
    %1271 = vmatpush.msra.mxu0 0.0
    %1272 = vmatpush.msra.mxu0 0.0
    %1273 = vmatpush.msra.mxu0 0.0
    %1274 = vmatpush.msra.mxu0 %v93
    %1275 = vmatpush.msra.mxu0 %v92
    %1276 = vmatpush.msra.mxu0 %v91
    %1277 = vmatpush.msra.mxu0 %v90
    %1278 = vmatmul.f32.gmra.mxu0 %v1180
    %v1279 = vpop.f32.mrf.mxu0
    %v1280 = vadd.f32 %v101, %v1279
    %1281 = vdwg.mxu0
    %v1282 = vmul.f32 %v1241, %v1280
    %v1283 = vadd.f32 %v1069, %v1282
    %v1284 = vtanh.pop %v1283
    %v1285 = vsub.f32 1.0, %v1261
    %v1286 = vmul.f32 %v1285, %v1284
    %v1287 = vmul.f32 %v1261, %v1049
    %v1288 = vadd.f32 %v1286, %v1287
    %1289 = vst.msk [vmem:[%s1056] sm:$0x3] %vm332, %v1179
    %1291 = vrot.lane.b32.xlu0 %v1288, 32
    %v1292 = vpop.permute.xlu0 %1291
    %1294 = vst.msk [vmem:[%s1050] sm:$0x3] %vm339, %v1292
    %s1295 = scalar_lea.vmem [#allocation2], 10
    %v1296 = vld [vmem:[%s1295] sm:$0x3]
    %s1297 = scalar_lea.vmem [#allocation2], 26
    %v1298 = vld [vmem:[%s1297] sm:$0x3]
    %s1299 = scalar_lea.vmem [#allocation2], 42
    %v1300 = vld [vmem:[%s1299] sm:$0x3]
    %s1301 = scalar_lea.vmem [#allocation2], 52
    %v1302 = vld [vmem:[%s1301] sm:$0x3]
    %s1303 = scalar_lea.vmem [#allocation2], 68
    %v1304 = vld [vmem:[%s1303] sm:$0x3]
    %s1305 = scalar_lea.vmem [#allocation2], 84
    %v1306 = vld [vmem:[%s1305] sm:$0x3]
    %v1308 = vsel %vm114, %v1179, 0
    %1310 = vmatpush.msra.mxu0 0.0
    %1311 = vmatpush.msra.mxu0 0.0
    %1312 = vmatpush.msra.mxu0 0.0
    %1313 = vmatpush.msra.mxu0 0.0
    %1314 = vmatpush.msra.mxu0 0.0
    %1315 = vmatpush.msra.mxu0 0.0
    %1316 = vmatpush.msra.mxu0 0.0
    %1317 = vmatpush.msra.mxu0 0.0
    %1318 = vmatpush.msra.mxu0 0.0
    %1319 = vmatpush.msra.mxu0 0.0
    %1320 = vmatpush.msra.mxu0 0.0
    %1321 = vmatpush.msra.mxu0 0.0
    %1322 = vmatpush.msra.mxu0 %v68
    %1323 = vmatpush.msra.mxu0 %v67
    %1324 = vmatpush.msra.mxu0 %v66
    %1325 = vmatpush.msra.mxu0 %v65
    %1326 = vmatmul.f32.gmra.mxu0 %v1308
    %v1327 = vpop.f32.mrf.mxu0
    %v1328 = vadd.f32 0.0, %v1327
    %1329 = vdwg.mxu0
    %1330 = vmatpush.msra.mxu0 0.0
    %1331 = vmatpush.msra.mxu0 0.0
    %1332 = vmatpush.msra.mxu0 0.0
    %1333 = vmatpush.msra.mxu0 0.0
    %1334 = vmatpush.msra.mxu0 0.0
    %1335 = vmatpush.msra.mxu0 0.0
    %1336 = vmatpush.msra.mxu0 0.0
    %1337 = vmatpush.msra.mxu0 0.0
    %1338 = vmatpush.msra.mxu0 0.0
    %1339 = vmatpush.msra.mxu0 0.0
    %1340 = vmatpush.msra.mxu0 0.0
    %1341 = vmatpush.msra.mxu0 0.0
    %1342 = vmatpush.msra.mxu0 %v73
    %1343 = vmatpush.msra.mxu0 %v72
    %1344 = vmatpush.msra.mxu0 %v71
    %1345 = vmatpush.msra.mxu0 %v70
    %1346 = vmatmul.f32.gmra.mxu0 %v1308
    %v1347 = vpop.f32.mrf.mxu0
    %v1348 = vadd.f32 0.0, %v1347
    %1349 = vdwg.mxu0
    %v1350 = vadd.f32 %v1296, %v1328
    %v1351 = vxor.u32 %v1350, 2147483648
    %v1352 = vmul.f32 %v1351, 1.442695
    %v1353 = vpow.pop %v1352
    %v1354 = vadd.f32 %v1353, 1.0
    %v1355 = vrcp.pop %v1354
    %v1356 = vmul.f32 %v1354, %v1355
    %v1357 = vsub.f32 1.0, %v1356
    %v1358 = vmul.f32 %v1355, %v1357
    %v1359 = vadd.f32 %v1355, %v1358
    %vm1360 = vweird.f32 %v1354
    %vm1361 = vweird.f32 %v1355
    %vm1362 = vmor %vm1360, %vm1361
    %v1363 = vsel %vm1362, %v1355, %v1359
    %v1364 = vand.u32 2147483647, %v1354
    %vm1365 = vcmp.eq.f32.partialorder %v1364, 8.507059e+37
    %v1366 = vand.u32 %v1354, 2147483648
    %v1367 = vor.u32 1.1754944e-38, %v1366
    %v1368 = vsel %vm1365, %v1367, %v1363
    %v1369 = vmul.f32 1.0, %v1368
    %v1370 = vadd.f32 %v1298, %v1348
    %v1371 = vxor.u32 %v1370, 2147483648
    %v1372 = vmul.f32 %v1371, 1.442695
    %v1373 = vpow.pop %v1372
    %v1374 = vadd.f32 %v1373, 1.0
    %v1375 = vrcp.pop %v1374
    %v1376 = vmul.f32 %v1374, %v1375
    %v1377 = vsub.f32 1.0, %v1376
    %v1378 = vmul.f32 %v1375, %v1377
    %v1379 = vadd.f32 %v1375, %v1378
    %vm1380 = vweird.f32 %v1374
    %vm1381 = vweird.f32 %v1375
    %vm1382 = vmor %vm1380, %vm1381
    %v1383 = vsel %vm1382, %v1375, %v1379
    %v1384 = vand.u32 2147483647, %v1374
    %vm1385 = vcmp.eq.f32.partialorder %v1384, 8.507059e+37
    %v1386 = vand.u32 %v1374, 2147483648
    %v1387 = vor.u32 1.1754944e-38, %v1386
    %v1388 = vsel %vm1385, %v1387, %v1383
    %v1389 = vmul.f32 1.0, %v1388
    %1390 = vmatpush.msra.mxu0 0.0
    %1391 = vmatpush.msra.mxu0 0.0
    %1392 = vmatpush.msra.mxu0 0.0
    %1393 = vmatpush.msra.mxu0 0.0
    %1394 = vmatpush.msra.mxu0 0.0
    %1395 = vmatpush.msra.mxu0 0.0
    %1396 = vmatpush.msra.mxu0 0.0
    %1397 = vmatpush.msra.mxu0 0.0
    %1398 = vmatpush.msra.mxu0 0.0
    %1399 = vmatpush.msra.mxu0 0.0
    %1400 = vmatpush.msra.mxu0 0.0
    %1401 = vmatpush.msra.mxu0 0.0
    %1402 = vmatpush.msra.mxu0 %v78
    %1403 = vmatpush.msra.mxu0 %v77
    %1404 = vmatpush.msra.mxu0 %v76
    %1405 = vmatpush.msra.mxu0 %v75
    %1406 = vmatmul.f32.gmra.mxu0 %v1308
    %v1407 = vpop.f32.mrf.mxu0
    %v1408 = vadd.f32 %v96, %v1407
    %1409 = vdwg.mxu0
    %v1410 = vmul.f32 %v1369, %v1408
    %v1411 = vadd.f32 %v1300, %v1410
    %v1412 = vtanh.pop %v1411
    %v1413 = vsub.f32 1.0, %v1389
    %v1414 = vmul.f32 %v1413, %v1412
    %v1415 = vmul.f32 %v1389, %v1179
    %v1416 = vadd.f32 %v1414, %v1415
    %v1417 = vsel %vm114, %v1288, 0
    %1419 = vmatpush.msra.mxu0 0.0
    %1420 = vmatpush.msra.mxu0 0.0
    %1421 = vmatpush.msra.mxu0 0.0
    %1422 = vmatpush.msra.mxu0 0.0
    %1423 = vmatpush.msra.mxu0 0.0
    %1424 = vmatpush.msra.mxu0 0.0
    %1425 = vmatpush.msra.mxu0 0.0
    %1426 = vmatpush.msra.mxu0 0.0
    %1427 = vmatpush.msra.mxu0 0.0
    %1428 = vmatpush.msra.mxu0 0.0
    %1429 = vmatpush.msra.mxu0 0.0
    %1430 = vmatpush.msra.mxu0 0.0
    %1431 = vmatpush.msra.mxu0 %v83
    %1432 = vmatpush.msra.mxu0 %v82
    %1433 = vmatpush.msra.mxu0 %v81
    %1434 = vmatpush.msra.mxu0 %v80
    %1435 = vmatmul.f32.gmra.mxu0 %v1417
    %v1436 = vpop.f32.mrf.mxu0
    %v1437 = vadd.f32 0.0, %v1436
    %1438 = vdwg.mxu0
    %1439 = vmatpush.msra.mxu0 0.0
    %1440 = vmatpush.msra.mxu0 0.0
    %1441 = vmatpush.msra.mxu0 0.0
    %1442 = vmatpush.msra.mxu0 0.0
    %1443 = vmatpush.msra.mxu0 0.0
    %1444 = vmatpush.msra.mxu0 0.0
    %1445 = vmatpush.msra.mxu0 0.0
    %1446 = vmatpush.msra.mxu0 0.0
    %1447 = vmatpush.msra.mxu0 0.0
    %1448 = vmatpush.msra.mxu0 0.0
    %1449 = vmatpush.msra.mxu0 0.0
    %1450 = vmatpush.msra.mxu0 0.0
    %1451 = vmatpush.msra.mxu0 %v88
    %1452 = vmatpush.msra.mxu0 %v87
    %1453 = vmatpush.msra.mxu0 %v86
    %1454 = vmatpush.msra.mxu0 %v85
    %1455 = vmatmul.f32.gmra.mxu0 %v1417
    %v1456 = vpop.f32.mrf.mxu0
    %v1457 = vadd.f32 0.0, %v1456
    %1458 = vdwg.mxu0
    %v1459 = vadd.f32 %v1302, %v1437
    %v1460 = vxor.u32 %v1459, 2147483648
    %v1461 = vmul.f32 %v1460, 1.442695
    %v1462 = vpow.pop %v1461
    %v1463 = vadd.f32 %v1462, 1.0
    %v1464 = vrcp.pop %v1463
    %v1465 = vmul.f32 %v1463, %v1464
    %v1466 = vsub.f32 1.0, %v1465
    %v1467 = vmul.f32 %v1464, %v1466
    %v1468 = vadd.f32 %v1464, %v1467
    %vm1469 = vweird.f32 %v1463
    %vm1470 = vweird.f32 %v1464
    %vm1471 = vmor %vm1469, %vm1470
    %v1472 = vsel %vm1471, %v1464, %v1468
    %v1473 = vand.u32 2147483647, %v1463
    %vm1474 = vcmp.eq.f32.partialorder %v1473, 8.507059e+37
    %v1475 = vand.u32 %v1463, 2147483648
    %v1476 = vor.u32 1.1754944e-38, %v1475
    %v1477 = vsel %vm1474, %v1476, %v1472
    %v1478 = vmul.f32 1.0, %v1477
    %v1479 = vadd.f32 %v1304, %v1457
    %v1480 = vxor.u32 %v1479, 2147483648
    %v1481 = vmul.f32 %v1480, 1.442695
    %v1482 = vpow.pop %v1481
    %v1483 = vadd.f32 %v1482, 1.0
    %v1484 = vrcp.pop %v1483
    %v1485 = vmul.f32 %v1483, %v1484
    %v1486 = vsub.f32 1.0, %v1485
    %v1487 = vmul.f32 %v1484, %v1486
    %v1488 = vadd.f32 %v1484, %v1487
    %vm1489 = vweird.f32 %v1483
    %vm1490 = vweird.f32 %v1484
    %vm1491 = vmor %vm1489, %vm1490
    %v1492 = vsel %vm1491, %v1484, %v1488
    %v1493 = vand.u32 2147483647, %v1483
    %vm1494 = vcmp.eq.f32.partialorder %v1493, 8.507059e+37
    %v1495 = vand.u32 %v1483, 2147483648
    %v1496 = vor.u32 1.1754944e-38, %v1495
    %v1497 = vsel %vm1494, %v1496, %v1492
    %v1498 = vmul.f32 1.0, %v1497
    %1499 = vmatpush.msra.mxu0 0.0
    %1500 = vmatpush.msra.mxu0 0.0
    %1501 = vmatpush.msra.mxu0 0.0
    %1502 = vmatpush.msra.mxu0 0.0
    %1503 = vmatpush.msra.mxu0 0.0
    %1504 = vmatpush.msra.mxu0 0.0
    %1505 = vmatpush.msra.mxu0 0.0
    %1506 = vmatpush.msra.mxu0 0.0
    %1507 = vmatpush.msra.mxu0 0.0
    %1508 = vmatpush.msra.mxu0 0.0
    %1509 = vmatpush.msra.mxu0 0.0
    %1510 = vmatpush.msra.mxu0 0.0
    %1511 = vmatpush.msra.mxu0 %v93
    %1512 = vmatpush.msra.mxu0 %v92
    %1513 = vmatpush.msra.mxu0 %v91
    %1514 = vmatpush.msra.mxu0 %v90
    %1515 = vmatmul.f32.gmra.mxu0 %v1417
    %v1516 = vpop.f32.mrf.mxu0
    %v1517 = vadd.f32 %v101, %v1516
    %1518 = vdwg.mxu0
    %v1519 = vmul.f32 %v1478, %v1517
    %v1520 = vadd.f32 %v1306, %v1519
    %v1521 = vtanh.pop %v1520
    %v1522 = vsub.f32 1.0, %v1498
    %v1523 = vmul.f32 %v1522, %v1521
    %v1524 = vmul.f32 %v1498, %v1288
    %v1525 = vadd.f32 %v1523, %v1524
    %1526 = vst.msk [vmem:[%s817] sm:$0x3] %vm332, %v1416
    %1528 = vrot.lane.b32.xlu0 %v1525, 32
    %v1529 = vpop.permute.xlu0 %1528
    %1531 = vst.msk [vmem:[%s811] sm:$0x3] %vm339, %v1529
    %s1532 = scalar_lea.vmem [#allocation2], 12
    %v1533 = vld [vmem:[%s1532] sm:$0x3]
    %s1534 = scalar_lea.vmem [#allocation2], 28
    %v1535 = vld [vmem:[%s1534] sm:$0x3]
    %s1536 = scalar_lea.vmem [#allocation2], 44
    %v1537 = vld [vmem:[%s1536] sm:$0x3]
    %s1538 = scalar_lea.vmem [#allocation2], 50
    %v1539 = vld [vmem:[%s1538] sm:$0x3]
    %s1540 = scalar_lea.vmem [#allocation2], 66
    %v1541 = vld [vmem:[%s1540] sm:$0x3]
    %s1542 = scalar_lea.vmem [#allocation2], 82
    %v1543 = vld [vmem:[%s1542] sm:$0x3]
    %v1545 = vsel %vm114, %v1416, 0
    %1547 = vmatpush.msra.mxu0 0.0
    %1548 = vmatpush.msra.mxu0 0.0
    %1549 = vmatpush.msra.mxu0 0.0
    %1550 = vmatpush.msra.mxu0 0.0
    %1551 = vmatpush.msra.mxu0 0.0
    %1552 = vmatpush.msra.mxu0 0.0
    %1553 = vmatpush.msra.mxu0 0.0
    %1554 = vmatpush.msra.mxu0 0.0
    %1555 = vmatpush.msra.mxu0 0.0
    %1556 = vmatpush.msra.mxu0 0.0
    %1557 = vmatpush.msra.mxu0 0.0
    %1558 = vmatpush.msra.mxu0 0.0
    %1559 = vmatpush.msra.mxu0 %v68
    %1560 = vmatpush.msra.mxu0 %v67
    %1561 = vmatpush.msra.mxu0 %v66
    %1562 = vmatpush.msra.mxu0 %v65
    %1563 = vmatmul.f32.gmra.mxu0 %v1545
    %v1564 = vpop.f32.mrf.mxu0
    %v1565 = vadd.f32 0.0, %v1564
    %1566 = vdwg.mxu0
    %1567 = vmatpush.msra.mxu0 0.0
    %1568 = vmatpush.msra.mxu0 0.0
    %1569 = vmatpush.msra.mxu0 0.0
    %1570 = vmatpush.msra.mxu0 0.0
    %1571 = vmatpush.msra.mxu0 0.0
    %1572 = vmatpush.msra.mxu0 0.0
    %1573 = vmatpush.msra.mxu0 0.0
    %1574 = vmatpush.msra.mxu0 0.0
    %1575 = vmatpush.msra.mxu0 0.0
    %1576 = vmatpush.msra.mxu0 0.0
    %1577 = vmatpush.msra.mxu0 0.0
    %1578 = vmatpush.msra.mxu0 0.0
    %1579 = vmatpush.msra.mxu0 %v73
    %1580 = vmatpush.msra.mxu0 %v72
    %1581 = vmatpush.msra.mxu0 %v71
    %1582 = vmatpush.msra.mxu0 %v70
    %1583 = vmatmul.f32.gmra.mxu0 %v1545
    %v1584 = vpop.f32.mrf.mxu0
    %v1585 = vadd.f32 0.0, %v1584
    %1586 = vdwg.mxu0
    %v1587 = vadd.f32 %v1533, %v1565
    %v1588 = vxor.u32 %v1587, 2147483648
    %v1589 = vmul.f32 %v1588, 1.442695
    %v1590 = vpow.pop %v1589
    %v1591 = vadd.f32 %v1590, 1.0
    %v1592 = vrcp.pop %v1591
    %v1593 = vmul.f32 %v1591, %v1592
    %v1594 = vsub.f32 1.0, %v1593
    %v1595 = vmul.f32 %v1592, %v1594
    %v1596 = vadd.f32 %v1592, %v1595
    %vm1597 = vweird.f32 %v1591
    %vm1598 = vweird.f32 %v1592
    %vm1599 = vmor %vm1597, %vm1598
    %v1600 = vsel %vm1599, %v1592, %v1596
    %v1601 = vand.u32 2147483647, %v1591
    %vm1602 = vcmp.eq.f32.partialorder %v1601, 8.507059e+37
    %v1603 = vand.u32 %v1591, 2147483648
    %v1604 = vor.u32 1.1754944e-38, %v1603
    %v1605 = vsel %vm1602, %v1604, %v1600
    %v1606 = vmul.f32 1.0, %v1605
    %v1607 = vadd.f32 %v1535, %v1585
    %v1608 = vxor.u32 %v1607, 2147483648
    %v1609 = vmul.f32 %v1608, 1.442695
    %v1610 = vpow.pop %v1609
    %v1611 = vadd.f32 %v1610, 1.0
    %v1612 = vrcp.pop %v1611
    %v1613 = vmul.f32 %v1611, %v1612
    %v1614 = vsub.f32 1.0, %v1613
    %v1615 = vmul.f32 %v1612, %v1614
    %v1616 = vadd.f32 %v1612, %v1615
    %vm1617 = vweird.f32 %v1611
    %vm1618 = vweird.f32 %v1612
    %vm1619 = vmor %vm1617, %vm1618
    %v1620 = vsel %vm1619, %v1612, %v1616
    %v1621 = vand.u32 2147483647, %v1611
    %vm1622 = vcmp.eq.f32.partialorder %v1621, 8.507059e+37
    %v1623 = vand.u32 %v1611, 2147483648
    %v1624 = vor.u32 1.1754944e-38, %v1623
    %v1625 = vsel %vm1622, %v1624, %v1620
    %v1626 = vmul.f32 1.0, %v1625
    %1627 = vmatpush.msra.mxu0 0.0
    %1628 = vmatpush.msra.mxu0 0.0
    %1629 = vmatpush.msra.mxu0 0.0
    %1630 = vmatpush.msra.mxu0 0.0
    %1631 = vmatpush.msra.mxu0 0.0
    %1632 = vmatpush.msra.mxu0 0.0
    %1633 = vmatpush.msra.mxu0 0.0
    %1634 = vmatpush.msra.mxu0 0.0
    %1635 = vmatpush.msra.mxu0 0.0
    %1636 = vmatpush.msra.mxu0 0.0
    %1637 = vmatpush.msra.mxu0 0.0
    %1638 = vmatpush.msra.mxu0 0.0
    %1639 = vmatpush.msra.mxu0 %v78
    %1640 = vmatpush.msra.mxu0 %v77
    %1641 = vmatpush.msra.mxu0 %v76
    %1642 = vmatpush.msra.mxu0 %v75
    %1643 = vmatmul.f32.gmra.mxu0 %v1545
    %v1644 = vpop.f32.mrf.mxu0
    %v1645 = vadd.f32 %v96, %v1644
    %1646 = vdwg.mxu0
    %v1647 = vmul.f32 %v1606, %v1645
    %v1648 = vadd.f32 %v1537, %v1647
    %v1649 = vtanh.pop %v1648
    %v1650 = vsub.f32 1.0, %v1626
    %v1651 = vmul.f32 %v1650, %v1649
    %v1652 = vmul.f32 %v1626, %v1416
    %v1653 = vadd.f32 %v1651, %v1652
    %v1654 = vsel %vm114, %v1525, 0
    %1656 = vmatpush.msra.mxu0 0.0
    %1657 = vmatpush.msra.mxu0 0.0
    %1658 = vmatpush.msra.mxu0 0.0
    %1659 = vmatpush.msra.mxu0 0.0
    %1660 = vmatpush.msra.mxu0 0.0
    %1661 = vmatpush.msra.mxu0 0.0
    %1662 = vmatpush.msra.mxu0 0.0
    %1663 = vmatpush.msra.mxu0 0.0
    %1664 = vmatpush.msra.mxu0 0.0
    %1665 = vmatpush.msra.mxu0 0.0
    %1666 = vmatpush.msra.mxu0 0.0
    %1667 = vmatpush.msra.mxu0 0.0
    %1668 = vmatpush.msra.mxu0 %v83
    %1669 = vmatpush.msra.mxu0 %v82
    %1670 = vmatpush.msra.mxu0 %v81
    %1671 = vmatpush.msra.mxu0 %v80
    %1672 = vmatmul.f32.gmra.mxu0 %v1654
    %v1673 = vpop.f32.mrf.mxu0
    %v1674 = vadd.f32 0.0, %v1673
    %1675 = vdwg.mxu0
    %1676 = vmatpush.msra.mxu0 0.0
    %1677 = vmatpush.msra.mxu0 0.0
    %1678 = vmatpush.msra.mxu0 0.0
    %1679 = vmatpush.msra.mxu0 0.0
    %1680 = vmatpush.msra.mxu0 0.0
    %1681 = vmatpush.msra.mxu0 0.0
    %1682 = vmatpush.msra.mxu0 0.0
    %1683 = vmatpush.msra.mxu0 0.0
    %1684 = vmatpush.msra.mxu0 0.0
    %1685 = vmatpush.msra.mxu0 0.0
    %1686 = vmatpush.msra.mxu0 0.0
    %1687 = vmatpush.msra.mxu0 0.0
    %1688 = vmatpush.msra.mxu0 %v88
    %1689 = vmatpush.msra.mxu0 %v87
    %1690 = vmatpush.msra.mxu0 %v86
    %1691 = vmatpush.msra.mxu0 %v85
    %1692 = vmatmul.f32.gmra.mxu0 %v1654
    %v1693 = vpop.f32.mrf.mxu0
    %v1694 = vadd.f32 0.0, %v1693
    %1695 = vdwg.mxu0
    %v1696 = vadd.f32 %v1539, %v1674
    %v1697 = vxor.u32 %v1696, 2147483648
    %v1698 = vmul.f32 %v1697, 1.442695
    %v1699 = vpow.pop %v1698
    %v1700 = vadd.f32 %v1699, 1.0
    %v1701 = vrcp.pop %v1700
    %v1702 = vmul.f32 %v1700, %v1701
    %v1703 = vsub.f32 1.0, %v1702
    %v1704 = vmul.f32 %v1701, %v1703
    %v1705 = vadd.f32 %v1701, %v1704
    %vm1706 = vweird.f32 %v1700
    %vm1707 = vweird.f32 %v1701
    %vm1708 = vmor %vm1706, %vm1707
    %v1709 = vsel %vm1708, %v1701, %v1705
    %v1710 = vand.u32 2147483647, %v1700
    %vm1711 = vcmp.eq.f32.partialorder %v1710, 8.507059e+37
    %v1712 = vand.u32 %v1700, 2147483648
    %v1713 = vor.u32 1.1754944e-38, %v1712
    %v1714 = vsel %vm1711, %v1713, %v1709
    %v1715 = vmul.f32 1.0, %v1714
    %v1716 = vadd.f32 %v1541, %v1694
    %v1717 = vxor.u32 %v1716, 2147483648
    %v1718 = vmul.f32 %v1717, 1.442695
    %v1719 = vpow.pop %v1718
    %v1720 = vadd.f32 %v1719, 1.0
    %v1721 = vrcp.pop %v1720
    %v1722 = vmul.f32 %v1720, %v1721
    %v1723 = vsub.f32 1.0, %v1722
    %v1724 = vmul.f32 %v1721, %v1723
    %v1725 = vadd.f32 %v1721, %v1724
    %vm1726 = vweird.f32 %v1720
    %vm1727 = vweird.f32 %v1721
    %vm1728 = vmor %vm1726, %vm1727
    %v1729 = vsel %vm1728, %v1721, %v1725
    %v1730 = vand.u32 2147483647, %v1720
    %vm1731 = vcmp.eq.f32.partialorder %v1730, 8.507059e+37
    %v1732 = vand.u32 %v1720, 2147483648
    %v1733 = vor.u32 1.1754944e-38, %v1732
    %v1734 = vsel %vm1731, %v1733, %v1729
    %v1735 = vmul.f32 1.0, %v1734
    %1736 = vmatpush.msra.mxu0 0.0
    %1737 = vmatpush.msra.mxu0 0.0
    %1738 = vmatpush.msra.mxu0 0.0
    %1739 = vmatpush.msra.mxu0 0.0
    %1740 = vmatpush.msra.mxu0 0.0
    %1741 = vmatpush.msra.mxu0 0.0
    %1742 = vmatpush.msra.mxu0 0.0
    %1743 = vmatpush.msra.mxu0 0.0
    %1744 = vmatpush.msra.mxu0 0.0
    %1745 = vmatpush.msra.mxu0 0.0
    %1746 = vmatpush.msra.mxu0 0.0
    %1747 = vmatpush.msra.mxu0 0.0
    %1748 = vmatpush.msra.mxu0 %v93
    %1749 = vmatpush.msra.mxu0 %v92
    %1750 = vmatpush.msra.mxu0 %v91
    %1751 = vmatpush.msra.mxu0 %v90
    %1752 = vmatmul.f32.gmra.mxu0 %v1654
    %v1753 = vpop.f32.mrf.mxu0
    %v1754 = vadd.f32 %v101, %v1753
    %1755 = vdwg.mxu0
    %v1756 = vmul.f32 %v1715, %v1754
    %v1757 = vadd.f32 %v1543, %v1756
    %v1758 = vtanh.pop %v1757
    %v1759 = vsub.f32 1.0, %v1735
    %v1760 = vmul.f32 %v1759, %v1758
    %v1761 = vmul.f32 %v1735, %v1525
    %v1762 = vadd.f32 %v1760, %v1761
    %1763 = vst.msk [vmem:[%s578] sm:$0x3] %vm332, %v1653
    %1765 = vrot.lane.b32.xlu0 %v1762, 32
    %v1766 = vpop.permute.xlu0 %1765
    %1768 = vst.msk [vmem:[%s572] sm:$0x3] %vm339, %v1766
    %s1769 = scalar_lea.vmem [#allocation2], 14
    %v1770 = vld [vmem:[%s1769] sm:$0x3]
    %s1771 = scalar_lea.vmem [#allocation2], 30
    %v1772 = vld [vmem:[%s1771] sm:$0x3]
    %s1773 = scalar_lea.vmem [#allocation2], 46
    %v1774 = vld [vmem:[%s1773] sm:$0x3]
    %s1775 = scalar_lea.vmem [#allocation2], 48
    %v1776 = vld [vmem:[%s1775] sm:$0x3]
    %s1777 = scalar_lea.vmem [#allocation2], 64
    %v1778 = vld [vmem:[%s1777] sm:$0x3]
    %s1779 = scalar_lea.vmem [#allocation2], 80
    %v1780 = vld [vmem:[%s1779] sm:$0x3]
    %v1782 = vsel %vm114, %v1653, 0
    %1784 = vmatpush.msra.mxu0 0.0
    %1785 = vmatpush.msra.mxu0 0.0
    %1786 = vmatpush.msra.mxu0 0.0
    %1787 = vmatpush.msra.mxu0 0.0
    %1788 = vmatpush.msra.mxu0 0.0
    %1789 = vmatpush.msra.mxu0 0.0
    %1790 = vmatpush.msra.mxu0 0.0
    %1791 = vmatpush.msra.mxu0 0.0
    %1792 = vmatpush.msra.mxu0 0.0
    %1793 = vmatpush.msra.mxu0 0.0
    %1794 = vmatpush.msra.mxu0 0.0
    %1795 = vmatpush.msra.mxu0 0.0
    %1796 = vmatpush.msra.mxu0 %v68
    %1797 = vmatpush.msra.mxu0 %v67
    %1798 = vmatpush.msra.mxu0 %v66
    %1799 = vmatpush.msra.mxu0 %v65
    %1800 = vmatmul.f32.gmra.mxu0 %v1782
    %v1801 = vpop.f32.mrf.mxu0
    %v1802 = vadd.f32 0.0, %v1801
    %1803 = vdwg.mxu0
    %1804 = vmatpush.msra.mxu0 0.0
    %1805 = vmatpush.msra.mxu0 0.0
    %1806 = vmatpush.msra.mxu0 0.0
    %1807 = vmatpush.msra.mxu0 0.0
    %1808 = vmatpush.msra.mxu0 0.0
    %1809 = vmatpush.msra.mxu0 0.0
    %1810 = vmatpush.msra.mxu0 0.0
    %1811 = vmatpush.msra.mxu0 0.0
    %1812 = vmatpush.msra.mxu0 0.0
    %1813 = vmatpush.msra.mxu0 0.0
    %1814 = vmatpush.msra.mxu0 0.0
    %1815 = vmatpush.msra.mxu0 0.0
    %1816 = vmatpush.msra.mxu0 %v73
    %1817 = vmatpush.msra.mxu0 %v72
    %1818 = vmatpush.msra.mxu0 %v71
    %1819 = vmatpush.msra.mxu0 %v70
    %1820 = vmatmul.f32.gmra.mxu0 %v1782
    %v1821 = vpop.f32.mrf.mxu0
    %v1822 = vadd.f32 0.0, %v1821
    %1823 = vdwg.mxu0
    %v1824 = vadd.f32 %v1770, %v1802
    %v1825 = vxor.u32 %v1824, 2147483648
    %v1826 = vmul.f32 %v1825, 1.442695
    %v1827 = vpow.pop %v1826
    %v1828 = vadd.f32 %v1827, 1.0
    %v1829 = vrcp.pop %v1828
    %v1830 = vmul.f32 %v1828, %v1829
    %v1831 = vsub.f32 1.0, %v1830
    %v1832 = vmul.f32 %v1829, %v1831
    %v1833 = vadd.f32 %v1829, %v1832
    %vm1834 = vweird.f32 %v1828
    %vm1835 = vweird.f32 %v1829
    %vm1836 = vmor %vm1834, %vm1835
    %v1837 = vsel %vm1836, %v1829, %v1833
    %v1838 = vand.u32 2147483647, %v1828
    %vm1839 = vcmp.eq.f32.partialorder %v1838, 8.507059e+37
    %v1840 = vand.u32 %v1828, 2147483648
    %v1841 = vor.u32 1.1754944e-38, %v1840
    %v1842 = vsel %vm1839, %v1841, %v1837
    %v1843 = vmul.f32 1.0, %v1842
    %v1844 = vadd.f32 %v1772, %v1822
    %v1845 = vxor.u32 %v1844, 2147483648
    %v1846 = vmul.f32 %v1845, 1.442695
    %v1847 = vpow.pop %v1846
    %v1848 = vadd.f32 %v1847, 1.0
    %v1849 = vrcp.pop %v1848
    %v1850 = vmul.f32 %v1848, %v1849
    %v1851 = vsub.f32 1.0, %v1850
    %v1852 = vmul.f32 %v1849, %v1851
    %v1853 = vadd.f32 %v1849, %v1852
    %vm1854 = vweird.f32 %v1848
    %vm1855 = vweird.f32 %v1849
    %vm1856 = vmor %vm1854, %vm1855
    %v1857 = vsel %vm1856, %v1849, %v1853
    %v1858 = vand.u32 2147483647, %v1848
    %vm1859 = vcmp.eq.f32.partialorder %v1858, 8.507059e+37
    %v1860 = vand.u32 %v1848, 2147483648
    %v1861 = vor.u32 1.1754944e-38, %v1860
    %v1862 = vsel %vm1859, %v1861, %v1857
    %v1863 = vmul.f32 1.0, %v1862
    %1864 = vmatpush.msra.mxu0 0.0
    %1865 = vmatpush.msra.mxu0 0.0
    %1866 = vmatpush.msra.mxu0 0.0
    %1867 = vmatpush.msra.mxu0 0.0
    %1868 = vmatpush.msra.mxu0 0.0
    %1869 = vmatpush.msra.mxu0 0.0
    %1870 = vmatpush.msra.mxu0 0.0
    %1871 = vmatpush.msra.mxu0 0.0
    %1872 = vmatpush.msra.mxu0 0.0
    %1873 = vmatpush.msra.mxu0 0.0
    %1874 = vmatpush.msra.mxu0 0.0
    %1875 = vmatpush.msra.mxu0 0.0
    %1876 = vmatpush.msra.mxu0 %v78
    %1877 = vmatpush.msra.mxu0 %v77
    %1878 = vmatpush.msra.mxu0 %v76
    %1879 = vmatpush.msra.mxu0 %v75
    %1880 = vmatmul.f32.gmra.mxu0 %v1782
    %v1881 = vpop.f32.mrf.mxu0
    %v1882 = vadd.f32 %v96, %v1881
    %1883 = vdwg.mxu0
    %v1884 = vmul.f32 %v1843, %v1882
    %v1885 = vadd.f32 %v1774, %v1884
    %v1886 = vtanh.pop %v1885
    %v1887 = vsub.f32 1.0, %v1863
    %v1888 = vmul.f32 %v1887, %v1886
    %v1889 = vmul.f32 %v1863, %v1653
    %v1890 = vadd.f32 %v1888, %v1889
    %v1891 = vsel %vm114, %v1762, 0
    %1893 = vmatpush.msra.mxu0 0.0
    %1894 = vmatpush.msra.mxu0 0.0
    %1895 = vmatpush.msra.mxu0 0.0
    %1896 = vmatpush.msra.mxu0 0.0
    %1897 = vmatpush.msra.mxu0 0.0
    %1898 = vmatpush.msra.mxu0 0.0
    %1899 = vmatpush.msra.mxu0 0.0
    %1900 = vmatpush.msra.mxu0 0.0
    %1901 = vmatpush.msra.mxu0 0.0
    %1902 = vmatpush.msra.mxu0 0.0
    %1903 = vmatpush.msra.mxu0 0.0
    %1904 = vmatpush.msra.mxu0 0.0
    %1905 = vmatpush.msra.mxu0 %v83
    %1906 = vmatpush.msra.mxu0 %v82
    %1907 = vmatpush.msra.mxu0 %v81
    %1908 = vmatpush.msra.mxu0 %v80
    %1909 = vmatmul.f32.gmra.mxu0 %v1891
    %v1910 = vpop.f32.mrf.mxu0
    %v1911 = vadd.f32 0.0, %v1910
    %1912 = vdwg.mxu0
    %1913 = vmatpush.msra.mxu0 0.0
    %1914 = vmatpush.msra.mxu0 0.0
    %1915 = vmatpush.msra.mxu0 0.0
    %1916 = vmatpush.msra.mxu0 0.0
    %1917 = vmatpush.msra.mxu0 0.0
    %1918 = vmatpush.msra.mxu0 0.0
    %1919 = vmatpush.msra.mxu0 0.0
    %1920 = vmatpush.msra.mxu0 0.0
    %1921 = vmatpush.msra.mxu0 0.0
    %1922 = vmatpush.msra.mxu0 0.0
    %1923 = vmatpush.msra.mxu0 0.0
    %1924 = vmatpush.msra.mxu0 0.0
    %1925 = vmatpush.msra.mxu0 %v88
    %1926 = vmatpush.msra.mxu0 %v87
    %1927 = vmatpush.msra.mxu0 %v86
    %1928 = vmatpush.msra.mxu0 %v85
    %1929 = vmatmul.f32.gmra.mxu0 %v1891
    %v1930 = vpop.f32.mrf.mxu0
    %v1931 = vadd.f32 0.0, %v1930
    %1932 = vdwg.mxu0
    %v1933 = vadd.f32 %v1776, %v1911
    %v1934 = vxor.u32 %v1933, 2147483648
    %v1935 = vmul.f32 %v1934, 1.442695
    %v1936 = vpow.pop %v1935
    %v1937 = vadd.f32 %v1936, 1.0
    %v1938 = vrcp.pop %v1937
    %v1939 = vmul.f32 %v1937, %v1938
    %v1940 = vsub.f32 1.0, %v1939
    %v1941 = vmul.f32 %v1938, %v1940
    %v1942 = vadd.f32 %v1938, %v1941
    %vm1943 = vweird.f32 %v1937
    %vm1944 = vweird.f32 %v1938
    %vm1945 = vmor %vm1943, %vm1944
    %v1946 = vsel %vm1945, %v1938, %v1942
    %v1947 = vand.u32 2147483647, %v1937
    %vm1948 = vcmp.eq.f32.partialorder %v1947, 8.507059e+37
    %v1949 = vand.u32 %v1937, 2147483648
    %v1950 = vor.u32 1.1754944e-38, %v1949
    %v1951 = vsel %vm1948, %v1950, %v1946
    %v1952 = vmul.f32 1.0, %v1951
    %v1953 = vadd.f32 %v1778, %v1931
    %v1954 = vxor.u32 %v1953, 2147483648
    %v1955 = vmul.f32 %v1954, 1.442695
    %v1956 = vpow.pop %v1955
    %v1957 = vadd.f32 %v1956, 1.0
    %v1958 = vrcp.pop %v1957
    %v1959 = vmul.f32 %v1957, %v1958
    %v1960 = vsub.f32 1.0, %v1959
    %v1961 = vmul.f32 %v1958, %v1960
    %v1962 = vadd.f32 %v1958, %v1961
    %vm1963 = vweird.f32 %v1957
    %vm1964 = vweird.f32 %v1958
    %vm1965 = vmor %vm1963, %vm1964
    %v1966 = vsel %vm1965, %v1958, %v1962
    %v1967 = vand.u32 2147483647, %v1957
    %vm1968 = vcmp.eq.f32.partialorder %v1967, 8.507059e+37
    %v1969 = vand.u32 %v1957, 2147483648
    %v1970 = vor.u32 1.1754944e-38, %v1969
    %v1971 = vsel %vm1968, %v1970, %v1966
    %v1972 = vmul.f32 1.0, %v1971
    %1973 = vmatpush.msra.mxu0 0.0
    %1974 = vmatpush.msra.mxu0 0.0
    %1975 = vmatpush.msra.mxu0 0.0
    %1976 = vmatpush.msra.mxu0 0.0
    %1977 = vmatpush.msra.mxu0 0.0
    %1978 = vmatpush.msra.mxu0 0.0
    %1979 = vmatpush.msra.mxu0 0.0
    %1980 = vmatpush.msra.mxu0 0.0
    %1981 = vmatpush.msra.mxu0 0.0
    %1982 = vmatpush.msra.mxu0 0.0
    %1983 = vmatpush.msra.mxu0 0.0
    %1984 = vmatpush.msra.mxu0 0.0
    %1985 = vmatpush.msra.mxu0 %v93
    %1986 = vmatpush.msra.mxu0 %v92
    %1987 = vmatpush.msra.mxu0 %v91
    %1988 = vmatpush.msra.mxu0 %v90
    %1989 = vmatmul.f32.gmra.mxu0 %v1891
    %v1990 = vpop.f32.mrf.mxu0
    %v1991 = vadd.f32 %v101, %v1990
    %1992 = vdwg.mxu0
    %v1993 = vmul.f32 %v1952, %v1991
    %v1994 = vadd.f32 %v1780, %v1993
    %v1995 = vtanh.pop %v1994
    %v1996 = vsub.f32 1.0, %v1972
    %v1997 = vmul.f32 %v1996, %v1995
    %v1998 = vmul.f32 %v1972, %v1762
    %v1999 = vadd.f32 %v1997, %v1998
    %2000 = vst.msk [vmem:[%s338] sm:$0x3] %vm332, %v1890
    %2002 = vrot.lane.b32.xlu0 %v1999, 32
    %v2003 = vpop.permute.xlu0 %2002
    %2005 = vst.msk [vmem:[#allocation8] sm:$0x3] %vm339, %v2003
    %2006 = vst.msk [vmem:[#allocation9] sm:$0x3] %vm332, %v1890
    %s2007 = scalar_lea.vmem [#allocation9], 2
    %2008 = vst.msk [vmem:[%s2007] sm:$0x3] %vm332, %v1999
    // Predicated region
    $region26: #{tpu_custom_call.1} parent=1 // pred_check
      _
    $region27: #{tpu_custom_call.1} parent=1 // pred_check_branch
      %2010 = sbr.rel (0) target = $region29
    $region28: #{tpu_custom_call.1} parent=1 // pred_region
      %2012 = vsyncadd [#allocation4], 0
      %s2013 = sshll.u32 [#allocation8], 4
      %s2014 = int_to_ptr.vmem [resolvable:$true] %s2013
      %s2015 = sshll.u32 %s3, 4
      %s2016 = int_to_ptr.hbm [resolvable:$true] %s2015
      %2021 = dma.vmem_to_hbm [thread:$0]  %s2014, 256, %s2016, [#allocation4], 32, 32, 2
    $region29: #{tpu_custom_call.1} parent=1 // pred_fallthru
      _
    // Predicated region
    $region30: #{tpu_custom_call.1} parent=1 // pred_check
      _
    $region31: #{tpu_custom_call.1} parent=1 // pred_check_branch
      %2023 = sbr.rel (0) target = $region33
    $region32: #{tpu_custom_call.1} parent=1 // pred_region
      %2025 = vsyncadd [#allocation10], 0
      %s2026 = sshll.u32 [#allocation9], 4
      %s2027 = int_to_ptr.vmem [resolvable:$true] %s2026
      %s2028 = sshll.u32 %s4, 4
      %s2029 = int_to_ptr.hbm [resolvable:$true] %s2028
      %2034 = dma.vmem_to_hbm [thread:$0]  %s2027, 64, %s2029, [#allocation10], 32, 32, 2
    $region33: #{tpu_custom_call.1} parent=1 // pred_fallthru
      _
    // Predicated region
    $region34: #{tpu_custom_call.1} parent=1 // pred_check
      _
    $region35: #{tpu_custom_call.1} parent=1 // pred_check_branch
      %2036 = sbr.rel (0) target = $region37
    $region36: #{tpu_custom_call.1} parent=1 // pred_region
      %2038 = dma.done [#allocation4], 256
    $region37: #{tpu_custom_call.1} parent=1 // pred_fallthru
      _
    // Predicated region
    $region38: #{tpu_custom_call.1} parent=1 // pred_check
      _
    $region39: #{tpu_custom_call.1} parent=1 // pred_check_branch
      %2040 = sbr.rel (0) target = $region41
    $region40: #{tpu_custom_call.1} parent=1 // pred_region
      %2042 = dma.done [#allocation10], 64
    $region41: #{tpu_custom_call.1} parent=1 // pred_fallthru
      _
    %2043 = vsyncpa [#allocation3], 1
    %2044 = vsyncpa [#allocation6], 1
    %2045 = vsyncpa [#allocation4], 1
    %2046 = vsyncpa [#allocation10], 1

</llo_original>
